<compile_context>
chip_gen: v7x
topology: tpu7x:2x2x1
jax: 0.10.0
libtpu: 0.0.40
codegen_flags: <defaults>
</compile_context>

<pallas_src>
import jax
import jax.numpy as jnp
import numpy as np
from jax.experimental import pallas as pl
from jax.experimental.pallas import tpu as pltpu

# ----------------------------- configuration ------------------------------
D_IN = 3
D_OUT = 1
D_HIDDEN = 32
N_LAYERS = 4
SKIP_IN = (2,)
BIAS = 0.5
SCALE = 1.0


# ----------------------------- parameter init -----------------------------
def init_params(key):
    """Deterministic geometric init matching CAPUDFNetwork.__init__.

    Returns list of (W, b) with W of shape (out_dim, in_dim) (torch layout)
    and b of shape (out_dim,), float32.  weight_norm at init is an identity
    reparametrization, so effective weights equal the geometric-init weights.
    """
    dims = [D_IN] + [D_HIDDEN] * N_LAYERS + [D_OUT]
    num_layers = len(dims)
    params = []
    for l in range(num_layers - 1):
        if l + 1 in SKIP_IN:
            out_dim = dims[l + 1] - dims[0]
        else:
            out_dim = dims[l + 1]
        key, wk = jax.random.split(key)
        if l == num_layers - 2:
            # not inside_outside: mean sqrt(pi)/sqrt(dims[l]), std 1e-4, bias -BIAS
            mean = np.sqrt(np.pi) / np.sqrt(dims[l])
            W = mean + 1e-4 * jax.random.normal(wk, (out_dim, dims[l]), jnp.float32)
            b = jnp.full((out_dim,), -BIAS, jnp.float32)
        else:
            # multires == 0 -> plain geometric init branch for all other layers
            std = np.sqrt(2.0) / np.sqrt(out_dim)
            W = std * jax.random.normal(wk, (out_dim, dims[l]), jnp.float32)
            b = jnp.zeros((out_dim,), jnp.float32)
        params.append((jnp.asarray(W, jnp.float32), jnp.asarray(b, jnp.float32)))
    return params, dims


# ------------------------ host-side parameter prep -------------------------
def prepare_kernel_params(params, dims, skip_in=SKIP_IN, scale=SCALE):
    """Split skip weights, pad odd hidden widths to a multiple of 8 sublanes,
    and fold `scale` / 1/sqrt(2) / final 1/scale into the weights.

    Per-layer kinds:
      "fma"   : first layer, tiny K -> VPU broadcast FMAs.  [W(out,d_in), b(out,1)]
      "dense" : MXU layer.                                   [W(out,in),   b(out,1)]
      "skip"  : MXU on running x + VPU FMAs on raw inputs.   [Wa, Wb, b]
      "last"  : single-output layer -> VPU mul + sublane sum.[Wt(in,1),    b(1,1)]
    """
    num_layers = len(dims)
    inv_sqrt2 = 1.0 / np.sqrt(2.0)
    flat, layout = [], []
    prev_pad = 0  # zero rows appended to the previous layer's output
    for l, (W, b) in enumerate(params):
        W = np.asarray(W, np.float32)
        b = np.asarray(b, np.float32).reshape(-1, 1)
        last = l == num_layers - 2
        if l == 0:
            W = W * scale                      # layer 0 sees raw x; absorb input scaling
        if last:
            W = W / scale                      # abs(y)/scale == abs(y/scale) for scale>0
            b = b / scale
        out_dim = W.shape[0]
        if l in skip_in:
            # torch: x = cat([x, inputs], 1) / sqrt(2); x = lin(x)
            k = W.shape[1] - dims[0]           # columns multiplying the running x
            Wa = W[:, :k] * inv_sqrt2
            Wb = W[:, k:] * (inv_sqrt2 * scale)  # columns multiplying raw inputs
            if prev_pad:
                Wa = np.pad(Wa, ((0, 0), (0, prev_pad)))
            Ws = [Wa, Wb]
            kind = "skip"
        elif l == 0 and W.shape[1] <= 8:
            Ws = [W]                           # columns become per-k FMA weights
            kind = "fma"
        elif last and out_dim == 1:
            Wt = W.T                           # (in, 1): elementwise mul + sublane reduce
            if prev_pad:
                Wt = np.pad(Wt, ((0, prev_pad), (0, 0)))
            Ws = [Wt]
            kind = "last"
        else:
            if prev_pad:
                W = np.pad(W, ((0, 0), (0, prev_pad)))
            Ws = [W]
            kind = "dense"
        layout.append(kind)
        # Pad this layer's output rows up to a multiple of 8 (sublane friendly).
        # Padded rows get zero weights + zero bias -> ReLU(0)=0, and the next
        # layer gets zero columns for them, so numerics are unchanged.
        out_pad = (-out_dim) % 8 if not last else 0
        if out_pad:
            Ws = [np.pad(Wi, ((0, out_pad), (0, 0))) for Wi in Ws]
            b = np.pad(b, ((0, out_pad), (0, 0)))
        prev_pad = out_pad
        flat.extend(Ws)
        flat.append(b)
    flat = [np.ascontiguousarray(a, np.float32) for a in flat]
    return flat, tuple(layout)


# ------------------------------- the kernel -------------------------------
def make_kernel(layout, use_bf16=False):
    n_lin = len(layout)

    def dotf(A, B):
        # MXU matmul; optional bf16 inputs with f32 accumulation.
        if use_bf16:
            A = A.astype(jnp.bfloat16)
            B = B.astype(jnp.bfloat16)
        return jnp.dot(A, B, preferred_element_type=jnp.float32)

    def kernel(x_ref, *refs):
        # refs = (params..., o_ref).  All constants already folded on the host.
        o_ref = refs[-1]
        w = refs[:-1]

        inp = x_ref[...]                        # (d_in, tn), raw inputs (lanes = points)
        x = inp
        idx = 0
        for l, kind in enumerate(layout):
            if kind == "fma":
                # K<=8 underfills the MXU: do it as broadcast FMAs on idle VALU slots.
                W = w[idx][...]                 # (out, d_in)
                b = w[idx + 1][...]             # (out, 1)
                idx += 2
                y = b
                for k in range(W.shape[1]):
                    y = y + W[:, k:k + 1] * inp[k:k + 1, :]
            elif kind == "skip":
                Wa = w[idx][...]                # (out, hid) -> MXU
                Wb = w[idx + 1][...]            # (out, d_in) -> VPU FMAs on raw inputs
                b = w[idx + 2][...]
                idx += 3
                y = dotf(Wa, x) + b
                for k in range(Wb.shape[1]):
                    y = y + Wb[:, k:k + 1] * inp[k:k + 1, :]
            elif kind == "last":
                # 1-row output: elementwise mul + sublane reduce (VPU/XLU), no MXU push.
                Wt = w[idx][...]                # (hid, 1)
                b = w[idx + 1][...]             # (1, 1)
                idx += 2
                y = jnp.sum(Wt * x, axis=0, keepdims=True) + b
            else:  # "dense" -> MXU
                W = w[idx][...]
                b = w[idx + 1][...]
                idx += 2
                y = dotf(W, x) + b
            if l < n_lin - 1:
                y = jnp.maximum(y, 0.0)         # ReLU
            x = y
        # res = abs(x); final /scale folded into the last layer's weights.
        # (act_last sigmoid is defined in the module but unused in forward.)
        o_ref[...] = jnp.abs(x)

    return kernel


# ------------------------------- the wrapper ------------------------------
def build_capudf_forward(params, dims, skip_in=SKIP_IN, scale=SCALE, tn=2048,
                         use_bf16=False):
    """Build jitted forward functions.  Weight prep runs exactly once here.

    Returns (forward, forward_t):
      forward(x)    with x of shape (N, d_in)   -> (N, d_out)
      forward_t(xt) with xt of shape (d_in, N)  -> (d_out, N)   (no transpose pass)
    tn is the per-grid-step point tile; sweep 2048-8192 (>=4096 on v5e).
    """
    assert tn % 128 == 0
    flat, layout = prepare_kernel_params(params, dims, skip_in, scale)
    d_in, d_out = dims[0], dims[-1]
    kernel = make_kernel(layout, use_bf16=use_bf16)

    # VMEM budget guard (mostly matters on v7x: 64 MiB phys / 32 MiB scoped default).
    est_vmem = (8 * D_HIDDEN * tn * 4          # live (hid, tn) f32 temporaries
                + 4 * (d_in + d_out) * tn * 4  # double-buffered I/O blocks
                + (2 << 20))                   # weights + slack
    vmem_limit = est_vmem if est_vmem > (30 << 20) else None

    def _pallas(xt):                           # xt: (d_in, n_pad), n_pad % (2*tn) == 0
        n_pad = xt.shape[1]
        in_specs = [pl.BlockSpec((d_in, tn), lambda i: (0, i))]
        in_specs += [pl.BlockSpec(a.shape, lambda i: (0, 0)) for a in flat]
        return pl.pallas_call(
            kernel,
            out_shape=jax.ShapeDtypeStruct((d_out, n_pad), jnp.float32),
            grid=(n_pad // tn,),
            in_specs=in_specs,
            out_specs=pl.BlockSpec((d_out, tn), lambda i: (0, i)),
            compiler_params=pltpu.CompilerParams(
                dimension_semantics=("parallel",),
                vmem_limit_bytes=vmem_limit),
        )(xt, *flat)

    @jax.jit
    def forward(x):                            # (N, d_in) -> (N, d_out)
        N = x.shape[0]
        # Pad so the grid is even and >= 2: keeps both v7x TensorCores busy.
        n_pad = pl.cdiv(N, 2 * tn) * (2 * tn)
        xt = jnp.zeros((d_in, n_pad), jnp.float32).at[:, :N].set(
            x.astype(jnp.float32).T)
        return _pallas(xt)[:, :N].T

    @jax.jit
    def forward_t(xt):                         # (d_in, N) -> (d_out, N), lane-major input
        N = xt.shape[1]
        n_pad = pl.cdiv(N, 2 * tn) * (2 * tn)
        xt = jnp.pad(xt.astype(jnp.float32), ((0, 0), (0, n_pad - N)))
        return _pallas(xt)[:, :N]

    return forward, forward_t


# --------------------------- pure-JAX reference ---------------------------
def capudf_reference(x, params, dims, skip_in=SKIP_IN, scale=SCALE):
    inp = x.astype(jnp.float32) * scale
    h = inp
    num_layers = len(dims)
    for l in range(num_layers - 1):
        W, b = params[l]
        if l in skip_in:
            h = jnp.concatenate([h, inp], axis=1) / np.sqrt(2.0)
        h = h @ W.T + b
        if l < num_layers - 2:
            h = jax.nn.relu(h)
    return jnp.abs(h) / scale


# ----------------------------------- main ----------------------------------
if __name__ == "__main__":
    key = jax.random.PRNGKey(0)
    pkey, xkey = jax.random.split(key)

    params, dims = init_params(pkey)

    # deliberately not a multiple of the row tile to exercise the padding path
    N = 2000
    x = jax.random.normal(xkey, (N, D_IN), jnp.float32)

    # Build once (weight prep hoisted out of the per-call path), jitted wrapper.
    forward, forward_t = build_capudf_forward(params, dims, tn=2048, use_bf16=False)

    out = jax.block_until_ready(forward(x))
    ref = jax.block_until_ready(capudf_reference(x, params, dims))

    assert out.shape == (N, D_OUT), out.shape
    np.testing.assert_allclose(np.asarray(out), np.asarray(ref),
                               rtol=1e-5, atol=1e-5)

    # Transpose-free entry point for upstream (d_in, N) producers.
    out_t = jax.block_until_ready(forward_t(x.T))
    np.testing.assert_allclose(np.asarray(out_t), np.asarray(ref).T,
                               rtol=1e-5, atol=1e-5)

    # TODO(synk): gradient() (autograd w.r.t. inputs) is not part of forward
    # and is left to jax.grad over this wrapper.
    print("KERNEL_OK")
</pallas_src>

<mosaic_0001>
module attributes {stable_mosaic.version = 11 : i64} {
  func.func @kernel(%arg0: i32, %arg1: memref<3x2048xf32, #tpu.memory_space<vmem>>, %arg2: memref<32x3xf32, #tpu.memory_space<vmem>>, %arg3: memref<32x1xf32, #tpu.memory_space<vmem>>, %arg4: memref<32x32xf32, #tpu.memory_space<vmem>>, %arg5: memref<32x1xf32, #tpu.memory_space<vmem>>, %arg6: memref<32x32xf32, #tpu.memory_space<vmem>>, %arg7: memref<32x3xf32, #tpu.memory_space<vmem>>, %arg8: memref<32x1xf32, #tpu.memory_space<vmem>>, %arg9: memref<32x32xf32, #tpu.memory_space<vmem>>, %arg10: memref<32x1xf32, #tpu.memory_space<vmem>>, %arg11: memref<32x1xf32, #tpu.memory_space<vmem>>, %arg12: memref<1x1xf32, #tpu.memory_space<vmem>>, %arg13: memref<1x2048xf32, #tpu.memory_space<vmem>>) attributes {dimension_semantics = [#tpu.dimension_semantics<parallel>], iteration_bounds = array<i64: 2>, scalar_prefetch = 0 : i64, scratch_operands = 0 : i64, tpu.core_type = #tpu.core_type<tc>, window_params = [{transform_indices = @transform_0, window_bounds = array<i64: 3, 2048>}, {pipeline_mode = #tpu.pipeline_mode<synchronous>, transform_indices = @transform_1, window_bounds = array<i64: 32, 3>}, {pipeline_mode = #tpu.pipeline_mode<synchronous>, transform_indices = @transform_2, window_bounds = array<i64: 32, 1>}, {pipeline_mode = #tpu.pipeline_mode<synchronous>, transform_indices = @transform_3, window_bounds = array<i64: 32, 32>}, {pipeline_mode = #tpu.pipeline_mode<synchronous>, transform_indices = @transform_4, window_bounds = array<i64: 32, 1>}, {pipeline_mode = #tpu.pipeline_mode<synchronous>, transform_indices = @transform_5, window_bounds = array<i64: 32, 32>}, {pipeline_mode = #tpu.pipeline_mode<synchronous>, transform_indices = @transform_6, window_bounds = array<i64: 32, 3>}, {pipeline_mode = #tpu.pipeline_mode<synchronous>, transform_indices = @transform_7, window_bounds = array<i64: 32, 1>}, {pipeline_mode = #tpu.pipeline_mode<synchronous>, transform_indices = @transform_8, window_bounds = array<i64: 32, 32>}, {pipeline_mode = #tpu.pipeline_mode<synchronous>, transform_indices = @transform_9, window_bounds = array<i64: 32, 1>}, {pipeline_mode = #tpu.pipeline_mode<synchronous>, transform_indices = @transform_10, window_bounds = array<i64: 32, 1>}, {pipeline_mode = #tpu.pipeline_mode<synchronous>, transform_indices = @transform_11, window_bounds = array<i64: 1, 1>}, {transform_indices = @transform_12, window_bounds = array<i64: 1, 2048>}]} {
    %c0 = arith.constant 0 : index
    %c0_0 = arith.constant 0 : index
    %0 = vector.load %arg1[%c0, %c0_0] : memref<3x2048xf32, #tpu.memory_space<vmem>>, vector<3x2048xf32>
    %c0_1 = arith.constant 0 : index
    %c0_2 = arith.constant 0 : index
    %1 = vector.load %arg2[%c0_1, %c0_2] : memref<32x3xf32, #tpu.memory_space<vmem>>, vector<32x3xf32>
    %c0_3 = arith.constant 0 : index
    %c0_4 = arith.constant 0 : index
    %2 = vector.load %arg3[%c0_3, %c0_4] : memref<32x1xf32, #tpu.memory_space<vmem>>, vector<32x1xf32>
    %3 = vector.extract_strided_slice %1 {offsets = [0, 0], sizes = [32, 1], strides = [1, 1]} : vector<32x3xf32> to vector<32x1xf32>
    %4 = vector.extract_strided_slice %0 {offsets = [0, 0], sizes = [1, 2048], strides = [1, 1]} : vector<3x2048xf32> to vector<1x2048xf32>
    %5 = vector.broadcast %3 : vector<32x1xf32> to vector<32x2048xf32>
    %6 = vector.broadcast %4 : vector<1x2048xf32> to vector<32x2048xf32>
    %7 = arith.mulf %5, %6 : vector<32x2048xf32>
    %8 = vector.broadcast %2 : vector<32x1xf32> to vector<32x2048xf32>
    %9 = arith.addf %8, %7 : vector<32x2048xf32>
    %10 = vector.extract_strided_slice %1 {offsets = [0, 1], sizes = [32, 1], strides = [1, 1]} : vector<32x3xf32> to vector<32x1xf32>
    %11 = vector.extract_strided_slice %0 {offsets = [1, 0], sizes = [1, 2048], strides = [1, 1]} : vector<3x2048xf32> to vector<1x2048xf32>
    %12 = vector.broadcast %10 : vector<32x1xf32> to vector<32x2048xf32>
    %13 = vector.broadcast %11 : vector<1x2048xf32> to vector<32x2048xf32>
    %14 = arith.mulf %12, %13 : vector<32x2048xf32>
    %15 = arith.addf %9, %14 : vector<32x2048xf32>
    %16 = vector.extract_strided_slice %1 {offsets = [0, 2], sizes = [32, 1], strides = [1, 1]} : vector<32x3xf32> to vector<32x1xf32>
    %17 = vector.extract_strided_slice %0 {offsets = [2, 0], sizes = [1, 2048], strides = [1, 1]} : vector<3x2048xf32> to vector<1x2048xf32>
    %18 = vector.broadcast %16 : vector<32x1xf32> to vector<32x2048xf32>
    %19 = vector.broadcast %17 : vector<1x2048xf32> to vector<32x2048xf32>
    %20 = arith.mulf %18, %19 : vector<32x2048xf32>
    %21 = arith.addf %15, %20 : vector<32x2048xf32>
    %cst = arith.constant 0.000000e+00 : f32
    %22 = vector.broadcast %cst : f32 to vector<32x2048xf32>
    %23 = arith.maximumf %21, %22 : vector<32x2048xf32>
    %c0_5 = arith.constant 0 : index
    %c0_6 = arith.constant 0 : index
    %24 = vector.load %arg4[%c0_5, %c0_6] : memref<32x32xf32, #tpu.memory_space<vmem>>, vector<32x32xf32>
    %c0_7 = arith.constant 0 : index
    %c0_8 = arith.constant 0 : index
    %25 = vector.load %arg5[%c0_7, %c0_8] : memref<32x1xf32, #tpu.memory_space<vmem>>, vector<32x1xf32>
    %cst_9 = arith.constant dense<0.000000e+00> : vector<32x2048xf32>
    %26 = tpu.matmul %24, %23, %cst_9 {dimension_numbers = #tpu.dot_dimension_numbers<[1], [0], [0], [1], [0, 0, 1, 1], [], []>} : vector<32x32xf32>, vector<32x2048xf32>, vector<32x2048xf32> -> vector<32x2048xf32>
    %27 = vector.broadcast %25 : vector<32x1xf32> to vector<32x2048xf32>
    %28 = arith.addf %26, %27 : vector<32x2048xf32>
    %cst_10 = arith.constant 0.000000e+00 : f32
    %29 = vector.broadcast %cst_10 : f32 to vector<32x2048xf32>
    %30 = arith.maximumf %28, %29 : vector<32x2048xf32>
    %c0_11 = arith.constant 0 : index
    %c0_12 = arith.constant 0 : index
    %31 = vector.load %arg6[%c0_11, %c0_12] : memref<32x32xf32, #tpu.memory_space<vmem>>, vector<32x32xf32>
    %c0_13 = arith.constant 0 : index
    %c0_14 = arith.constant 0 : index
    %32 = vector.load %arg7[%c0_13, %c0_14] : memref<32x3xf32, #tpu.memory_space<vmem>>, vector<32x3xf32>
    %c0_15 = arith.constant 0 : index
    %c0_16 = arith.constant 0 : index
    %33 = vector.load %arg8[%c0_15, %c0_16] : memref<32x1xf32, #tpu.memory_space<vmem>>, vector<32x1xf32>
    %cst_17 = arith.constant dense<0.000000e+00> : vector<32x2048xf32>
    %34 = tpu.matmul %31, %30, %cst_17 {dimension_numbers = #tpu.dot_dimension_numbers<[1], [0], [0], [1], [0, 0, 1, 1], [], []>} : vector<32x32xf32>, vector<32x2048xf32>, vector<32x2048xf32> -> vector<32x2048xf32>
    %35 = vector.broadcast %33 : vector<32x1xf32> to vector<32x2048xf32>
    %36 = arith.addf %34, %35 : vector<32x2048xf32>
    %37 = vector.extract_strided_slice %32 {offsets = [0, 0], sizes = [32, 1], strides = [1, 1]} : vector<32x3xf32> to vector<32x1xf32>
    %38 = vector.extract_strided_slice %0 {offsets = [0, 0], sizes = [1, 2048], strides = [1, 1]} : vector<3x2048xf32> to vector<1x2048xf32>
    %39 = vector.broadcast %37 : vector<32x1xf32> to vector<32x2048xf32>
    %40 = vector.broadcast %38 : vector<1x2048xf32> to vector<32x2048xf32>
    %41 = arith.mulf %39, %40 : vector<32x2048xf32>
    %42 = arith.addf %36, %41 : vector<32x2048xf32>
    %43 = vector.extract_strided_slice %32 {offsets = [0, 1], sizes = [32, 1], strides = [1, 1]} : vector<32x3xf32> to vector<32x1xf32>
    %44 = vector.extract_strided_slice %0 {offsets = [1, 0], sizes = [1, 2048], strides = [1, 1]} : vector<3x2048xf32> to vector<1x2048xf32>
    %45 = vector.broadcast %43 : vector<32x1xf32> to vector<32x2048xf32>
    %46 = vector.broadcast %44 : vector<1x2048xf32> to vector<32x2048xf32>
    %47 = arith.mulf %45, %46 : vector<32x2048xf32>
    %48 = arith.addf %42, %47 : vector<32x2048xf32>
    %49 = vector.extract_strided_slice %32 {offsets = [0, 2], sizes = [32, 1], strides = [1, 1]} : vector<32x3xf32> to vector<32x1xf32>
    %50 = vector.extract_strided_slice %0 {offsets = [2, 0], sizes = [1, 2048], strides = [1, 1]} : vector<3x2048xf32> to vector<1x2048xf32>
    %51 = vector.broadcast %49 : vector<32x1xf32> to vector<32x2048xf32>
    %52 = vector.broadcast %50 : vector<1x2048xf32> to vector<32x2048xf32>
    %53 = arith.mulf %51, %52 : vector<32x2048xf32>
    %54 = arith.addf %48, %53 : vector<32x2048xf32>
    %cst_18 = arith.constant 0.000000e+00 : f32
    %55 = vector.broadcast %cst_18 : f32 to vector<32x2048xf32>
    %56 = arith.maximumf %54, %55 : vector<32x2048xf32>
    %c0_19 = arith.constant 0 : index
    %c0_20 = arith.constant 0 : index
    %57 = vector.load %arg9[%c0_19, %c0_20] : memref<32x32xf32, #tpu.memory_space<vmem>>, vector<32x32xf32>
    %c0_21 = arith.constant 0 : index
    %c0_22 = arith.constant 0 : index
    %58 = vector.load %arg10[%c0_21, %c0_22] : memref<32x1xf32, #tpu.memory_space<vmem>>, vector<32x1xf32>
    %cst_23 = arith.constant dense<0.000000e+00> : vector<32x2048xf32>
    %59 = tpu.matmul %57, %56, %cst_23 {dimension_numbers = #tpu.dot_dimension_numbers<[1], [0], [0], [1], [0, 0, 1, 1], [], []>} : vector<32x32xf32>, vector<32x2048xf32>, vector<32x2048xf32> -> vector<32x2048xf32>
    %60 = vector.broadcast %58 : vector<32x1xf32> to vector<32x2048xf32>
    %61 = arith.addf %59, %60 : vector<32x2048xf32>
    %cst_24 = arith.constant 0.000000e+00 : f32
    %62 = vector.broadcast %cst_24 : f32 to vector<32x2048xf32>
    %63 = arith.maximumf %61, %62 : vector<32x2048xf32>
    %c0_25 = arith.constant 0 : index
    %c0_26 = arith.constant 0 : index
    %64 = vector.load %arg11[%c0_25, %c0_26] : memref<32x1xf32, #tpu.memory_space<vmem>>, vector<32x1xf32>
    %c0_27 = arith.constant 0 : index
    %c0_28 = arith.constant 0 : index
    %65 = vector.load %arg12[%c0_27, %c0_28] : memref<1x1xf32, #tpu.memory_space<vmem>>, vector<1x1xf32>
    %66 = vector.broadcast %64 : vector<32x1xf32> to vector<32x2048xf32>
    %67 = arith.mulf %66, %63 : vector<32x2048xf32>
    %cst_29 = arith.constant dense<0.000000e+00> : vector<2048xf32>
    %68 = vector.multi_reduction <add>, %67, %cst_29 [0] : vector<32x2048xf32> to vector<2048xf32>
    %69 = vector.shape_cast %68 : vector<2048xf32> to vector<1x2048xf32>
    %70 = vector.broadcast %65 : vector<1x1xf32> to vector<1x2048xf32>
    %71 = arith.addf %69, %70 : vector<1x2048xf32>
    %72 = math.absf %71 : vector<1x2048xf32>
    %c0_30 = arith.constant 0 : index
    %c0_31 = arith.constant 0 : index
    %73 = vector.load %arg13[%c0_30, %c0_31] : memref<1x2048xf32, #tpu.memory_space<vmem>>, vector<1x2048xf32>
    tpu.vector_store %arg13[%c0_30, %c0_31], %72 {strides = array<i32>} : memref<1x2048xf32, #tpu.memory_space<vmem>>, vector<1x2048xf32>,
    return
  }
  func.func @transform_0(%arg0: i32) -> (i32, i32) {
    %c0_i32 = arith.constant 0 : i32
    %c0_i32_0 = arith.constant 0 : i32
    return %c0_i32, %arg0 : i32, i32
  }
  func.func @transform_1(%arg0: i32) -> (i32, i32) {
    %c0_i32 = arith.constant 0 : i32
    %c0_i32_0 = arith.constant 0 : i32
    %c0_i32_1 = arith.constant 0 : i32
    return %c0_i32, %c0_i32_0 : i32, i32
  }
  func.func @transform_2(%arg0: i32) -> (i32, i32) {
    %c0_i32 = arith.constant 0 : i32
    %c0_i32_0 = arith.constant 0 : i32
    %c0_i32_1 = arith.constant 0 : i32
    return %c0_i32, %c0_i32_0 : i32, i32
  }
  func.func @transform_3(%arg0: i32) -> (i32, i32) {
    %c0_i32 = arith.constant 0 : i32
    %c0_i32_0 = arith.constant 0 : i32
    %c0_i32_1 = arith.constant 0 : i32
    return %c0_i32, %c0_i32_0 : i32, i32
  }
  func.func @transform_4(%arg0: i32) -> (i32, i32) {
    %c0_i32 = arith.constant 0 : i32
    %c0_i32_0 = arith.constant 0 : i32
    %c0_i32_1 = arith.constant 0 : i32
    return %c0_i32, %c0_i32_0 : i32, i32
  }
  func.func @transform_5(%arg0: i32) -> (i32, i32) {
    %c0_i32 = arith.constant 0 : i32
    %c0_i32_0 = arith.constant 0 : i32
    %c0_i32_1 = arith.constant 0 : i32
    return %c0_i32, %c0_i32_0 : i32, i32
  }
  func.func @transform_6(%arg0: i32) -> (i32, i32) {
    %c0_i32 = arith.constant 0 : i32
    %c0_i32_0 = arith.constant 0 : i32
    %c0_i32_1 = arith.constant 0 : i32
    return %c0_i32, %c0_i32_0 : i32, i32
  }
  func.func @transform_7(%arg0: i32) -> (i32, i32) {
    %c0_i32 = arith.constant 0 : i32
    %c0_i32_0 = arith.constant 0 : i32
    %c0_i32_1 = arith.constant 0 : i32
    return %c0_i32, %c0_i32_0 : i32, i32
  }
  func.func @transform_8(%arg0: i32) -> (i32, i32) {
    %c0_i32 = arith.constant 0 : i32
    %c0_i32_0 = arith.constant 0 : i32
    %c0_i32_1 = arith.constant 0 : i32
    return %c0_i32, %c0_i32_0 : i32, i32
  }
  func.func @transform_9(%arg0: i32) -> (i32, i32) {
    %c0_i32 = arith.constant 0 : i32
    %c0_i32_0 = arith.constant 0 : i32
    %c0_i32_1 = arith.constant 0 : i32
    return %c0_i32, %c0_i32_0 : i32, i32
  }
  func.func @transform_10(%arg0: i32) -> (i32, i32) {
    %c0_i32 = arith.constant 0 : i32
    %c0_i32_0 = arith.constant 0 : i32
    %c0_i32_1 = arith.constant 0 : i32
    return %c0_i32, %c0_i32_0 : i32, i32
  }
  func.func @transform_11(%arg0: i32) -> (i32, i32) {
    %c0_i32 = arith.constant 0 : i32
    %c0_i32_0 = arith.constant 0 : i32
    %c0_i32_1 = arith.constant 0 : i32
    return %c0_i32, %c0_i32_0 : i32, i32
  }
  func.func @transform_12(%arg0: i32) -> (i32, i32) {
    %c0_i32 = arith.constant 0 : i32
    %c0_i32_0 = arith.constant 0 : i32
    return %c0_i32, %arg0 : i32, i32
  }
}

</mosaic_0001>

<llo_original>
// kernel: forward.1
$region0: #{forward.1}
  #allocation0 [shape = 'u32[]', space=smem, size = 0x4, offset = 0x4, fixed_abs, tag = 'smem constant byte address 0x4 - core index']
  #allocation1 [shape = 'u32[144,128]{1,0:T(1,128)}', space=vmem, size = 0x12000, scoped, tag = 'internal scratch']
  #allocation2 [shape = 'f32[1,1]{1,0:T(1,128)S(1)}', space=vmem, size = 0x200, scoped, tag = 'scoped memory for forward.1']
  %s0 = inlined_call_operand.vmem [shape: f32[3,4096], index: 0, kind: input, shape index: {}]
  %s1 = inlined_call_operand.vmem [shape: f32[32,3], index: 1, kind: input, shape index: {}]
  %s2 = inlined_call_operand.vmem [shape: f32[32,1], index: 2, kind: input, shape index: {}, may-alias: {2,4,7,9}]
  %s3 = inlined_call_operand.vmem [shape: f32[32,32], index: 3, kind: input, shape index: {}]
  %s4 = inlined_call_operand.vmem [shape: f32[32,1], index: 4, kind: input, shape index: {}, may-alias: {2,4,7,9}]
  %s5 = inlined_call_operand.vmem [shape: f32[32,32], index: 5, kind: input, shape index: {}]
  %s6 = inlined_call_operand.vmem [shape: f32[32,3], index: 6, kind: input, shape index: {}]
  %s7 = inlined_call_operand.vmem [shape: f32[32,1], index: 7, kind: input, shape index: {}, may-alias: {2,4,7,9}]
  %s8 = inlined_call_operand.vmem [shape: f32[32,32], index: 8, kind: input, shape index: {}]
  %s9 = inlined_call_operand.vmem [shape: f32[32,1], index: 9, kind: input, shape index: {}, may-alias: {2,4,7,9}]
  %s10 = inlined_call_operand.vmem [shape: f32[32,1], index: 10, kind: input, shape index: {}]
  %s11 = inlined_call_operand.<no memory space> [shape: f32[1,1], index: 11, kind: input, shape index: {}]
  %s12 = inlined_call_operand.vmem [shape: f32[1,4096], index: 12, kind: output, shape index: {}]
  %s13 = sld [smem:[#allocation0]]
  $region81: #{forward.1} parent=0
    _
  %s15 = ssub.s32 1, %s13
  %s16 = scalar_select 0, %s15, %s13
  %v17 = vstv %s11
  %18 = vst [vmem:[#allocation2] sm:$0x1] %v17
  loop: start=0, step=1, limit=4
  $region2: #{forward.1} parent=0 // loop_pre_header
    _
  $region3: #{forward.1} parent=0 // loop_header
    %s20 = sphi 0, %s24
    %p21 = scmp.ge.s32.totalorder %s20, 4
    %s30 = sphi 0, %s32
    %s33 = sphi 0, %s30
    %s34 = sphi 0, %s33
    %s50 = sphi 0, %s34
    %s54 = sphi 0, %s54
    %s56 = sphi 0, %s54
    %s57 = sphi 0, %s56
    %s71 = sphi 0, %s57
    %s75 = sphi 0, %s75
    %s77 = sphi 0, %s75
    %s78 = sphi 0, %s77
    %s92 = sphi 0, %s78
    %s96 = sphi 0, %s96
    %s98 = sphi 0, %s96
    %s99 = sphi 0, %s98
    %s113 = sphi 0, %s99
    %s117 = sphi 0, %s117
    %s119 = sphi 0, %s117
    %s120 = sphi 0, %s119
    %s134 = sphi 0, %s120
    %s138 = sphi 0, %s138
    %s140 = sphi 0, %s138
    %s141 = sphi 0, %s140
    %s155 = sphi 0, %s141
    %s159 = sphi 0, %s159
    %s161 = sphi 0, %s159
    %s162 = sphi 0, %s161
    %s176 = sphi 0, %s162
    %s180 = sphi 0, %s180
    %s182 = sphi 0, %s180
    %s183 = sphi 0, %s182
    %s197 = sphi 0, %s183
    %s201 = sphi 0, %s201
    %s203 = sphi 0, %s201
    %s204 = sphi 0, %s203
    %s218 = sphi 0, %s204
    %s222 = sphi 0, %s222
    %s224 = sphi 0, %s222
    %s225 = sphi 0, %s224
    %s239 = sphi 0, %s225
    %s243 = sphi 0, %s243
    %s245 = sphi 0, %s243
    %s246 = sphi 0, %s245
    %s260 = sphi 0, %s246
    %s264 = sphi 0, %s264
    %s266 = sphi 0, %s264
    %s267 = sphi 0, %s266
    %s281 = sphi 0, %s267
    %s287 = sphi 0, %s289
    %s290 = sphi 0, %s287
    %s291 = sphi 0, %s290
    %s307 = sphi 0, %s291
  $region4: #{forward.1} parent=0 // loop_header_branch
    %23 = sbr.rel (%p21) target = $region8
  $region5: #{forward.1} parent=0 // loop_body
    %s25 = ssub.s32 %s20, 1
    %s26 = ssub.s32 %s20, 2
    %s27 = sadd.s32 %s20, 1
    %s28 = ssub.s32 %s20, %s27
    %p29 = scmp.eq.s32.totalorder %s28, 0
    %s31 = sadd.s32 %s30, 1
    %s32 = scalar_select %p29, %s30, %s31
    %p35 = pneg %p29
    %p36 = scmp.eq.s32.totalorder %s20, 1
    %p37 = por %p35, %p36
    %p38 = scmp.ne.s32.totalorder %s30, %s33
    %p39 = scmp.eq.s32.totalorder %s20, 0
    %p40 = por %p38, %p39
    %p41 = scmp.ne.s32.totalorder %s30, %s33
    %p42 = scmp.eq.s32.totalorder %s25, 1
    %p43 = por %p41, %p42
    %p44 = scmp.ne.s32.totalorder %s33, %s34
    %p45 = scmp.eq.s32.totalorder %s25, 0
    %p46 = por %p44, %p45
    %p47 = scmp.ne.s32.totalorder %s33, %s34
    %p48 = scmp.eq.s32.totalorder %s26, 1
    %p49 = por %p47, %p48
    %p51 = scmp.ne.s32.totalorder %s34, %s50
    %p52 = scmp.eq.s32.totalorder %s26, 0
    %p53 = por %p51, %p52
    %s55 = sadd.s32 %s54, 1
    %p58 = scmp.eq.s32.totalorder %s20, 1
    %p59 = scmp.ne.s32.totalorder %s54, %s56
    %p60 = scmp.eq.s32.totalorder %s20, 0
    %p61 = por %p59, %p60
    %p62 = scmp.ne.s32.totalorder %s54, %s56
    %p63 = scmp.eq.s32.totalorder %s25, 1
    %p64 = por %p62, %p63
    %p65 = scmp.ne.s32.totalorder %s56, %s57
    %p66 = scmp.eq.s32.totalorder %s25, 0
    %p67 = por %p65, %p66
    %p68 = scmp.ne.s32.totalorder %s56, %s57
    %p69 = scmp.eq.s32.totalorder %s26, 1
    %p70 = por %p68, %p69
    %p72 = scmp.ne.s32.totalorder %s57, %s71
    %p73 = scmp.eq.s32.totalorder %s26, 0
    %p74 = por %p72, %p73
    %s76 = sadd.s32 %s75, 1
    %p79 = scmp.eq.s32.totalorder %s20, 1
    %p80 = scmp.ne.s32.totalorder %s75, %s77
    %p81 = scmp.eq.s32.totalorder %s20, 0
    %p82 = por %p80, %p81
    %p83 = scmp.ne.s32.totalorder %s75, %s77
    %p84 = scmp.eq.s32.totalorder %s25, 1
    %p85 = por %p83, %p84
    %p86 = scmp.ne.s32.totalorder %s77, %s78
    %p87 = scmp.eq.s32.totalorder %s25, 0
    %p88 = por %p86, %p87
    %p89 = scmp.ne.s32.totalorder %s77, %s78
    %p90 = scmp.eq.s32.totalorder %s26, 1
    %p91 = por %p89, %p90
    %p93 = scmp.ne.s32.totalorder %s78, %s92
    %p94 = scmp.eq.s32.totalorder %s26, 0
    %p95 = por %p93, %p94
    %s97 = sadd.s32 %s96, 1
    %p100 = scmp.eq.s32.totalorder %s20, 1
    %p101 = scmp.ne.s32.totalorder %s96, %s98
    %p102 = scmp.eq.s32.totalorder %s20, 0
    %p103 = por %p101, %p102
    %p104 = scmp.ne.s32.totalorder %s96, %s98
    %p105 = scmp.eq.s32.totalorder %s25, 1
    %p106 = por %p104, %p105
    %p107 = scmp.ne.s32.totalorder %s98, %s99
    %p108 = scmp.eq.s32.totalorder %s25, 0
    %p109 = por %p107, %p108
    %p110 = scmp.ne.s32.totalorder %s98, %s99
    %p111 = scmp.eq.s32.totalorder %s26, 1
    %p112 = por %p110, %p111
    %p114 = scmp.ne.s32.totalorder %s99, %s113
    %p115 = scmp.eq.s32.totalorder %s26, 0
    %p116 = por %p114, %p115
    %s118 = sadd.s32 %s117, 1
    %p121 = scmp.eq.s32.totalorder %s20, 1
    %p122 = scmp.ne.s32.totalorder %s117, %s119
    %p123 = scmp.eq.s32.totalorder %s20, 0
    %p124 = por %p122, %p123
    %p125 = scmp.ne.s32.totalorder %s117, %s119
    %p126 = scmp.eq.s32.totalorder %s25, 1
    %p127 = por %p125, %p126
    %p128 = scmp.ne.s32.totalorder %s119, %s120
    %p129 = scmp.eq.s32.totalorder %s25, 0
    %p130 = por %p128, %p129
    %p131 = scmp.ne.s32.totalorder %s119, %s120
    %p132 = scmp.eq.s32.totalorder %s26, 1
    %p133 = por %p131, %p132
    %p135 = scmp.ne.s32.totalorder %s120, %s134
    %p136 = scmp.eq.s32.totalorder %s26, 0
    %p137 = por %p135, %p136
    %s139 = sadd.s32 %s138, 1
    %p142 = scmp.eq.s32.totalorder %s20, 1
    %p143 = scmp.ne.s32.totalorder %s138, %s140
    %p144 = scmp.eq.s32.totalorder %s20, 0
    %p145 = por %p143, %p144
    %p146 = scmp.ne.s32.totalorder %s138, %s140
    %p147 = scmp.eq.s32.totalorder %s25, 1
    %p148 = por %p146, %p147
    %p149 = scmp.ne.s32.totalorder %s140, %s141
    %p150 = scmp.eq.s32.totalorder %s25, 0
    %p151 = por %p149, %p150
    %p152 = scmp.ne.s32.totalorder %s140, %s141
    %p153 = scmp.eq.s32.totalorder %s26, 1
    %p154 = por %p152, %p153
    %p156 = scmp.ne.s32.totalorder %s141, %s155
    %p157 = scmp.eq.s32.totalorder %s26, 0
    %p158 = por %p156, %p157
    %s160 = sadd.s32 %s159, 1
    %p163 = scmp.eq.s32.totalorder %s20, 1
    %p164 = scmp.ne.s32.totalorder %s159, %s161
    %p165 = scmp.eq.s32.totalorder %s20, 0
    %p166 = por %p164, %p165
    %p167 = scmp.ne.s32.totalorder %s159, %s161
    %p168 = scmp.eq.s32.totalorder %s25, 1
    %p169 = por %p167, %p168
    %p170 = scmp.ne.s32.totalorder %s161, %s162
    %p171 = scmp.eq.s32.totalorder %s25, 0
    %p172 = por %p170, %p171
    %p173 = scmp.ne.s32.totalorder %s161, %s162
    %p174 = scmp.eq.s32.totalorder %s26, 1
    %p175 = por %p173, %p174
    %p177 = scmp.ne.s32.totalorder %s162, %s176
    %p178 = scmp.eq.s32.totalorder %s26, 0
    %p179 = por %p177, %p178
    %s181 = sadd.s32 %s180, 1
    %p184 = scmp.eq.s32.totalorder %s20, 1
    %p185 = scmp.ne.s32.totalorder %s180, %s182
    %p186 = scmp.eq.s32.totalorder %s20, 0
    %p187 = por %p185, %p186
    %p188 = scmp.ne.s32.totalorder %s180, %s182
    %p189 = scmp.eq.s32.totalorder %s25, 1
    %p190 = por %p188, %p189
    %p191 = scmp.ne.s32.totalorder %s182, %s183
    %p192 = scmp.eq.s32.totalorder %s25, 0
    %p193 = por %p191, %p192
    %p194 = scmp.ne.s32.totalorder %s182, %s183
    %p195 = scmp.eq.s32.totalorder %s26, 1
    %p196 = por %p194, %p195
    %p198 = scmp.ne.s32.totalorder %s183, %s197
    %p199 = scmp.eq.s32.totalorder %s26, 0
    %p200 = por %p198, %p199
    %s202 = sadd.s32 %s201, 1
    %p205 = scmp.eq.s32.totalorder %s20, 1
    %p206 = scmp.ne.s32.totalorder %s201, %s203
    %p207 = scmp.eq.s32.totalorder %s20, 0
    %p208 = por %p206, %p207
    %p209 = scmp.ne.s32.totalorder %s201, %s203
    %p210 = scmp.eq.s32.totalorder %s25, 1
    %p211 = por %p209, %p210
    %p212 = scmp.ne.s32.totalorder %s203, %s204
    %p213 = scmp.eq.s32.totalorder %s25, 0
    %p214 = por %p212, %p213
    %p215 = scmp.ne.s32.totalorder %s203, %s204
    %p216 = scmp.eq.s32.totalorder %s26, 1
    %p217 = por %p215, %p216
    %p219 = scmp.ne.s32.totalorder %s204, %s218
    %p220 = scmp.eq.s32.totalorder %s26, 0
    %p221 = por %p219, %p220
    %s223 = sadd.s32 %s222, 1
    %p226 = scmp.eq.s32.totalorder %s20, 1
    %p227 = scmp.ne.s32.totalorder %s222, %s224
    %p228 = scmp.eq.s32.totalorder %s20, 0
    %p229 = por %p227, %p228
    %p230 = scmp.ne.s32.totalorder %s222, %s224
    %p231 = scmp.eq.s32.totalorder %s25, 1
    %p232 = por %p230, %p231
    %p233 = scmp.ne.s32.totalorder %s224, %s225
    %p234 = scmp.eq.s32.totalorder %s25, 0
    %p235 = por %p233, %p234
    %p236 = scmp.ne.s32.totalorder %s224, %s225
    %p237 = scmp.eq.s32.totalorder %s26, 1
    %p238 = por %p236, %p237
    %p240 = scmp.ne.s32.totalorder %s225, %s239
    %p241 = scmp.eq.s32.totalorder %s26, 0
    %p242 = por %p240, %p241
    %s244 = sadd.s32 %s243, 1
    %p247 = scmp.eq.s32.totalorder %s20, 1
    %p248 = scmp.ne.s32.totalorder %s243, %s245
    %p249 = scmp.eq.s32.totalorder %s20, 0
    %p250 = por %p248, %p249
    %p251 = scmp.ne.s32.totalorder %s243, %s245
    %p252 = scmp.eq.s32.totalorder %s25, 1
    %p253 = por %p251, %p252
    %p254 = scmp.ne.s32.totalorder %s245, %s246
    %p255 = scmp.eq.s32.totalorder %s25, 0
    %p256 = por %p254, %p255
    %p257 = scmp.ne.s32.totalorder %s245, %s246
    %p258 = scmp.eq.s32.totalorder %s26, 1
    %p259 = por %p257, %p258
    %p261 = scmp.ne.s32.totalorder %s246, %s260
    %p262 = scmp.eq.s32.totalorder %s26, 0
    %p263 = por %p261, %p262
    %s265 = sadd.s32 %s264, 1
    %p268 = scmp.eq.s32.totalorder %s20, 1
    %p269 = scmp.ne.s32.totalorder %s264, %s266
    %p270 = scmp.eq.s32.totalorder %s20, 0
    %p271 = por %p269, %p270
    %p272 = scmp.ne.s32.totalorder %s264, %s266
    %p273 = scmp.eq.s32.totalorder %s25, 1
    %p274 = por %p272, %p273
    %p275 = scmp.ne.s32.totalorder %s266, %s267
    %p276 = scmp.eq.s32.totalorder %s25, 0
    %p277 = por %p275, %p276
    %p278 = scmp.ne.s32.totalorder %s266, %s267
    %p279 = scmp.eq.s32.totalorder %s26, 1
    %p280 = por %p278, %p279
    %p282 = scmp.ne.s32.totalorder %s267, %s281
    %p283 = scmp.eq.s32.totalorder %s26, 0
    %p284 = por %p282, %p283
    %s285 = ssub.s32 %s20, %s27
    %p286 = scmp.eq.s32.totalorder %s285, 0
    %s288 = sadd.s32 %s287, 1
    %s289 = scalar_select %p286, %s287, %s288
    %p292 = pneg %p286
    %p293 = scmp.eq.s32.totalorder %s20, 1
    %p294 = por %p292, %p293
    %p295 = scmp.ne.s32.totalorder %s287, %s290
    %p296 = scmp.eq.s32.totalorder %s20, 0
    %p297 = por %p295, %p296
    %p298 = scmp.ne.s32.totalorder %s287, %s290
    %p299 = scmp.eq.s32.totalorder %s25, 1
    %p300 = por %p298, %p299
    %p301 = scmp.ne.s32.totalorder %s290, %s291
    %p302 = scmp.eq.s32.totalorder %s25, 0
    %p303 = por %p301, %p302
    %p304 = scmp.ne.s32.totalorder %s290, %s291
    %p305 = scmp.eq.s32.totalorder %s26, 1
    %p306 = por %p304, %p305
    %p308 = scmp.ne.s32.totalorder %s291, %s307
    %p309 = scmp.eq.s32.totalorder %s26, 0
    %p310 = por %p308, %p309
    %p311 = scmp.le.s32.totalorder 1, %s20
    %p312 = scmp.lt.s32.totalorder %s20, 3
    %p313 = pnand %p311, %p312
    %p314 = pneg %p313
    // Predicated region
    $region9: #{forward.1} parent=5 // pred_check
      _
    $region10: #{forward.1} parent=5 // pred_check_branch
      %316 = sbr.rel (%p313) target = $region12
    $region11: #{forward.1} parent=5 // pred_region
      %s317 = ssub.s32 %s20, 1
      // Predicated region
      $region13: #{forward.1} parent=11 // pred_check
        %p318 = pneg %p67
      $region14: #{forward.1} parent=11 // pred_check_branch
        %320 = sbr.rel (%p318) target = $region16
      $region15: #{forward.1} parent=11 // pred_region
        _
      $region16: #{forward.1} parent=11 // pred_fallthru
        _
      // Predicated region
      $region17: #{forward.1} parent=11 // pred_check
        %p321 = pneg %p88
      $region18: #{forward.1} parent=11 // pred_check_branch
        %323 = sbr.rel (%p321) target = $region20
      $region19: #{forward.1} parent=11 // pred_region
        _
      $region20: #{forward.1} parent=11 // pred_fallthru
        _
      // Predicated region
      $region21: #{forward.1} parent=11 // pred_check
        %p324 = pneg %p109
      $region22: #{forward.1} parent=11 // pred_check_branch
        %326 = sbr.rel (%p324) target = $region24
      $region23: #{forward.1} parent=11 // pred_region
        _
      $region24: #{forward.1} parent=11 // pred_fallthru
        _
      // Predicated region
      $region25: #{forward.1} parent=11 // pred_check
        %p327 = pneg %p130
      $region26: #{forward.1} parent=11 // pred_check_branch
        %329 = sbr.rel (%p327) target = $region28
      $region27: #{forward.1} parent=11 // pred_region
        _
      $region28: #{forward.1} parent=11 // pred_fallthru
        _
      // Predicated region
      $region29: #{forward.1} parent=11 // pred_check
        %p330 = pneg %p151
      $region30: #{forward.1} parent=11 // pred_check_branch
        %332 = sbr.rel (%p330) target = $region32
      $region31: #{forward.1} parent=11 // pred_region
        _
      $region32: #{forward.1} parent=11 // pred_fallthru
        _
      // Predicated region
      $region33: #{forward.1} parent=11 // pred_check
        %p333 = pneg %p172
      $region34: #{forward.1} parent=11 // pred_check_branch
        %335 = sbr.rel (%p333) target = $region36
      $region35: #{forward.1} parent=11 // pred_region
        _
      $region36: #{forward.1} parent=11 // pred_fallthru
        _
      // Predicated region
      $region37: #{forward.1} parent=11 // pred_check
        %p336 = pneg %p193
      $region38: #{forward.1} parent=11 // pred_check_branch
        %338 = sbr.rel (%p336) target = $region40
      $region39: #{forward.1} parent=11 // pred_region
        _
      $region40: #{forward.1} parent=11 // pred_fallthru
        _
      // Predicated region
      $region41: #{forward.1} parent=11 // pred_check
        %p339 = pneg %p214
      $region42: #{forward.1} parent=11 // pred_check_branch
        %341 = sbr.rel (%p339) target = $region44
      $region43: #{forward.1} parent=11 // pred_region
        _
      $region44: #{forward.1} parent=11 // pred_fallthru
        _
      // Predicated region
      $region45: #{forward.1} parent=11 // pred_check
        %p342 = pneg %p235
      $region46: #{forward.1} parent=11 // pred_check_branch
        %344 = sbr.rel (%p342) target = $region48
      $region47: #{forward.1} parent=11 // pred_region
        _
      $region48: #{forward.1} parent=11 // pred_fallthru
        _
      // Predicated region
      $region49: #{forward.1} parent=11 // pred_check
        %p345 = pneg %p256
      $region50: #{forward.1} parent=11 // pred_check_branch
        %347 = sbr.rel (%p345) target = $region52
      $region51: #{forward.1} parent=11 // pred_region
        _
      $region52: #{forward.1} parent=11 // pred_fallthru
        _
      // Predicated region
      $region53: #{forward.1} parent=11 // pred_check
        %p348 = pneg %p277
      $region54: #{forward.1} parent=11 // pred_check_branch
        %350 = sbr.rel (%p348) target = $region56
      $region55: #{forward.1} parent=11 // pred_region
        _
      $region56: #{forward.1} parent=11 // pred_fallthru
        _
    $region12: #{forward.1} parent=5 // pred_fallthru
      _
    %p351 = scmp.lt.s32.totalorder %s20, 2
    // Predicated region
    $region57: #{forward.1} parent=5 // pred_check
      %p352 = pneg %p351
    $region58: #{forward.1} parent=5 // pred_check_branch
      %354 = sbr.rel (%p352) target = $region60
    $region59: #{forward.1} parent=5 // pred_region
      // Predicated region
      $region61: #{forward.1} parent=59 // pred_check
        %p355 = pneg %p40
      $region62: #{forward.1} parent=59 // pred_check_branch
        %357 = sbr.rel (%p355) target = $region64
      $region63: #{forward.1} parent=59 // pred_region
        %s358 = smul.u32 16, %s20
        %p359 = scmp.lt.s32.totalorder %s358, 31
        %s360 = scalar_select %p359, %s358, 31
        %s361 = smul.addr %s360, 4
        %s362 = scalar_lea.vmem %s0, %s361
        %s363 = smul.u32 16, %s20
      $region64: #{forward.1} parent=59 // pred_fallthru
        _
    $region60: #{forward.1} parent=5 // pred_fallthru
      _
    %p364 = scmp.le.s32.totalorder 1, %s20
    %p365 = scmp.lt.s32.totalorder %s20, 3
    %p366 = pnand %p364, %p365
    %p367 = pneg %p366
    // Predicated region
    $region65: #{forward.1} parent=5 // pred_check
      _
    $region66: #{forward.1} parent=5 // pred_check_branch
      %369 = sbr.rel (%p366) target = $region68
    $region67: #{forward.1} parent=5 // pred_region
      %s370 = ssub.s32 %s20, 1
      %s371 = smul.u32 16, %s25
      %p372 = scmp.lt.s32.totalorder %s371, 31
      %s373 = scalar_select %p372, %s371, 31
      %s374 = smul.addr %s373, 4
      %s375 = scalar_lea.vmem %s0, %s374
      %p376 = pneg %p46
      %p377 = pneg %p43
      %p378 = pneg %p67
      %p379 = pneg %p64
      %p380 = pneg %p88
      %p381 = pneg %p85
      %p382 = pneg %p109
      %p383 = pneg %p106
      %p384 = pneg %p130
      %p385 = pneg %p127
      %p386 = pneg %p151
      %p387 = pneg %p148
      %p388 = pneg %p172
      %p389 = pneg %p169
      %p390 = pneg %p193
      %p391 = pneg %p190
      %p392 = pneg %p214
      %p393 = pneg %p211
      %p394 = pneg %p235
      %p395 = pneg %p232
      %p396 = pneg %p256
      %p397 = pneg %p253
      %p398 = pneg %p277
      %p399 = pneg %p274
      %p400 = pneg %p303
      %p401 = pneg %p300
      %s402 = smul.u32 16, %s25
      %p403 = scmp.lt.s32.totalorder %s402, 31
      %s404 = scalar_select %p403, %s402, 31
      %s405 = scalar_lea.vmem %s12, %s404
      %s406 = smul.u32 16, %s25
      %p407 = scmp.lt.s32.totalorder %s406, 31
      %s408 = scalar_select %p407, %s406, 31
      %s409 = smul.addr %s408, 4
      %s410 = scalar_lea.vmem %s0, %s409
      %s411 = smul.u32 16, %s25
      %s412 = smul.u32 16, %s25
      %p413 = scmp.lt.s32.totalorder %s412, 31
      %s414 = scalar_select %p413, %s412, 31
      %s415 = scalar_lea.vmem %s12, %s414
      %s416 = smul.u32 16, %s25
      %v417 = vld [vmem:[%s410] sm:$0x77]
      %v418 = vld [vmem:[%s410 + $0x8] sm:$0x77]
      %v419 = vld [vmem:[%s410 + $0x10] sm:$0x77]
      %v420 = vld [vmem:[%s410 + $0x18] sm:$0x77]
      %v421 = vld [vmem:[%s410 + $0x20] sm:$0x77]
      %v422 = vld [vmem:[%s410 + $0x28] sm:$0x77]
      %v423 = vld [vmem:[%s410 + $0x30] sm:$0x77]
      %v424 = vld [vmem:[%s410 + $0x38] sm:$0x77]
      %v425 = vld [vmem:[%s1] sm:$0xff]
      %v426 = vld [vmem:[%s1 + $0x8] sm:$0xff]
      %v427 = vld [vmem:[%s1 + $0x10] sm:$0xff]
      %v428 = vld [vmem:[%s1 + $0x18] sm:$0xff]
      %v429 = vld [vmem:[%s2] sm:$0xff]
      %v430 = vld [vmem:[%s2 + $0x8] sm:$0xff]
      %v431 = vld [vmem:[%s2 + $0x10] sm:$0xff]
      %v432 = vld [vmem:[%s2 + $0x18] sm:$0xff]
      %434 = vset.pattern.permute.xlu0 0
      %435 = vperm.xlu0 %434, %v425
      %v436 = vpop.permute.xlu0 %435
      %439 = vset.pattern.permute.xlu0 0
      %440 = vperm.xlu0 %439, %v426
      %v441 = vpop.permute.xlu0 %440
      %444 = vset.pattern.permute.xlu0 0
      %445 = vperm.xlu0 %444, %v427
      %v446 = vpop.permute.xlu0 %445
      %449 = vset.pattern.permute.xlu0 0
      %450 = vperm.xlu0 %449, %v428
      %v451 = vpop.permute.xlu0 %450
      %v461 = vlaneseq
      %v462 = vshrl.u32 %v461, 7
      %v463 = vsub.s32 0, %v462
      %v464 = vrot.slane %v417, %v463
      %v465 = vlaneseq
      %v466 = vshrl.u32 %v465, 7
      %v467 = vsub.s32 4, %v466
      %v468 = vrot.slane %v417, %v467
      %v469 = vlaneseq
      %v470 = vshrl.u32 %v469, 7
      %v471 = vsub.s32 0, %v470
      %v472 = vrot.slane %v418, %v471
      %v473 = vlaneseq
      %v474 = vshrl.u32 %v473, 7
      %v475 = vsub.s32 4, %v474
      %v476 = vrot.slane %v418, %v475
      %v477 = vlaneseq
      %v478 = vshrl.u32 %v477, 7
      %v479 = vsub.s32 0, %v478
      %v480 = vrot.slane %v419, %v479
      %v481 = vlaneseq
      %v482 = vshrl.u32 %v481, 7
      %v483 = vsub.s32 4, %v482
      %v484 = vrot.slane %v419, %v483
      %v485 = vlaneseq
      %v486 = vshrl.u32 %v485, 7
      %v487 = vsub.s32 0, %v486
      %v488 = vrot.slane %v420, %v487
      %v489 = vlaneseq
      %v490 = vshrl.u32 %v489, 7
      %v491 = vsub.s32 4, %v490
      %v492 = vrot.slane %v420, %v491
      %v493 = vlaneseq
      %v494 = vshrl.u32 %v493, 7
      %v495 = vsub.s32 0, %v494
      %v496 = vrot.slane %v421, %v495
      %v497 = vlaneseq
      %v498 = vshrl.u32 %v497, 7
      %v499 = vsub.s32 4, %v498
      %v500 = vrot.slane %v421, %v499
      %v501 = vlaneseq
      %v502 = vshrl.u32 %v501, 7
      %v503 = vsub.s32 0, %v502
      %v504 = vrot.slane %v422, %v503
      %v505 = vlaneseq
      %v506 = vshrl.u32 %v505, 7
      %v507 = vsub.s32 4, %v506
      %v508 = vrot.slane %v422, %v507
      %v509 = vlaneseq
      %v510 = vshrl.u32 %v509, 7
      %v511 = vsub.s32 0, %v510
      %v512 = vrot.slane %v423, %v511
      %v513 = vlaneseq
      %v514 = vshrl.u32 %v513, 7
      %v515 = vsub.s32 4, %v514
      %v516 = vrot.slane %v423, %v515
      %v517 = vlaneseq
      %v518 = vshrl.u32 %v517, 7
      %v519 = vsub.s32 0, %v518
      %v520 = vrot.slane %v424, %v519
      %v521 = vlaneseq
      %v522 = vshrl.u32 %v521, 7
      %v523 = vsub.s32 4, %v522
      %v524 = vrot.slane %v424, %v523
      %v541 = vlaneseq
      %v542 = vshrl.u32 %v541, 7
      %v543 = vsub.s32 0, %v542
      %v544 = vrot.slane %v464, %v543
      %v545 = vlaneseq
      %v546 = vshrl.u32 %v545, 7
      %v547 = vsub.s32 0, %v546
      %v548 = vrot.slane %v468, %v547
      %v549 = vlaneseq
      %v550 = vshrl.u32 %v549, 7
      %v551 = vsub.s32 0, %v550
      %v552 = vrot.slane %v472, %v551
      %v553 = vlaneseq
      %v554 = vshrl.u32 %v553, 7
      %v555 = vsub.s32 0, %v554
      %v556 = vrot.slane %v476, %v555
      %v557 = vlaneseq
      %v558 = vshrl.u32 %v557, 7
      %v559 = vsub.s32 0, %v558
      %v560 = vrot.slane %v480, %v559
      %v561 = vlaneseq
      %v562 = vshrl.u32 %v561, 7
      %v563 = vsub.s32 0, %v562
      %v564 = vrot.slane %v484, %v563
      %v565 = vlaneseq
      %v566 = vshrl.u32 %v565, 7
      %v567 = vsub.s32 0, %v566
      %v568 = vrot.slane %v488, %v567
      %v569 = vlaneseq
      %v570 = vshrl.u32 %v569, 7
      %v571 = vsub.s32 0, %v570
      %v572 = vrot.slane %v492, %v571
      %v573 = vlaneseq
      %v574 = vshrl.u32 %v573, 7
      %v575 = vsub.s32 0, %v574
      %v576 = vrot.slane %v496, %v575
      %v577 = vlaneseq
      %v578 = vshrl.u32 %v577, 7
      %v579 = vsub.s32 0, %v578
      %v580 = vrot.slane %v500, %v579
      %v581 = vlaneseq
      %v582 = vshrl.u32 %v581, 7
      %v583 = vsub.s32 0, %v582
      %v584 = vrot.slane %v504, %v583
      %v585 = vlaneseq
      %v586 = vshrl.u32 %v585, 7
      %v587 = vsub.s32 0, %v586
      %v588 = vrot.slane %v508, %v587
      %v589 = vlaneseq
      %v590 = vshrl.u32 %v589, 7
      %v591 = vsub.s32 0, %v590
      %v592 = vrot.slane %v512, %v591
      %v593 = vlaneseq
      %v594 = vshrl.u32 %v593, 7
      %v595 = vsub.s32 0, %v594
      %v596 = vrot.slane %v516, %v595
      %v597 = vlaneseq
      %v598 = vshrl.u32 %v597, 7
      %v599 = vsub.s32 0, %v598
      %v600 = vrot.slane %v520, %v599
      %v601 = vlaneseq
      %v602 = vshrl.u32 %v601, 7
      %v603 = vsub.s32 0, %v602
      %v604 = vrot.slane %v524, %v603
      %v605 = vmul.f32 %v436, %v544
      %v606 = vmul.f32 %v436, %v548
      %v607 = vmul.f32 %v436, %v552
      %v608 = vmul.f32 %v436, %v556
      %v609 = vmul.f32 %v436, %v560
      %v610 = vmul.f32 %v436, %v564
      %v611 = vmul.f32 %v436, %v568
      %v612 = vmul.f32 %v436, %v572
      %v613 = vmul.f32 %v436, %v576
      %v614 = vmul.f32 %v436, %v580
      %v615 = vmul.f32 %v436, %v584
      %v616 = vmul.f32 %v436, %v588
      %v617 = vmul.f32 %v436, %v592
      %v618 = vmul.f32 %v436, %v596
      %v619 = vmul.f32 %v436, %v600
      %v620 = vmul.f32 %v436, %v604
      %v621 = vmul.f32 %v441, %v544
      %v622 = vmul.f32 %v441, %v548
      %v623 = vmul.f32 %v441, %v552
      %v624 = vmul.f32 %v441, %v556
      %v625 = vmul.f32 %v441, %v560
      %v626 = vmul.f32 %v441, %v564
      %v627 = vmul.f32 %v441, %v568
      %v628 = vmul.f32 %v441, %v572
      %v629 = vmul.f32 %v441, %v576
      %v630 = vmul.f32 %v441, %v580
      %v631 = vmul.f32 %v441, %v584
      %v632 = vmul.f32 %v441, %v588
      %v633 = vmul.f32 %v441, %v592
      %v634 = vmul.f32 %v441, %v596
      %v635 = vmul.f32 %v441, %v600
      %v636 = vmul.f32 %v441, %v604
      %v637 = vmul.f32 %v446, %v544
      %v638 = vmul.f32 %v446, %v548
      %v639 = vmul.f32 %v446, %v552
      %v640 = vmul.f32 %v446, %v556
      %v641 = vmul.f32 %v446, %v560
      %v642 = vmul.f32 %v446, %v564
      %v643 = vmul.f32 %v446, %v568
      %v644 = vmul.f32 %v446, %v572
      %v645 = vmul.f32 %v446, %v576
      %v646 = vmul.f32 %v446, %v580
      %v647 = vmul.f32 %v446, %v584
      %v648 = vmul.f32 %v446, %v588
      %v649 = vmul.f32 %v446, %v592
      %v650 = vmul.f32 %v446, %v596
      %v651 = vmul.f32 %v446, %v600
      %v652 = vmul.f32 %v446, %v604
      %v653 = vmul.f32 %v451, %v544
      %v654 = vmul.f32 %v451, %v548
      %v655 = vmul.f32 %v451, %v552
      %v656 = vmul.f32 %v451, %v556
      %v657 = vmul.f32 %v451, %v560
      %v658 = vmul.f32 %v451, %v564
      %v659 = vmul.f32 %v451, %v568
      %v660 = vmul.f32 %v451, %v572
      %v661 = vmul.f32 %v451, %v576
      %v662 = vmul.f32 %v451, %v580
      %v663 = vmul.f32 %v451, %v584
      %v664 = vmul.f32 %v451, %v588
      %v665 = vmul.f32 %v451, %v592
      %v666 = vmul.f32 %v451, %v596
      %v667 = vmul.f32 %v451, %v600
      %v668 = vmul.f32 %v451, %v604
      %670 = vset.pattern.permute.xlu0 0
      %671 = vperm.xlu0 %670, %v429
      %v672 = vpop.permute.xlu0 %671
      %675 = vset.pattern.permute.xlu0 0
      %676 = vperm.xlu0 %675, %v430
      %v677 = vpop.permute.xlu0 %676
      %680 = vset.pattern.permute.xlu0 0
      %681 = vperm.xlu0 %680, %v431
      %v682 = vpop.permute.xlu0 %681
      %685 = vset.pattern.permute.xlu0 0
      %686 = vperm.xlu0 %685, %v432
      %v687 = vpop.permute.xlu0 %686
      %v689 = vadd.f32 %v672, %v605
      %v690 = vadd.f32 %v672, %v606
      %v691 = vadd.f32 %v672, %v607
      %v692 = vadd.f32 %v672, %v608
      %v693 = vadd.f32 %v672, %v609
      %v694 = vadd.f32 %v672, %v610
      %v695 = vadd.f32 %v672, %v611
      %v696 = vadd.f32 %v672, %v612
      %v697 = vadd.f32 %v672, %v613
      %v698 = vadd.f32 %v672, %v614
      %v699 = vadd.f32 %v672, %v615
      %v700 = vadd.f32 %v672, %v616
      %v701 = vadd.f32 %v672, %v617
      %v702 = vadd.f32 %v672, %v618
      %v703 = vadd.f32 %v672, %v619
      %v704 = vadd.f32 %v672, %v620
      %v705 = vadd.f32 %v677, %v621
      %v706 = vadd.f32 %v677, %v622
      %v707 = vadd.f32 %v677, %v623
      %v708 = vadd.f32 %v677, %v624
      %v709 = vadd.f32 %v677, %v625
      %v710 = vadd.f32 %v677, %v626
      %v711 = vadd.f32 %v677, %v627
      %v712 = vadd.f32 %v677, %v628
      %v713 = vadd.f32 %v677, %v629
      %v714 = vadd.f32 %v677, %v630
      %v715 = vadd.f32 %v677, %v631
      %v716 = vadd.f32 %v677, %v632
      %v717 = vadd.f32 %v677, %v633
      %v718 = vadd.f32 %v677, %v634
      %v719 = vadd.f32 %v677, %v635
      %v720 = vadd.f32 %v677, %v636
      %v721 = vadd.f32 %v682, %v637
      %v722 = vadd.f32 %v682, %v638
      %v723 = vadd.f32 %v682, %v639
      %v724 = vadd.f32 %v682, %v640
      %v725 = vadd.f32 %v682, %v641
      %v726 = vadd.f32 %v682, %v642
      %v727 = vadd.f32 %v682, %v643
      %v728 = vadd.f32 %v682, %v644
      %v729 = vadd.f32 %v682, %v645
      %v730 = vadd.f32 %v682, %v646
      %v731 = vadd.f32 %v682, %v647
      %v732 = vadd.f32 %v682, %v648
      %v733 = vadd.f32 %v682, %v649
      %v734 = vadd.f32 %v682, %v650
      %v735 = vadd.f32 %v682, %v651
      %v736 = vadd.f32 %v682, %v652
      %v737 = vadd.f32 %v687, %v653
      %v738 = vadd.f32 %v687, %v654
      %v739 = vadd.f32 %v687, %v655
      %v740 = vadd.f32 %v687, %v656
      %v741 = vadd.f32 %v687, %v657
      %v742 = vadd.f32 %v687, %v658
      %v743 = vadd.f32 %v687, %v659
      %v744 = vadd.f32 %v687, %v660
      %v745 = vadd.f32 %v687, %v661
      %v746 = vadd.f32 %v687, %v662
      %v747 = vadd.f32 %v687, %v663
      %v748 = vadd.f32 %v687, %v664
      %v749 = vadd.f32 %v687, %v665
      %v750 = vadd.f32 %v687, %v666
      %v751 = vadd.f32 %v687, %v667
      %v752 = vadd.f32 %v687, %v668
      %753 = vset.pattern.permute.xlu0 1
      %754 = vperm.xlu0 %753, %v425
      %v755 = vpop.permute.xlu0 %754
      %757 = vset.pattern.permute.xlu0 1
      %758 = vperm.xlu0 %757, %v426
      %v759 = vpop.permute.xlu0 %758
      %761 = vset.pattern.permute.xlu0 1
      %762 = vperm.xlu0 %761, %v427
      %v763 = vpop.permute.xlu0 %762
      %765 = vset.pattern.permute.xlu0 1
      %766 = vperm.xlu0 %765, %v428
      %v767 = vpop.permute.xlu0 %766
      %v769 = vlaneseq
      %v770 = vshrl.u32 %v769, 7
      %v771 = vsub.s32 1, %v770
      %v772 = vrot.slane %v417, %v771
      %v773 = vlaneseq
      %v774 = vshrl.u32 %v773, 7
      %v775 = vsub.s32 5, %v774
      %v776 = vrot.slane %v417, %v775
      %v777 = vlaneseq
      %v778 = vshrl.u32 %v777, 7
      %v779 = vsub.s32 1, %v778
      %v780 = vrot.slane %v418, %v779
      %v781 = vlaneseq
      %v782 = vshrl.u32 %v781, 7
      %v783 = vsub.s32 5, %v782
      %v784 = vrot.slane %v418, %v783
      %v785 = vlaneseq
      %v786 = vshrl.u32 %v785, 7
      %v787 = vsub.s32 1, %v786
      %v788 = vrot.slane %v419, %v787
      %v789 = vlaneseq
      %v790 = vshrl.u32 %v789, 7
      %v791 = vsub.s32 5, %v790
      %v792 = vrot.slane %v419, %v791
      %v793 = vlaneseq
      %v794 = vshrl.u32 %v793, 7
      %v795 = vsub.s32 1, %v794
      %v796 = vrot.slane %v420, %v795
      %v797 = vlaneseq
      %v798 = vshrl.u32 %v797, 7
      %v799 = vsub.s32 5, %v798
      %v800 = vrot.slane %v420, %v799
      %v801 = vlaneseq
      %v802 = vshrl.u32 %v801, 7
      %v803 = vsub.s32 1, %v802
      %v804 = vrot.slane %v421, %v803
      %v805 = vlaneseq
      %v806 = vshrl.u32 %v805, 7
      %v807 = vsub.s32 5, %v806
      %v808 = vrot.slane %v421, %v807
      %v809 = vlaneseq
      %v810 = vshrl.u32 %v809, 7
      %v811 = vsub.s32 1, %v810
      %v812 = vrot.slane %v422, %v811
      %v813 = vlaneseq
      %v814 = vshrl.u32 %v813, 7
      %v815 = vsub.s32 5, %v814
      %v816 = vrot.slane %v422, %v815
      %v817 = vlaneseq
      %v818 = vshrl.u32 %v817, 7
      %v819 = vsub.s32 1, %v818
      %v820 = vrot.slane %v423, %v819
      %v821 = vlaneseq
      %v822 = vshrl.u32 %v821, 7
      %v823 = vsub.s32 5, %v822
      %v824 = vrot.slane %v423, %v823
      %v825 = vlaneseq
      %v826 = vshrl.u32 %v825, 7
      %v827 = vsub.s32 1, %v826
      %v828 = vrot.slane %v424, %v827
      %v829 = vlaneseq
      %v830 = vshrl.u32 %v829, 7
      %v831 = vsub.s32 5, %v830
      %v832 = vrot.slane %v424, %v831
      %v849 = vlaneseq
      %v850 = vshrl.u32 %v849, 7
      %v851 = vsub.s32 1, %v850
      %v852 = vrot.slane %v772, %v851
      %v853 = vlaneseq
      %v854 = vshrl.u32 %v853, 7
      %v855 = vsub.s32 1, %v854
      %v856 = vrot.slane %v776, %v855
      %v857 = vlaneseq
      %v858 = vshrl.u32 %v857, 7
      %v859 = vsub.s32 1, %v858
      %v860 = vrot.slane %v780, %v859
      %v861 = vlaneseq
      %v862 = vshrl.u32 %v861, 7
      %v863 = vsub.s32 1, %v862
      %v864 = vrot.slane %v784, %v863
      %v865 = vlaneseq
      %v866 = vshrl.u32 %v865, 7
      %v867 = vsub.s32 1, %v866
      %v868 = vrot.slane %v788, %v867
      %v869 = vlaneseq
      %v870 = vshrl.u32 %v869, 7
      %v871 = vsub.s32 1, %v870
      %v872 = vrot.slane %v792, %v871
      %v873 = vlaneseq
      %v874 = vshrl.u32 %v873, 7
      %v875 = vsub.s32 1, %v874
      %v876 = vrot.slane %v796, %v875
      %v877 = vlaneseq
      %v878 = vshrl.u32 %v877, 7
      %v879 = vsub.s32 1, %v878
      %v880 = vrot.slane %v800, %v879
      %v881 = vlaneseq
      %v882 = vshrl.u32 %v881, 7
      %v883 = vsub.s32 1, %v882
      %v884 = vrot.slane %v804, %v883
      %v885 = vlaneseq
      %v886 = vshrl.u32 %v885, 7
      %v887 = vsub.s32 1, %v886
      %v888 = vrot.slane %v808, %v887
      %v889 = vlaneseq
      %v890 = vshrl.u32 %v889, 7
      %v891 = vsub.s32 1, %v890
      %v892 = vrot.slane %v812, %v891
      %v893 = vlaneseq
      %v894 = vshrl.u32 %v893, 7
      %v895 = vsub.s32 1, %v894
      %v896 = vrot.slane %v816, %v895
      %v897 = vlaneseq
      %v898 = vshrl.u32 %v897, 7
      %v899 = vsub.s32 1, %v898
      %v900 = vrot.slane %v820, %v899
      %v901 = vlaneseq
      %v902 = vshrl.u32 %v901, 7
      %v903 = vsub.s32 1, %v902
      %v904 = vrot.slane %v824, %v903
      %v905 = vlaneseq
      %v906 = vshrl.u32 %v905, 7
      %v907 = vsub.s32 1, %v906
      %v908 = vrot.slane %v828, %v907
      %v909 = vlaneseq
      %v910 = vshrl.u32 %v909, 7
      %v911 = vsub.s32 1, %v910
      %v912 = vrot.slane %v832, %v911
      %v913 = vmul.f32 %v755, %v852
      %v914 = vmul.f32 %v755, %v856
      %v915 = vmul.f32 %v755, %v860
      %v916 = vmul.f32 %v755, %v864
      %v917 = vmul.f32 %v755, %v868
      %v918 = vmul.f32 %v755, %v872
      %v919 = vmul.f32 %v755, %v876
      %v920 = vmul.f32 %v755, %v880
      %v921 = vmul.f32 %v755, %v884
      %v922 = vmul.f32 %v755, %v888
      %v923 = vmul.f32 %v755, %v892
      %v924 = vmul.f32 %v755, %v896
      %v925 = vmul.f32 %v755, %v900
      %v926 = vmul.f32 %v755, %v904
      %v927 = vmul.f32 %v755, %v908
      %v928 = vmul.f32 %v755, %v912
      %v929 = vmul.f32 %v759, %v852
      %v930 = vmul.f32 %v759, %v856
      %v931 = vmul.f32 %v759, %v860
      %v932 = vmul.f32 %v759, %v864
      %v933 = vmul.f32 %v759, %v868
      %v934 = vmul.f32 %v759, %v872
      %v935 = vmul.f32 %v759, %v876
      %v936 = vmul.f32 %v759, %v880
      %v937 = vmul.f32 %v759, %v884
      %v938 = vmul.f32 %v759, %v888
      %v939 = vmul.f32 %v759, %v892
      %v940 = vmul.f32 %v759, %v896
      %v941 = vmul.f32 %v759, %v900
      %v942 = vmul.f32 %v759, %v904
      %v943 = vmul.f32 %v759, %v908
      %v944 = vmul.f32 %v759, %v912
      %v945 = vmul.f32 %v763, %v852
      %v946 = vmul.f32 %v763, %v856
      %v947 = vmul.f32 %v763, %v860
      %v948 = vmul.f32 %v763, %v864
      %v949 = vmul.f32 %v763, %v868
      %v950 = vmul.f32 %v763, %v872
      %v951 = vmul.f32 %v763, %v876
      %v952 = vmul.f32 %v763, %v880
      %v953 = vmul.f32 %v763, %v884
      %v954 = vmul.f32 %v763, %v888
      %v955 = vmul.f32 %v763, %v892
      %v956 = vmul.f32 %v763, %v896
      %v957 = vmul.f32 %v763, %v900
      %v958 = vmul.f32 %v763, %v904
      %v959 = vmul.f32 %v763, %v908
      %v960 = vmul.f32 %v763, %v912
      %v961 = vmul.f32 %v767, %v852
      %v962 = vmul.f32 %v767, %v856
      %v963 = vmul.f32 %v767, %v860
      %v964 = vmul.f32 %v767, %v864
      %v965 = vmul.f32 %v767, %v868
      %v966 = vmul.f32 %v767, %v872
      %v967 = vmul.f32 %v767, %v876
      %v968 = vmul.f32 %v767, %v880
      %v969 = vmul.f32 %v767, %v884
      %v970 = vmul.f32 %v767, %v888
      %v971 = vmul.f32 %v767, %v892
      %v972 = vmul.f32 %v767, %v896
      %v973 = vmul.f32 %v767, %v900
      %v974 = vmul.f32 %v767, %v904
      %v975 = vmul.f32 %v767, %v908
      %v976 = vmul.f32 %v767, %v912
      %v977 = vadd.f32 %v689, %v913
      %v978 = vadd.f32 %v690, %v914
      %v979 = vadd.f32 %v691, %v915
      %v980 = vadd.f32 %v692, %v916
      %v981 = vadd.f32 %v693, %v917
      %v982 = vadd.f32 %v694, %v918
      %v983 = vadd.f32 %v695, %v919
      %v984 = vadd.f32 %v696, %v920
      %v985 = vadd.f32 %v697, %v921
      %v986 = vadd.f32 %v698, %v922
      %v987 = vadd.f32 %v699, %v923
      %v988 = vadd.f32 %v700, %v924
      %v989 = vadd.f32 %v701, %v925
      %v990 = vadd.f32 %v702, %v926
      %v991 = vadd.f32 %v703, %v927
      %v992 = vadd.f32 %v704, %v928
      %v993 = vadd.f32 %v705, %v929
      %v994 = vadd.f32 %v706, %v930
      %v995 = vadd.f32 %v707, %v931
      %v996 = vadd.f32 %v708, %v932
      %v997 = vadd.f32 %v709, %v933
      %v998 = vadd.f32 %v710, %v934
      %v999 = vadd.f32 %v711, %v935
      %v1000 = vadd.f32 %v712, %v936
      %v1001 = vadd.f32 %v713, %v937
      %v1002 = vadd.f32 %v714, %v938
      %v1003 = vadd.f32 %v715, %v939
      %v1004 = vadd.f32 %v716, %v940
      %v1005 = vadd.f32 %v717, %v941
      %v1006 = vadd.f32 %v718, %v942
      %v1007 = vadd.f32 %v719, %v943
      %v1008 = vadd.f32 %v720, %v944
      %v1009 = vadd.f32 %v721, %v945
      %v1010 = vadd.f32 %v722, %v946
      %v1011 = vadd.f32 %v723, %v947
      %v1012 = vadd.f32 %v724, %v948
      %v1013 = vadd.f32 %v725, %v949
      %v1014 = vadd.f32 %v726, %v950
      %v1015 = vadd.f32 %v727, %v951
      %v1016 = vadd.f32 %v728, %v952
      %v1017 = vadd.f32 %v729, %v953
      %v1018 = vadd.f32 %v730, %v954
      %v1019 = vadd.f32 %v731, %v955
      %v1020 = vadd.f32 %v732, %v956
      %v1021 = vadd.f32 %v733, %v957
      %v1022 = vadd.f32 %v734, %v958
      %v1023 = vadd.f32 %v735, %v959
      %v1024 = vadd.f32 %v736, %v960
      %v1025 = vadd.f32 %v737, %v961
      %v1026 = vadd.f32 %v738, %v962
      %v1027 = vadd.f32 %v739, %v963
      %v1028 = vadd.f32 %v740, %v964
      %v1029 = vadd.f32 %v741, %v965
      %v1030 = vadd.f32 %v742, %v966
      %v1031 = vadd.f32 %v743, %v967
      %v1032 = vadd.f32 %v744, %v968
      %v1033 = vadd.f32 %v745, %v969
      %v1034 = vadd.f32 %v746, %v970
      %v1035 = vadd.f32 %v747, %v971
      %v1036 = vadd.f32 %v748, %v972
      %v1037 = vadd.f32 %v749, %v973
      %v1038 = vadd.f32 %v750, %v974
      %v1039 = vadd.f32 %v751, %v975
      %v1040 = vadd.f32 %v752, %v976
      %1041 = vset.pattern.permute.xlu0 2
      %1042 = vperm.xlu0 %1041, %v425
      %v1043 = vpop.permute.xlu0 %1042
      %1045 = vset.pattern.permute.xlu0 2
      %1046 = vperm.xlu0 %1045, %v426
      %v1047 = vpop.permute.xlu0 %1046
      %1049 = vset.pattern.permute.xlu0 2
      %1050 = vperm.xlu0 %1049, %v427
      %v1051 = vpop.permute.xlu0 %1050
      %1053 = vset.pattern.permute.xlu0 2
      %1054 = vperm.xlu0 %1053, %v428
      %v1055 = vpop.permute.xlu0 %1054
      %v1057 = vlaneseq
      %v1058 = vshrl.u32 %v1057, 7
      %v1059 = vsub.s32 2, %v1058
      %v1060 = vrot.slane %v417, %v1059
      %v1061 = vlaneseq
      %v1062 = vshrl.u32 %v1061, 7
      %v1063 = vsub.s32 6, %v1062
      %v1064 = vrot.slane %v417, %v1063
      %v1065 = vlaneseq
      %v1066 = vshrl.u32 %v1065, 7
      %v1067 = vsub.s32 2, %v1066
      %v1068 = vrot.slane %v418, %v1067
      %v1069 = vlaneseq
      %v1070 = vshrl.u32 %v1069, 7
      %v1071 = vsub.s32 6, %v1070
      %v1072 = vrot.slane %v418, %v1071
      %v1073 = vlaneseq
      %v1074 = vshrl.u32 %v1073, 7
      %v1075 = vsub.s32 2, %v1074
      %v1076 = vrot.slane %v419, %v1075
      %v1077 = vlaneseq
      %v1078 = vshrl.u32 %v1077, 7
      %v1079 = vsub.s32 6, %v1078
      %v1080 = vrot.slane %v419, %v1079
      %v1081 = vlaneseq
      %v1082 = vshrl.u32 %v1081, 7
      %v1083 = vsub.s32 2, %v1082
      %v1084 = vrot.slane %v420, %v1083
      %v1085 = vlaneseq
      %v1086 = vshrl.u32 %v1085, 7
      %v1087 = vsub.s32 6, %v1086
      %v1088 = vrot.slane %v420, %v1087
      %v1089 = vlaneseq
      %v1090 = vshrl.u32 %v1089, 7
      %v1091 = vsub.s32 2, %v1090
      %v1092 = vrot.slane %v421, %v1091
      %v1093 = vlaneseq
      %v1094 = vshrl.u32 %v1093, 7
      %v1095 = vsub.s32 6, %v1094
      %v1096 = vrot.slane %v421, %v1095
      %v1097 = vlaneseq
      %v1098 = vshrl.u32 %v1097, 7
      %v1099 = vsub.s32 2, %v1098
      %v1100 = vrot.slane %v422, %v1099
      %v1101 = vlaneseq
      %v1102 = vshrl.u32 %v1101, 7
      %v1103 = vsub.s32 6, %v1102
      %v1104 = vrot.slane %v422, %v1103
      %v1105 = vlaneseq
      %v1106 = vshrl.u32 %v1105, 7
      %v1107 = vsub.s32 2, %v1106
      %v1108 = vrot.slane %v423, %v1107
      %v1109 = vlaneseq
      %v1110 = vshrl.u32 %v1109, 7
      %v1111 = vsub.s32 6, %v1110
      %v1112 = vrot.slane %v423, %v1111
      %v1113 = vlaneseq
      %v1114 = vshrl.u32 %v1113, 7
      %v1115 = vsub.s32 2, %v1114
      %v1116 = vrot.slane %v424, %v1115
      %v1117 = vlaneseq
      %v1118 = vshrl.u32 %v1117, 7
      %v1119 = vsub.s32 6, %v1118
      %v1120 = vrot.slane %v424, %v1119
      %v1137 = vlaneseq
      %v1138 = vshrl.u32 %v1137, 7
      %v1139 = vsub.s32 2, %v1138
      %v1140 = vrot.slane %v1060, %v1139
      %v1141 = vlaneseq
      %v1142 = vshrl.u32 %v1141, 7
      %v1143 = vsub.s32 2, %v1142
      %v1144 = vrot.slane %v1064, %v1143
      %v1145 = vlaneseq
      %v1146 = vshrl.u32 %v1145, 7
      %v1147 = vsub.s32 2, %v1146
      %v1148 = vrot.slane %v1068, %v1147
      %v1149 = vlaneseq
      %v1150 = vshrl.u32 %v1149, 7
      %v1151 = vsub.s32 2, %v1150
      %v1152 = vrot.slane %v1072, %v1151
      %v1153 = vlaneseq
      %v1154 = vshrl.u32 %v1153, 7
      %v1155 = vsub.s32 2, %v1154
      %v1156 = vrot.slane %v1076, %v1155
      %v1157 = vlaneseq
      %v1158 = vshrl.u32 %v1157, 7
      %v1159 = vsub.s32 2, %v1158
      %v1160 = vrot.slane %v1080, %v1159
      %v1161 = vlaneseq
      %v1162 = vshrl.u32 %v1161, 7
      %v1163 = vsub.s32 2, %v1162
      %v1164 = vrot.slane %v1084, %v1163
      %v1165 = vlaneseq
      %v1166 = vshrl.u32 %v1165, 7
      %v1167 = vsub.s32 2, %v1166
      %v1168 = vrot.slane %v1088, %v1167
      %v1169 = vlaneseq
      %v1170 = vshrl.u32 %v1169, 7
      %v1171 = vsub.s32 2, %v1170
      %v1172 = vrot.slane %v1092, %v1171
      %v1173 = vlaneseq
      %v1174 = vshrl.u32 %v1173, 7
      %v1175 = vsub.s32 2, %v1174
      %v1176 = vrot.slane %v1096, %v1175
      %v1177 = vlaneseq
      %v1178 = vshrl.u32 %v1177, 7
      %v1179 = vsub.s32 2, %v1178
      %v1180 = vrot.slane %v1100, %v1179
      %v1181 = vlaneseq
      %v1182 = vshrl.u32 %v1181, 7
      %v1183 = vsub.s32 2, %v1182
      %v1184 = vrot.slane %v1104, %v1183
      %v1185 = vlaneseq
      %v1186 = vshrl.u32 %v1185, 7
      %v1187 = vsub.s32 2, %v1186
      %v1188 = vrot.slane %v1108, %v1187
      %v1189 = vlaneseq
      %v1190 = vshrl.u32 %v1189, 7
      %v1191 = vsub.s32 2, %v1190
      %v1192 = vrot.slane %v1112, %v1191
      %v1193 = vlaneseq
      %v1194 = vshrl.u32 %v1193, 7
      %v1195 = vsub.s32 2, %v1194
      %v1196 = vrot.slane %v1116, %v1195
      %v1197 = vlaneseq
      %v1198 = vshrl.u32 %v1197, 7
      %v1199 = vsub.s32 2, %v1198
      %v1200 = vrot.slane %v1120, %v1199
      %v1201 = vmul.f32 %v1043, %v1140
      %v1202 = vmul.f32 %v1043, %v1144
      %v1203 = vmul.f32 %v1043, %v1148
      %v1204 = vmul.f32 %v1043, %v1152
      %v1205 = vmul.f32 %v1043, %v1156
      %v1206 = vmul.f32 %v1043, %v1160
      %v1207 = vmul.f32 %v1043, %v1164
      %v1208 = vmul.f32 %v1043, %v1168
      %v1209 = vmul.f32 %v1043, %v1172
      %v1210 = vmul.f32 %v1043, %v1176
      %v1211 = vmul.f32 %v1043, %v1180
      %v1212 = vmul.f32 %v1043, %v1184
      %v1213 = vmul.f32 %v1043, %v1188
      %v1214 = vmul.f32 %v1043, %v1192
      %v1215 = vmul.f32 %v1043, %v1196
      %v1216 = vmul.f32 %v1043, %v1200
      %v1217 = vmul.f32 %v1047, %v1140
      %v1218 = vmul.f32 %v1047, %v1144
      %v1219 = vmul.f32 %v1047, %v1148
      %v1220 = vmul.f32 %v1047, %v1152
      %v1221 = vmul.f32 %v1047, %v1156
      %v1222 = vmul.f32 %v1047, %v1160
      %v1223 = vmul.f32 %v1047, %v1164
      %v1224 = vmul.f32 %v1047, %v1168
      %v1225 = vmul.f32 %v1047, %v1172
      %v1226 = vmul.f32 %v1047, %v1176
      %v1227 = vmul.f32 %v1047, %v1180
      %v1228 = vmul.f32 %v1047, %v1184
      %v1229 = vmul.f32 %v1047, %v1188
      %v1230 = vmul.f32 %v1047, %v1192
      %v1231 = vmul.f32 %v1047, %v1196
      %v1232 = vmul.f32 %v1047, %v1200
      %v1233 = vmul.f32 %v1051, %v1140
      %v1234 = vmul.f32 %v1051, %v1144
      %v1235 = vmul.f32 %v1051, %v1148
      %v1236 = vmul.f32 %v1051, %v1152
      %v1237 = vmul.f32 %v1051, %v1156
      %v1238 = vmul.f32 %v1051, %v1160
      %v1239 = vmul.f32 %v1051, %v1164
      %v1240 = vmul.f32 %v1051, %v1168
      %v1241 = vmul.f32 %v1051, %v1172
      %v1242 = vmul.f32 %v1051, %v1176
      %v1243 = vmul.f32 %v1051, %v1180
      %v1244 = vmul.f32 %v1051, %v1184
      %v1245 = vmul.f32 %v1051, %v1188
      %v1246 = vmul.f32 %v1051, %v1192
      %v1247 = vmul.f32 %v1051, %v1196
      %v1248 = vmul.f32 %v1051, %v1200
      %v1249 = vmul.f32 %v1055, %v1140
      %v1250 = vmul.f32 %v1055, %v1144
      %v1251 = vmul.f32 %v1055, %v1148
      %v1252 = vmul.f32 %v1055, %v1152
      %v1253 = vmul.f32 %v1055, %v1156
      %v1254 = vmul.f32 %v1055, %v1160
      %v1255 = vmul.f32 %v1055, %v1164
      %v1256 = vmul.f32 %v1055, %v1168
      %v1257 = vmul.f32 %v1055, %v1172
      %v1258 = vmul.f32 %v1055, %v1176
      %v1259 = vmul.f32 %v1055, %v1180
      %v1260 = vmul.f32 %v1055, %v1184
      %v1261 = vmul.f32 %v1055, %v1188
      %v1262 = vmul.f32 %v1055, %v1192
      %v1263 = vmul.f32 %v1055, %v1196
      %v1264 = vmul.f32 %v1055, %v1200
      %v1265 = vadd.f32 %v977, %v1201
      %v1266 = vadd.f32 %v978, %v1202
      %v1267 = vadd.f32 %v979, %v1203
      %v1268 = vadd.f32 %v980, %v1204
      %v1269 = vadd.f32 %v981, %v1205
      %v1270 = vadd.f32 %v982, %v1206
      %v1271 = vadd.f32 %v983, %v1207
      %v1272 = vadd.f32 %v984, %v1208
      %v1273 = vadd.f32 %v985, %v1209
      %v1274 = vadd.f32 %v986, %v1210
      %v1275 = vadd.f32 %v987, %v1211
      %v1276 = vadd.f32 %v988, %v1212
      %v1277 = vadd.f32 %v989, %v1213
      %v1278 = vadd.f32 %v990, %v1214
      %v1279 = vadd.f32 %v991, %v1215
      %v1280 = vadd.f32 %v992, %v1216
      %v1281 = vadd.f32 %v993, %v1217
      %v1282 = vadd.f32 %v994, %v1218
      %v1283 = vadd.f32 %v995, %v1219
      %v1284 = vadd.f32 %v996, %v1220
      %v1285 = vadd.f32 %v997, %v1221
      %v1286 = vadd.f32 %v998, %v1222
      %v1287 = vadd.f32 %v999, %v1223
      %v1288 = vadd.f32 %v1000, %v1224
      %v1289 = vadd.f32 %v1001, %v1225
      %v1290 = vadd.f32 %v1002, %v1226
      %v1291 = vadd.f32 %v1003, %v1227
      %v1292 = vadd.f32 %v1004, %v1228
      %v1293 = vadd.f32 %v1005, %v1229
      %v1294 = vadd.f32 %v1006, %v1230
      %v1295 = vadd.f32 %v1007, %v1231
      %v1296 = vadd.f32 %v1008, %v1232
      %v1297 = vadd.f32 %v1009, %v1233
      %v1298 = vadd.f32 %v1010, %v1234
      %v1299 = vadd.f32 %v1011, %v1235
      %v1300 = vadd.f32 %v1012, %v1236
      %v1301 = vadd.f32 %v1013, %v1237
      %v1302 = vadd.f32 %v1014, %v1238
      %v1303 = vadd.f32 %v1015, %v1239
      %v1304 = vadd.f32 %v1016, %v1240
      %v1305 = vadd.f32 %v1017, %v1241
      %v1306 = vadd.f32 %v1018, %v1242
      %v1307 = vadd.f32 %v1019, %v1243
      %v1308 = vadd.f32 %v1020, %v1244
      %v1309 = vadd.f32 %v1021, %v1245
      %v1310 = vadd.f32 %v1022, %v1246
      %v1311 = vadd.f32 %v1023, %v1247
      %v1312 = vadd.f32 %v1024, %v1248
      %v1313 = vadd.f32 %v1025, %v1249
      %v1314 = vadd.f32 %v1026, %v1250
      %v1315 = vadd.f32 %v1027, %v1251
      %v1316 = vadd.f32 %v1028, %v1252
      %v1317 = vadd.f32 %v1029, %v1253
      %v1318 = vadd.f32 %v1030, %v1254
      %v1319 = vadd.f32 %v1031, %v1255
      %v1320 = vadd.f32 %v1032, %v1256
      %v1321 = vadd.f32 %v1033, %v1257
      %v1322 = vadd.f32 %v1034, %v1258
      %v1323 = vadd.f32 %v1035, %v1259
      %v1324 = vadd.f32 %v1036, %v1260
      %v1325 = vadd.f32 %v1037, %v1261
      %v1326 = vadd.f32 %v1038, %v1262
      %v1327 = vadd.f32 %v1039, %v1263
      %v1328 = vadd.f32 %v1040, %v1264
      %v1329 = vmax.f32 %v1265, 0.0
      %v1330 = vmax.f32 %v1266, 0.0
      %v1331 = vmax.f32 %v1267, 0.0
      %v1332 = vmax.f32 %v1268, 0.0
      %v1333 = vmax.f32 %v1269, 0.0
      %v1334 = vmax.f32 %v1270, 0.0
      %v1335 = vmax.f32 %v1271, 0.0
      %v1336 = vmax.f32 %v1272, 0.0
      %v1337 = vmax.f32 %v1273, 0.0
      %v1338 = vmax.f32 %v1274, 0.0
      %v1339 = vmax.f32 %v1275, 0.0
      %v1340 = vmax.f32 %v1276, 0.0
      %v1341 = vmax.f32 %v1277, 0.0
      %v1342 = vmax.f32 %v1278, 0.0
      %v1343 = vmax.f32 %v1279, 0.0
      %v1344 = vmax.f32 %v1280, 0.0
      %v1345 = vmax.f32 %v1281, 0.0
      %v1346 = vmax.f32 %v1282, 0.0
      %v1347 = vmax.f32 %v1283, 0.0
      %v1348 = vmax.f32 %v1284, 0.0
      %v1349 = vmax.f32 %v1285, 0.0
      %v1350 = vmax.f32 %v1286, 0.0
      %v1351 = vmax.f32 %v1287, 0.0
      %v1352 = vmax.f32 %v1288, 0.0
      %v1353 = vmax.f32 %v1289, 0.0
      %v1354 = vmax.f32 %v1290, 0.0
      %v1355 = vmax.f32 %v1291, 0.0
      %v1356 = vmax.f32 %v1292, 0.0
      %v1357 = vmax.f32 %v1293, 0.0
      %v1358 = vmax.f32 %v1294, 0.0
      %v1359 = vmax.f32 %v1295, 0.0
      %v1360 = vmax.f32 %v1296, 0.0
      %v1361 = vmax.f32 %v1297, 0.0
      %v1362 = vmax.f32 %v1298, 0.0
      %v1363 = vmax.f32 %v1299, 0.0
      %v1364 = vmax.f32 %v1300, 0.0
      %v1365 = vmax.f32 %v1301, 0.0
      %v1366 = vmax.f32 %v1302, 0.0
      %v1367 = vmax.f32 %v1303, 0.0
      %v1368 = vmax.f32 %v1304, 0.0
      %v1369 = vmax.f32 %v1305, 0.0
      %v1370 = vmax.f32 %v1306, 0.0
      %v1371 = vmax.f32 %v1307, 0.0
      %v1372 = vmax.f32 %v1308, 0.0
      %v1373 = vmax.f32 %v1309, 0.0
      %v1374 = vmax.f32 %v1310, 0.0
      %v1375 = vmax.f32 %v1311, 0.0
      %v1376 = vmax.f32 %v1312, 0.0
      %v1377 = vmax.f32 %v1313, 0.0
      %v1378 = vmax.f32 %v1314, 0.0
      %v1379 = vmax.f32 %v1315, 0.0
      %v1380 = vmax.f32 %v1316, 0.0
      %v1381 = vmax.f32 %v1317, 0.0
      %v1382 = vmax.f32 %v1318, 0.0
      %v1383 = vmax.f32 %v1319, 0.0
      %v1384 = vmax.f32 %v1320, 0.0
      %v1385 = vmax.f32 %v1321, 0.0
      %v1386 = vmax.f32 %v1322, 0.0
      %v1387 = vmax.f32 %v1323, 0.0
      %v1388 = vmax.f32 %v1324, 0.0
      %v1389 = vmax.f32 %v1325, 0.0
      %v1390 = vmax.f32 %v1326, 0.0
      %v1391 = vmax.f32 %v1327, 0.0
      %v1392 = vmax.f32 %v1328, 0.0
      %v1393 = vld [vmem:[%s3] sm:$0xff]
      %v1394 = vld [vmem:[%s3 + $0x8] sm:$0xff]
      %v1395 = vld [vmem:[%s3 + $0x10] sm:$0xff]
      %v1396 = vld [vmem:[%s3 + $0x18] sm:$0xff]
      %v1397 = vld [vmem:[%s4] sm:$0xff]
      %v1398 = vld [vmem:[%s4 + $0x8] sm:$0xff]
      %v1399 = vld [vmem:[%s4 + $0x10] sm:$0xff]
      %v1400 = vld [vmem:[%s4 + $0x18] sm:$0xff]
      %1402 = vset.pattern.permute.xlu0 0
      %1403 = vperm.xlu0 %1402, %v1397
      %v1404 = vpop.permute.xlu0 %1403
      %1407 = vset.pattern.permute.xlu0 0
      %1408 = vperm.xlu0 %1407, %v1398
      %v1409 = vpop.permute.xlu0 %1408
      %1412 = vset.pattern.permute.xlu0 0
      %1413 = vperm.xlu0 %1412, %v1399
      %v1414 = vpop.permute.xlu0 %1413
      %1417 = vset.pattern.permute.xlu0 0
      %1418 = vperm.xlu0 %1417, %v1400
      %v1419 = vpop.permute.xlu0 %1418
      %vm1421 = vcmask 261120
      %v1423 = vsel %vm1421, %v1393, 0
      %v1426 = vsel %vm1421, %v1394, 0
      %v1429 = vsel %vm1421, %v1395, 0
      %v1432 = vsel %vm1421, %v1396, 0
      %1434 = vmatprep.subr.mxu0 %v1330
      %1435 = vmatpush1.msra.mxu0 %v1329
      %1436 = vmatprep.subr.mxu0 %v1346
      %1437 = vmatpush1.msra.mxu0 %v1345
      %1438 = vmatprep.subr.mxu0 %v1362
      %1439 = vmatpush1.msra.mxu0 %v1361
      %1440 = vmatprep.subr.mxu0 %v1378
      %1441 = vmatpush1.msra.mxu0 %v1377
      %1442 = vmatprep.subr.mxu0 0.0
      %1443 = vmatpush1.msra.mxu0 0.0
      %1444 = vmatprep.subr.mxu0 0.0
      %1445 = vmatpush1.msra.mxu0 0.0
      %1446 = vmatprep.subr.mxu0 0.0
      %1447 = vmatpush1.msra.mxu0 0.0
      %1448 = vmatprep.subr.mxu0 0.0
      %1449 = vmatpush1.msra.mxu0 0.0
      %1450 = vmatprep.subr.mxu0 0.0
      %1451 = vmatpush1.msra.mxu0 0.0
      %1452 = vmatprep.subr.mxu0 0.0
      %1453 = vmatpush1.msra.mxu0 0.0
      %1454 = vmatprep.subr.mxu0 0.0
      %1455 = vmatpush1.msra.mxu0 0.0
      %1456 = vmatprep.subr.mxu0 0.0
      %1457 = vmatpush1.msra.mxu0 0.0
      %1458 = vmatprep.subr.mxu0 0.0
      %1459 = vmatpush1.msra.mxu0 0.0
      %1460 = vmatprep.subr.mxu0 0.0
      %1461 = vmatpush1.msra.mxu0 0.0
      %1462 = vmatprep.subr.mxu0 0.0
      %1463 = vmatpush1.msra.mxu0 0.0
      %1464 = vmatprep.subr.mxu0 0.0
      %1465 = vmatpush1.msra.mxu0 0.0
      %1466 = vmatprep.subr.mxu0 0.0
      %1467 = vmatpush1.msra.mxu0 0.0
      %1468 = vmatprep.subr.mxu0 0.0
      %1469 = vmatpush1.msra.mxu0 0.0
      %1470 = vmatprep.subr.mxu0 0.0
      %1471 = vmatpush1.msra.mxu0 0.0
      %1472 = vmatprep.subr.mxu0 0.0
      %1473 = vmatpush1.msra.mxu0 0.0
      %1474 = vmatprep.subr.mxu0 0.0
      %1475 = vmatpush1.msra.mxu0 0.0
      %1476 = vmatprep.subr.mxu0 0.0
      %1477 = vmatpush1.msra.mxu0 0.0
      %1478 = vmatprep.subr.mxu0 0.0
      %1479 = vmatpush1.msra.mxu0 0.0
      %1480 = vmatprep.subr.mxu0 0.0
      %1481 = vmatpush1.msra.mxu0 0.0
      %1482 = vmatprep.subr.mxu0 0.0
      %1483 = vmatpush1.msra.mxu0 0.0
      %1484 = vmatprep.subr.mxu0 0.0
      %1485 = vmatpush1.msra.mxu0 0.0
      %1486 = vmatprep.subr.mxu0 0.0
      %1487 = vmatpush1.msra.mxu0 0.0
      %1488 = vmatprep.subr.mxu0 0.0
      %1489 = vmatpush1.msra.mxu0 0.0
      %1490 = vmatprep.subr.mxu0 0.0
      %1491 = vmatpush1.msra.mxu0 0.0
      %1492 = vmatprep.subr.mxu0 0.0
      %1493 = vmatpush1.msra.mxu0 0.0
      %1494 = vmatprep.subr.mxu0 0.0
      %1495 = vmatpush1.msra.mxu0 0.0
      %1496 = vmatprep.subr.mxu0 0.0
      %1497 = vmatpush1.msra.mxu0 0.0
      %1498 = vmatprep.mubr.f32.mxu0 0.0
      %1499 = vmatmul.mubr.f32.gmra.mrb[0].mxu0 %v1423
      %v1500 = vpop.f32.mrb[0].mxu0
      %v1501 = vadd.f32 %v1404, %v1500
      %v1502 = vpop.f32.mrb[0].mxu0
      %v1503 = vadd.f32 %v1404, %v1502
      %1504 = vmatprep.mubr.f32.mxu0 0.0
      %1505 = vmatmul.mubr.f32.gmra.mrb[0].mxu0 %v1426
      %v1506 = vpop.f32.mrb[0].mxu0
      %v1507 = vadd.f32 %v1409, %v1506
      %v1508 = vpop.f32.mrb[0].mxu0
      %v1509 = vadd.f32 %v1409, %v1508
      %1510 = vmatprep.mubr.f32.mxu0 0.0
      %1511 = vmatmul.mubr.f32.gmra.mrb[0].mxu0 %v1429
      %v1512 = vpop.f32.mrb[0].mxu0
      %v1513 = vadd.f32 %v1414, %v1512
      %v1514 = vpop.f32.mrb[0].mxu0
      %v1515 = vadd.f32 %v1414, %v1514
      %1516 = vmatprep.mubr.f32.mxu0 0.0
      %1517 = vmatmul.mubr.f32.gmra.mrb[0].mxu0 %v1432
      %v1518 = vpop.f32.mrb[0].mxu0
      %v1519 = vadd.f32 %v1419, %v1518
      %v1520 = vpop.f32.mrb[0].mxu0
      %v1521 = vadd.f32 %v1419, %v1520
      %1522 = vdwg.mxu0
      %1523 = vmatprep.subr.mxu0 %v1332
      %1524 = vmatpush1.msra.mxu0 %v1331
      %1525 = vmatprep.subr.mxu0 %v1348
      %1526 = vmatpush1.msra.mxu0 %v1347
      %1527 = vmatprep.subr.mxu0 %v1364
      %1528 = vmatpush1.msra.mxu0 %v1363
      %1529 = vmatprep.subr.mxu0 %v1380
      %1530 = vmatpush1.msra.mxu0 %v1379
      %1531 = vmatprep.subr.mxu0 0.0
      %1532 = vmatpush1.msra.mxu0 0.0
      %1533 = vmatprep.subr.mxu0 0.0
      %1534 = vmatpush1.msra.mxu0 0.0
      %1535 = vmatprep.subr.mxu0 0.0
      %1536 = vmatpush1.msra.mxu0 0.0
      %1537 = vmatprep.subr.mxu0 0.0
      %1538 = vmatpush1.msra.mxu0 0.0
      %1539 = vmatprep.subr.mxu0 0.0
      %1540 = vmatpush1.msra.mxu0 0.0
      %1541 = vmatprep.subr.mxu0 0.0
      %1542 = vmatpush1.msra.mxu0 0.0
      %1543 = vmatprep.subr.mxu0 0.0
      %1544 = vmatpush1.msra.mxu0 0.0
      %1545 = vmatprep.subr.mxu0 0.0
      %1546 = vmatpush1.msra.mxu0 0.0
      %1547 = vmatprep.subr.mxu0 0.0
      %1548 = vmatpush1.msra.mxu0 0.0
      %1549 = vmatprep.subr.mxu0 0.0
      %1550 = vmatpush1.msra.mxu0 0.0
      %1551 = vmatprep.subr.mxu0 0.0
      %1552 = vmatpush1.msra.mxu0 0.0
      %1553 = vmatprep.subr.mxu0 0.0
      %1554 = vmatpush1.msra.mxu0 0.0
      %1555 = vmatprep.subr.mxu0 0.0
      %1556 = vmatpush1.msra.mxu0 0.0
      %1557 = vmatprep.subr.mxu0 0.0
      %1558 = vmatpush1.msra.mxu0 0.0
      %1559 = vmatprep.subr.mxu0 0.0
      %1560 = vmatpush1.msra.mxu0 0.0
      %1561 = vmatprep.subr.mxu0 0.0
      %1562 = vmatpush1.msra.mxu0 0.0
      %1563 = vmatprep.subr.mxu0 0.0
      %1564 = vmatpush1.msra.mxu0 0.0
      %1565 = vmatprep.subr.mxu0 0.0
      %1566 = vmatpush1.msra.mxu0 0.0
      %1567 = vmatprep.subr.mxu0 0.0
      %1568 = vmatpush1.msra.mxu0 0.0
      %1569 = vmatprep.subr.mxu0 0.0
      %1570 = vmatpush1.msra.mxu0 0.0
      %1571 = vmatprep.subr.mxu0 0.0
      %1572 = vmatpush1.msra.mxu0 0.0
      %1573 = vmatprep.subr.mxu0 0.0
      %1574 = vmatpush1.msra.mxu0 0.0
      %1575 = vmatprep.subr.mxu0 0.0
      %1576 = vmatpush1.msra.mxu0 0.0
      %1577 = vmatprep.subr.mxu0 0.0
      %1578 = vmatpush1.msra.mxu0 0.0
      %1579 = vmatprep.subr.mxu0 0.0
      %1580 = vmatpush1.msra.mxu0 0.0
      %1581 = vmatprep.subr.mxu0 0.0
      %1582 = vmatpush1.msra.mxu0 0.0
      %1583 = vmatprep.subr.mxu0 0.0
      %1584 = vmatpush1.msra.mxu0 0.0
      %1585 = vmatprep.subr.mxu0 0.0
      %1586 = vmatpush1.msra.mxu0 0.0
      %1587 = vmatprep.mubr.f32.mxu0 0.0
      %1588 = vmatmul.mubr.f32.gmra.mrb[0].mxu0 %v1423
      %v1589 = vpop.f32.mrb[0].mxu0
      %v1590 = vadd.f32 %v1404, %v1589
      %v1591 = vpop.f32.mrb[0].mxu0
      %v1592 = vadd.f32 %v1404, %v1591
      %1593 = vmatprep.mubr.f32.mxu0 0.0
      %1594 = vmatmul.mubr.f32.gmra.mrb[0].mxu0 %v1426
      %v1595 = vpop.f32.mrb[0].mxu0
      %v1596 = vadd.f32 %v1409, %v1595
      %v1597 = vpop.f32.mrb[0].mxu0
      %v1598 = vadd.f32 %v1409, %v1597
      %1599 = vmatprep.mubr.f32.mxu0 0.0
      %1600 = vmatmul.mubr.f32.gmra.mrb[0].mxu0 %v1429
      %v1601 = vpop.f32.mrb[0].mxu0
      %v1602 = vadd.f32 %v1414, %v1601
      %v1603 = vpop.f32.mrb[0].mxu0
      %v1604 = vadd.f32 %v1414, %v1603
      %1605 = vmatprep.mubr.f32.mxu0 0.0
      %1606 = vmatmul.mubr.f32.gmra.mrb[0].mxu0 %v1432
      %v1607 = vpop.f32.mrb[0].mxu0
      %v1608 = vadd.f32 %v1419, %v1607
      %v1609 = vpop.f32.mrb[0].mxu0
      %v1610 = vadd.f32 %v1419, %v1609
      %1611 = vdwg.mxu0
      %1612 = vmatprep.subr.mxu0 %v1334
      %1613 = vmatpush1.msra.mxu0 %v1333
      %1614 = vmatprep.subr.mxu0 %v1350
      %1615 = vmatpush1.msra.mxu0 %v1349
      %1616 = vmatprep.subr.mxu0 %v1366
      %1617 = vmatpush1.msra.mxu0 %v1365
      %1618 = vmatprep.subr.mxu0 %v1382
      %1619 = vmatpush1.msra.mxu0 %v1381
      %1620 = vmatprep.subr.mxu0 0.0
      %1621 = vmatpush1.msra.mxu0 0.0
      %1622 = vmatprep.subr.mxu0 0.0
      %1623 = vmatpush1.msra.mxu0 0.0
      %1624 = vmatprep.subr.mxu0 0.0
      %1625 = vmatpush1.msra.mxu0 0.0
      %1626 = vmatprep.subr.mxu0 0.0
      %1627 = vmatpush1.msra.mxu0 0.0
      %1628 = vmatprep.subr.mxu0 0.0
      %1629 = vmatpush1.msra.mxu0 0.0
      %1630 = vmatprep.subr.mxu0 0.0
      %1631 = vmatpush1.msra.mxu0 0.0
      %1632 = vmatprep.subr.mxu0 0.0
      %1633 = vmatpush1.msra.mxu0 0.0
      %1634 = vmatprep.subr.mxu0 0.0
      %1635 = vmatpush1.msra.mxu0 0.0
      %1636 = vmatprep.subr.mxu0 0.0
      %1637 = vmatpush1.msra.mxu0 0.0
      %1638 = vmatprep.subr.mxu0 0.0
      %1639 = vmatpush1.msra.mxu0 0.0
      %1640 = vmatprep.subr.mxu0 0.0
      %1641 = vmatpush1.msra.mxu0 0.0
      %1642 = vmatprep.subr.mxu0 0.0
      %1643 = vmatpush1.msra.mxu0 0.0
      %1644 = vmatprep.subr.mxu0 0.0
      %1645 = vmatpush1.msra.mxu0 0.0
      %1646 = vmatprep.subr.mxu0 0.0
      %1647 = vmatpush1.msra.mxu0 0.0
      %1648 = vmatprep.subr.mxu0 0.0
      %1649 = vmatpush1.msra.mxu0 0.0
      %1650 = vmatprep.subr.mxu0 0.0
      %1651 = vmatpush1.msra.mxu0 0.0
      %1652 = vmatprep.subr.mxu0 0.0
      %1653 = vmatpush1.msra.mxu0 0.0
      %1654 = vmatprep.subr.mxu0 0.0
      %1655 = vmatpush1.msra.mxu0 0.0
      %1656 = vmatprep.subr.mxu0 0.0
      %1657 = vmatpush1.msra.mxu0 0.0
      %1658 = vmatprep.subr.mxu0 0.0
      %1659 = vmatpush1.msra.mxu0 0.0
      %1660 = vmatprep.subr.mxu0 0.0
      %1661 = vmatpush1.msra.mxu0 0.0
      %1662 = vmatprep.subr.mxu0 0.0
      %1663 = vmatpush1.msra.mxu0 0.0
      %1664 = vmatprep.subr.mxu0 0.0
      %1665 = vmatpush1.msra.mxu0 0.0
      %1666 = vmatprep.subr.mxu0 0.0
      %1667 = vmatpush1.msra.mxu0 0.0
      %1668 = vmatprep.subr.mxu0 0.0
      %1669 = vmatpush1.msra.mxu0 0.0
      %1670 = vmatprep.subr.mxu0 0.0
      %1671 = vmatpush1.msra.mxu0 0.0
      %1672 = vmatprep.subr.mxu0 0.0
      %1673 = vmatpush1.msra.mxu0 0.0
      %1674 = vmatprep.subr.mxu0 0.0
      %1675 = vmatpush1.msra.mxu0 0.0
      %1676 = vmatprep.mubr.f32.mxu0 0.0
      %1677 = vmatmul.mubr.f32.gmra.mrb[0].mxu0 %v1423
      %v1678 = vpop.f32.mrb[0].mxu0
      %v1679 = vadd.f32 %v1404, %v1678
      %v1680 = vpop.f32.mrb[0].mxu0
      %v1681 = vadd.f32 %v1404, %v1680
      %1682 = vmatprep.mubr.f32.mxu0 0.0
      %1683 = vmatmul.mubr.f32.gmra.mrb[0].mxu0 %v1426
      %v1684 = vpop.f32.mrb[0].mxu0
      %v1685 = vadd.f32 %v1409, %v1684
      %v1686 = vpop.f32.mrb[0].mxu0
      %v1687 = vadd.f32 %v1409, %v1686
      %1688 = vmatprep.mubr.f32.mxu0 0.0
      %1689 = vmatmul.mubr.f32.gmra.mrb[0].mxu0 %v1429
      %v1690 = vpop.f32.mrb[0].mxu0
      %v1691 = vadd.f32 %v1414, %v1690
      %v1692 = vpop.f32.mrb[0].mxu0
      %v1693 = vadd.f32 %v1414, %v1692
      %1694 = vmatprep.mubr.f32.mxu0 0.0
      %1695 = vmatmul.mubr.f32.gmra.mrb[0].mxu0 %v1432
      %v1696 = vpop.f32.mrb[0].mxu0
      %v1697 = vadd.f32 %v1419, %v1696
      %v1698 = vpop.f32.mrb[0].mxu0
      %v1699 = vadd.f32 %v1419, %v1698
      %1700 = vdwg.mxu0
      %1701 = vmatprep.subr.mxu0 %v1336
      %1702 = vmatpush1.msra.mxu0 %v1335
      %1703 = vmatprep.subr.mxu0 %v1352
      %1704 = vmatpush1.msra.mxu0 %v1351
      %1705 = vmatprep.subr.mxu0 %v1368
      %1706 = vmatpush1.msra.mxu0 %v1367
      %1707 = vmatprep.subr.mxu0 %v1384
      %1708 = vmatpush1.msra.mxu0 %v1383
      %1709 = vmatprep.subr.mxu0 0.0
      %1710 = vmatpush1.msra.mxu0 0.0
      %1711 = vmatprep.subr.mxu0 0.0
      %1712 = vmatpush1.msra.mxu0 0.0
      %1713 = vmatprep.subr.mxu0 0.0
      %1714 = vmatpush1.msra.mxu0 0.0
      %1715 = vmatprep.subr.mxu0 0.0
      %1716 = vmatpush1.msra.mxu0 0.0
      %1717 = vmatprep.subr.mxu0 0.0
      %1718 = vmatpush1.msra.mxu0 0.0
      %1719 = vmatprep.subr.mxu0 0.0
      %1720 = vmatpush1.msra.mxu0 0.0
      %1721 = vmatprep.subr.mxu0 0.0
      %1722 = vmatpush1.msra.mxu0 0.0
      %1723 = vmatprep.subr.mxu0 0.0
      %1724 = vmatpush1.msra.mxu0 0.0
      %1725 = vmatprep.subr.mxu0 0.0
      %1726 = vmatpush1.msra.mxu0 0.0
      %1727 = vmatprep.subr.mxu0 0.0
      %1728 = vmatpush1.msra.mxu0 0.0
      %1729 = vmatprep.subr.mxu0 0.0
      %1730 = vmatpush1.msra.mxu0 0.0
      %1731 = vmatprep.subr.mxu0 0.0
      %1732 = vmatpush1.msra.mxu0 0.0
      %1733 = vmatprep.subr.mxu0 0.0
      %1734 = vmatpush1.msra.mxu0 0.0
      %1735 = vmatprep.subr.mxu0 0.0
      %1736 = vmatpush1.msra.mxu0 0.0
      %1737 = vmatprep.subr.mxu0 0.0
      %1738 = vmatpush1.msra.mxu0 0.0
      %1739 = vmatprep.subr.mxu0 0.0
      %1740 = vmatpush1.msra.mxu0 0.0
      %1741 = vmatprep.subr.mxu0 0.0
      %1742 = vmatpush1.msra.mxu0 0.0
      %1743 = vmatprep.subr.mxu0 0.0
      %1744 = vmatpush1.msra.mxu0 0.0
      %1745 = vmatprep.subr.mxu0 0.0
      %1746 = vmatpush1.msra.mxu0 0.0
      %1747 = vmatprep.subr.mxu0 0.0
      %1748 = vmatpush1.msra.mxu0 0.0
      %1749 = vmatprep.subr.mxu0 0.0
      %1750 = vmatpush1.msra.mxu0 0.0
      %1751 = vmatprep.subr.mxu0 0.0
      %1752 = vmatpush1.msra.mxu0 0.0
      %1753 = vmatprep.subr.mxu0 0.0
      %1754 = vmatpush1.msra.mxu0 0.0
      %1755 = vmatprep.subr.mxu0 0.0
      %1756 = vmatpush1.msra.mxu0 0.0
      %1757 = vmatprep.subr.mxu0 0.0
      %1758 = vmatpush1.msra.mxu0 0.0
      %1759 = vmatprep.subr.mxu0 0.0
      %1760 = vmatpush1.msra.mxu0 0.0
      %1761 = vmatprep.subr.mxu0 0.0
      %1762 = vmatpush1.msra.mxu0 0.0
      %1763 = vmatprep.subr.mxu0 0.0
      %1764 = vmatpush1.msra.mxu0 0.0
      %1765 = vmatprep.mubr.f32.mxu0 0.0
      %1766 = vmatmul.mubr.f32.gmra.mrb[0].mxu0 %v1423
      %v1767 = vpop.f32.mrb[0].mxu0
      %v1768 = vadd.f32 %v1404, %v1767
      %v1769 = vpop.f32.mrb[0].mxu0
      %v1770 = vadd.f32 %v1404, %v1769
      %1771 = vmatprep.mubr.f32.mxu0 0.0
      %1772 = vmatmul.mubr.f32.gmra.mrb[0].mxu0 %v1426
      %v1773 = vpop.f32.mrb[0].mxu0
      %v1774 = vadd.f32 %v1409, %v1773
      %v1775 = vpop.f32.mrb[0].mxu0
      %v1776 = vadd.f32 %v1409, %v1775
      %1777 = vmatprep.mubr.f32.mxu0 0.0
      %1778 = vmatmul.mubr.f32.gmra.mrb[0].mxu0 %v1429
      %v1779 = vpop.f32.mrb[0].mxu0
      %v1780 = vadd.f32 %v1414, %v1779
      %v1781 = vpop.f32.mrb[0].mxu0
      %v1782 = vadd.f32 %v1414, %v1781
      %1783 = vmatprep.mubr.f32.mxu0 0.0
      %1784 = vmatmul.mubr.f32.gmra.mrb[0].mxu0 %v1432
      %v1785 = vpop.f32.mrb[0].mxu0
      %v1786 = vadd.f32 %v1419, %v1785
      %v1787 = vpop.f32.mrb[0].mxu0
      %v1788 = vadd.f32 %v1419, %v1787
      %1789 = vdwg.mxu0
      %1790 = vmatprep.subr.mxu0 %v1338
      %1791 = vmatpush1.msra.mxu0 %v1337
      %1792 = vmatprep.subr.mxu0 %v1354
      %1793 = vmatpush1.msra.mxu0 %v1353
      %1794 = vmatprep.subr.mxu0 %v1370
      %1795 = vmatpush1.msra.mxu0 %v1369
      %1796 = vmatprep.subr.mxu0 %v1386
      %1797 = vmatpush1.msra.mxu0 %v1385
      %1798 = vmatprep.subr.mxu0 0.0
      %1799 = vmatpush1.msra.mxu0 0.0
      %1800 = vmatprep.subr.mxu0 0.0
      %1801 = vmatpush1.msra.mxu0 0.0
      %1802 = vmatprep.subr.mxu0 0.0
      %1803 = vmatpush1.msra.mxu0 0.0
      %1804 = vmatprep.subr.mxu0 0.0
      %1805 = vmatpush1.msra.mxu0 0.0
      %1806 = vmatprep.subr.mxu0 0.0
      %1807 = vmatpush1.msra.mxu0 0.0
      %1808 = vmatprep.subr.mxu0 0.0
      %1809 = vmatpush1.msra.mxu0 0.0
      %1810 = vmatprep.subr.mxu0 0.0
      %1811 = vmatpush1.msra.mxu0 0.0
      %1812 = vmatprep.subr.mxu0 0.0
      %1813 = vmatpush1.msra.mxu0 0.0
      %1814 = vmatprep.subr.mxu0 0.0
      %1815 = vmatpush1.msra.mxu0 0.0
      %1816 = vmatprep.subr.mxu0 0.0
      %1817 = vmatpush1.msra.mxu0 0.0
      %1818 = vmatprep.subr.mxu0 0.0
      %1819 = vmatpush1.msra.mxu0 0.0
      %1820 = vmatprep.subr.mxu0 0.0
      %1821 = vmatpush1.msra.mxu0 0.0
      %1822 = vmatprep.subr.mxu0 0.0
      %1823 = vmatpush1.msra.mxu0 0.0
      %1824 = vmatprep.subr.mxu0 0.0
      %1825 = vmatpush1.msra.mxu0 0.0
      %1826 = vmatprep.subr.mxu0 0.0
      %1827 = vmatpush1.msra.mxu0 0.0
      %1828 = vmatprep.subr.mxu0 0.0
      %1829 = vmatpush1.msra.mxu0 0.0
      %1830 = vmatprep.subr.mxu0 0.0
      %1831 = vmatpush1.msra.mxu0 0.0
      %1832 = vmatprep.subr.mxu0 0.0
      %1833 = vmatpush1.msra.mxu0 0.0
      %1834 = vmatprep.subr.mxu0 0.0
      %1835 = vmatpush1.msra.mxu0 0.0
      %1836 = vmatprep.subr.mxu0 0.0
      %1837 = vmatpush1.msra.mxu0 0.0
      %1838 = vmatprep.subr.mxu0 0.0
      %1839 = vmatpush1.msra.mxu0 0.0
      %1840 = vmatprep.subr.mxu0 0.0
      %1841 = vmatpush1.msra.mxu0 0.0
      %1842 = vmatprep.subr.mxu0 0.0
      %1843 = vmatpush1.msra.mxu0 0.0
      %1844 = vmatprep.subr.mxu0 0.0
      %1845 = vmatpush1.msra.mxu0 0.0
      %1846 = vmatprep.subr.mxu0 0.0
      %1847 = vmatpush1.msra.mxu0 0.0
      %1848 = vmatprep.subr.mxu0 0.0
      %1849 = vmatpush1.msra.mxu0 0.0
      %1850 = vmatprep.subr.mxu0 0.0
      %1851 = vmatpush1.msra.mxu0 0.0
      %1852 = vmatprep.subr.mxu0 0.0
      %1853 = vmatpush1.msra.mxu0 0.0
      %1854 = vmatprep.mubr.f32.mxu0 0.0
      %1855 = vmatmul.mubr.f32.gmra.mrb[0].mxu0 %v1423
      %v1856 = vpop.f32.mrb[0].mxu0
      %v1857 = vadd.f32 %v1404, %v1856
      %v1858 = vpop.f32.mrb[0].mxu0
      %v1859 = vadd.f32 %v1404, %v1858
      %1860 = vmatprep.mubr.f32.mxu0 0.0
      %1861 = vmatmul.mubr.f32.gmra.mrb[0].mxu0 %v1426
      %v1862 = vpop.f32.mrb[0].mxu0
      %v1863 = vadd.f32 %v1409, %v1862
      %v1864 = vpop.f32.mrb[0].mxu0
      %v1865 = vadd.f32 %v1409, %v1864
      %1866 = vmatprep.mubr.f32.mxu0 0.0
      %1867 = vmatmul.mubr.f32.gmra.mrb[0].mxu0 %v1429
      %v1868 = vpop.f32.mrb[0].mxu0
      %v1869 = vadd.f32 %v1414, %v1868
      %v1870 = vpop.f32.mrb[0].mxu0
      %v1871 = vadd.f32 %v1414, %v1870
      %1872 = vmatprep.mubr.f32.mxu0 0.0
      %1873 = vmatmul.mubr.f32.gmra.mrb[0].mxu0 %v1432
      %v1874 = vpop.f32.mrb[0].mxu0
      %v1875 = vadd.f32 %v1419, %v1874
      %v1876 = vpop.f32.mrb[0].mxu0
      %v1877 = vadd.f32 %v1419, %v1876
      %1878 = vdwg.mxu0
      %1879 = vmatprep.subr.mxu0 %v1340
      %1880 = vmatpush1.msra.mxu0 %v1339
      %1881 = vmatprep.subr.mxu0 %v1356
      %1882 = vmatpush1.msra.mxu0 %v1355
      %1883 = vmatprep.subr.mxu0 %v1372
      %1884 = vmatpush1.msra.mxu0 %v1371
      %1885 = vmatprep.subr.mxu0 %v1388
      %1886 = vmatpush1.msra.mxu0 %v1387
      %1887 = vmatprep.subr.mxu0 0.0
      %1888 = vmatpush1.msra.mxu0 0.0
      %1889 = vmatprep.subr.mxu0 0.0
      %1890 = vmatpush1.msra.mxu0 0.0
      %1891 = vmatprep.subr.mxu0 0.0
      %1892 = vmatpush1.msra.mxu0 0.0
      %1893 = vmatprep.subr.mxu0 0.0
      %1894 = vmatpush1.msra.mxu0 0.0
      %1895 = vmatprep.subr.mxu0 0.0
      %1896 = vmatpush1.msra.mxu0 0.0
      %1897 = vmatprep.subr.mxu0 0.0
      %1898 = vmatpush1.msra.mxu0 0.0
      %1899 = vmatprep.subr.mxu0 0.0
      %1900 = vmatpush1.msra.mxu0 0.0
      %1901 = vmatprep.subr.mxu0 0.0
      %1902 = vmatpush1.msra.mxu0 0.0
      %1903 = vmatprep.subr.mxu0 0.0
      %1904 = vmatpush1.msra.mxu0 0.0
      %1905 = vmatprep.subr.mxu0 0.0
      %1906 = vmatpush1.msra.mxu0 0.0
      %1907 = vmatprep.subr.mxu0 0.0
      %1908 = vmatpush1.msra.mxu0 0.0
      %1909 = vmatprep.subr.mxu0 0.0
      %1910 = vmatpush1.msra.mxu0 0.0
      %1911 = vmatprep.subr.mxu0 0.0
      %1912 = vmatpush1.msra.mxu0 0.0
      %1913 = vmatprep.subr.mxu0 0.0
      %1914 = vmatpush1.msra.mxu0 0.0
      %1915 = vmatprep.subr.mxu0 0.0
      %1916 = vmatpush1.msra.mxu0 0.0
      %1917 = vmatprep.subr.mxu0 0.0
      %1918 = vmatpush1.msra.mxu0 0.0
      %1919 = vmatprep.subr.mxu0 0.0
      %1920 = vmatpush1.msra.mxu0 0.0
      %1921 = vmatprep.subr.mxu0 0.0
      %1922 = vmatpush1.msra.mxu0 0.0
      %1923 = vmatprep.subr.mxu0 0.0
      %1924 = vmatpush1.msra.mxu0 0.0
      %1925 = vmatprep.subr.mxu0 0.0
      %1926 = vmatpush1.msra.mxu0 0.0
      %1927 = vmatprep.subr.mxu0 0.0
      %1928 = vmatpush1.msra.mxu0 0.0
      %1929 = vmatprep.subr.mxu0 0.0
      %1930 = vmatpush1.msra.mxu0 0.0
      %1931 = vmatprep.subr.mxu0 0.0
      %1932 = vmatpush1.msra.mxu0 0.0
      %1933 = vmatprep.subr.mxu0 0.0
      %1934 = vmatpush1.msra.mxu0 0.0
      %1935 = vmatprep.subr.mxu0 0.0
      %1936 = vmatpush1.msra.mxu0 0.0
      %1937 = vmatprep.subr.mxu0 0.0
      %1938 = vmatpush1.msra.mxu0 0.0
      %1939 = vmatprep.subr.mxu0 0.0
      %1940 = vmatpush1.msra.mxu0 0.0
      %1941 = vmatprep.subr.mxu0 0.0
      %1942 = vmatpush1.msra.mxu0 0.0
      %1943 = vmatprep.mubr.f32.mxu0 0.0
      %1944 = vmatmul.mubr.f32.gmra.mrb[0].mxu0 %v1423
      %v1945 = vpop.f32.mrb[0].mxu0
      %v1946 = vadd.f32 %v1404, %v1945
      %v1947 = vpop.f32.mrb[0].mxu0
      %v1948 = vadd.f32 %v1404, %v1947
      %1949 = vmatprep.mubr.f32.mxu0 0.0
      %1950 = vmatmul.mubr.f32.gmra.mrb[0].mxu0 %v1426
      %v1951 = vpop.f32.mrb[0].mxu0
      %v1952 = vadd.f32 %v1409, %v1951
      %v1953 = vpop.f32.mrb[0].mxu0
      %v1954 = vadd.f32 %v1409, %v1953
      %1955 = vmatprep.mubr.f32.mxu0 0.0
      %1956 = vmatmul.mubr.f32.gmra.mrb[0].mxu0 %v1429
      %v1957 = vpop.f32.mrb[0].mxu0
      %v1958 = vadd.f32 %v1414, %v1957
      %v1959 = vpop.f32.mrb[0].mxu0
      %v1960 = vadd.f32 %v1414, %v1959
      %1961 = vmatprep.mubr.f32.mxu0 0.0
      %1962 = vmatmul.mubr.f32.gmra.mrb[0].mxu0 %v1432
      %v1963 = vpop.f32.mrb[0].mxu0
      %v1964 = vadd.f32 %v1419, %v1963
      %v1965 = vpop.f32.mrb[0].mxu0
      %v1966 = vadd.f32 %v1419, %v1965
      %1967 = vdwg.mxu0
      %1968 = vmatprep.subr.mxu0 %v1342
      %1969 = vmatpush1.msra.mxu0 %v1341
      %1970 = vmatprep.subr.mxu0 %v1358
      %1971 = vmatpush1.msra.mxu0 %v1357
      %1972 = vmatprep.subr.mxu0 %v1374
      %1973 = vmatpush1.msra.mxu0 %v1373
      %1974 = vmatprep.subr.mxu0 %v1390
      %1975 = vmatpush1.msra.mxu0 %v1389
      %1976 = vmatprep.subr.mxu0 0.0
      %1977 = vmatpush1.msra.mxu0 0.0
      %1978 = vmatprep.subr.mxu0 0.0
      %1979 = vmatpush1.msra.mxu0 0.0
      %1980 = vmatprep.subr.mxu0 0.0
      %1981 = vmatpush1.msra.mxu0 0.0
      %1982 = vmatprep.subr.mxu0 0.0
      %1983 = vmatpush1.msra.mxu0 0.0
      %1984 = vmatprep.subr.mxu0 0.0
      %1985 = vmatpush1.msra.mxu0 0.0
      %1986 = vmatprep.subr.mxu0 0.0
      %1987 = vmatpush1.msra.mxu0 0.0
      %1988 = vmatprep.subr.mxu0 0.0
      %1989 = vmatpush1.msra.mxu0 0.0
      %1990 = vmatprep.subr.mxu0 0.0
      %1991 = vmatpush1.msra.mxu0 0.0
      %1992 = vmatprep.subr.mxu0 0.0
      %1993 = vmatpush1.msra.mxu0 0.0
      %1994 = vmatprep.subr.mxu0 0.0
      %1995 = vmatpush1.msra.mxu0 0.0
      %1996 = vmatprep.subr.mxu0 0.0
      %1997 = vmatpush1.msra.mxu0 0.0
      %1998 = vmatprep.subr.mxu0 0.0
      %1999 = vmatpush1.msra.mxu0 0.0
      %2000 = vmatprep.subr.mxu0 0.0
      %2001 = vmatpush1.msra.mxu0 0.0
      %2002 = vmatprep.subr.mxu0 0.0
      %2003 = vmatpush1.msra.mxu0 0.0
      %2004 = vmatprep.subr.mxu0 0.0
      %2005 = vmatpush1.msra.mxu0 0.0
      %2006 = vmatprep.subr.mxu0 0.0
      %2007 = vmatpush1.msra.mxu0 0.0
      %2008 = vmatprep.subr.mxu0 0.0
      %2009 = vmatpush1.msra.mxu0 0.0
      %2010 = vmatprep.subr.mxu0 0.0
      %2011 = vmatpush1.msra.mxu0 0.0
      %2012 = vmatprep.subr.mxu0 0.0
      %2013 = vmatpush1.msra.mxu0 0.0
      %2014 = vmatprep.subr.mxu0 0.0
      %2015 = vmatpush1.msra.mxu0 0.0
      %2016 = vmatprep.subr.mxu0 0.0
      %2017 = vmatpush1.msra.mxu0 0.0
      %2018 = vmatprep.subr.mxu0 0.0
      %2019 = vmatpush1.msra.mxu0 0.0
      %2020 = vmatprep.subr.mxu0 0.0
      %2021 = vmatpush1.msra.mxu0 0.0
      %2022 = vmatprep.subr.mxu0 0.0
      %2023 = vmatpush1.msra.mxu0 0.0
      %2024 = vmatprep.subr.mxu0 0.0
      %2025 = vmatpush1.msra.mxu0 0.0
      %2026 = vmatprep.subr.mxu0 0.0
      %2027 = vmatpush1.msra.mxu0 0.0
      %2028 = vmatprep.subr.mxu0 0.0
      %2029 = vmatpush1.msra.mxu0 0.0
      %2030 = vmatprep.subr.mxu0 0.0
      %2031 = vmatpush1.msra.mxu0 0.0
      %2032 = vmatprep.mubr.f32.mxu0 0.0
      %2033 = vmatmul.mubr.f32.gmra.mrb[0].mxu0 %v1423
      %v2034 = vpop.f32.mrb[0].mxu0
      %v2035 = vadd.f32 %v1404, %v2034
      %v2036 = vpop.f32.mrb[0].mxu0
      %v2037 = vadd.f32 %v1404, %v2036
      %2038 = vmatprep.mubr.f32.mxu0 0.0
      %2039 = vmatmul.mubr.f32.gmra.mrb[0].mxu0 %v1426
      %v2040 = vpop.f32.mrb[0].mxu0
      %v2041 = vadd.f32 %v1409, %v2040
      %v2042 = vpop.f32.mrb[0].mxu0
      %v2043 = vadd.f32 %v1409, %v2042
      %2044 = vmatprep.mubr.f32.mxu0 0.0
      %2045 = vmatmul.mubr.f32.gmra.mrb[0].mxu0 %v1429
      %v2046 = vpop.f32.mrb[0].mxu0
      %v2047 = vadd.f32 %v1414, %v2046
      %v2048 = vpop.f32.mrb[0].mxu0
      %v2049 = vadd.f32 %v1414, %v2048
      %2050 = vmatprep.mubr.f32.mxu0 0.0
      %2051 = vmatmul.mubr.f32.gmra.mrb[0].mxu0 %v1432
      %v2052 = vpop.f32.mrb[0].mxu0
      %v2053 = vadd.f32 %v1419, %v2052
      %v2054 = vpop.f32.mrb[0].mxu0
      %v2055 = vadd.f32 %v1419, %v2054
      %2056 = vdwg.mxu0
      %2057 = vmatprep.subr.mxu0 %v1344
      %2058 = vmatpush1.msra.mxu0 %v1343
      %2059 = vmatprep.subr.mxu0 %v1360
      %2060 = vmatpush1.msra.mxu0 %v1359
      %2061 = vmatprep.subr.mxu0 %v1376
      %2062 = vmatpush1.msra.mxu0 %v1375
      %2063 = vmatprep.subr.mxu0 %v1392
      %2064 = vmatpush1.msra.mxu0 %v1391
      %2065 = vmatprep.subr.mxu0 0.0
      %2066 = vmatpush1.msra.mxu0 0.0
      %2067 = vmatprep.subr.mxu0 0.0
      %2068 = vmatpush1.msra.mxu0 0.0
      %2069 = vmatprep.subr.mxu0 0.0
      %2070 = vmatpush1.msra.mxu0 0.0
      %2071 = vmatprep.subr.mxu0 0.0
      %2072 = vmatpush1.msra.mxu0 0.0
      %2073 = vmatprep.subr.mxu0 0.0
      %2074 = vmatpush1.msra.mxu0 0.0
      %2075 = vmatprep.subr.mxu0 0.0
      %2076 = vmatpush1.msra.mxu0 0.0
      %2077 = vmatprep.subr.mxu0 0.0
      %2078 = vmatpush1.msra.mxu0 0.0
      %2079 = vmatprep.subr.mxu0 0.0
      %2080 = vmatpush1.msra.mxu0 0.0
      %2081 = vmatprep.subr.mxu0 0.0
      %2082 = vmatpush1.msra.mxu0 0.0
      %2083 = vmatprep.subr.mxu0 0.0
      %2084 = vmatpush1.msra.mxu0 0.0
      %2085 = vmatprep.subr.mxu0 0.0
      %2086 = vmatpush1.msra.mxu0 0.0
      %2087 = vmatprep.subr.mxu0 0.0
      %2088 = vmatpush1.msra.mxu0 0.0
      %2089 = vmatprep.subr.mxu0 0.0
      %2090 = vmatpush1.msra.mxu0 0.0
      %2091 = vmatprep.subr.mxu0 0.0
      %2092 = vmatpush1.msra.mxu0 0.0
      %2093 = vmatprep.subr.mxu0 0.0
      %2094 = vmatpush1.msra.mxu0 0.0
      %2095 = vmatprep.subr.mxu0 0.0
      %2096 = vmatpush1.msra.mxu0 0.0
      %2097 = vmatprep.subr.mxu0 0.0
      %2098 = vmatpush1.msra.mxu0 0.0
      %2099 = vmatprep.subr.mxu0 0.0
      %2100 = vmatpush1.msra.mxu0 0.0
      %2101 = vmatprep.subr.mxu0 0.0
      %2102 = vmatpush1.msra.mxu0 0.0
      %2103 = vmatprep.subr.mxu0 0.0
      %2104 = vmatpush1.msra.mxu0 0.0
      %2105 = vmatprep.subr.mxu0 0.0
      %2106 = vmatpush1.msra.mxu0 0.0
      %2107 = vmatprep.subr.mxu0 0.0
      %2108 = vmatpush1.msra.mxu0 0.0
      %2109 = vmatprep.subr.mxu0 0.0
      %2110 = vmatpush1.msra.mxu0 0.0
      %2111 = vmatprep.subr.mxu0 0.0
      %2112 = vmatpush1.msra.mxu0 0.0
      %2113 = vmatprep.subr.mxu0 0.0
      %2114 = vmatpush1.msra.mxu0 0.0
      %2115 = vmatprep.subr.mxu0 0.0
      %2116 = vmatpush1.msra.mxu0 0.0
      %2117 = vmatprep.subr.mxu0 0.0
      %2118 = vmatpush1.msra.mxu0 0.0
      %2119 = vmatprep.subr.mxu0 0.0
      %2120 = vmatpush1.msra.mxu0 0.0
      %2121 = vmatprep.mubr.f32.mxu0 0.0
      %2122 = vmatmul.mubr.f32.gmra.mrb[0].mxu0 %v1423
      %v2123 = vpop.f32.mrb[0].mxu0
      %v2124 = vadd.f32 %v1404, %v2123
      %v2125 = vpop.f32.mrb[0].mxu0
      %v2126 = vadd.f32 %v1404, %v2125
      %2127 = vmatprep.mubr.f32.mxu0 0.0
      %2128 = vmatmul.mubr.f32.gmra.mrb[0].mxu0 %v1426
      %v2129 = vpop.f32.mrb[0].mxu0
      %v2130 = vadd.f32 %v1409, %v2129
      %v2131 = vpop.f32.mrb[0].mxu0
      %v2132 = vadd.f32 %v1409, %v2131
      %2133 = vmatprep.mubr.f32.mxu0 0.0
      %2134 = vmatmul.mubr.f32.gmra.mrb[0].mxu0 %v1429
      %v2135 = vpop.f32.mrb[0].mxu0
      %v2136 = vadd.f32 %v1414, %v2135
      %v2137 = vpop.f32.mrb[0].mxu0
      %v2138 = vadd.f32 %v1414, %v2137
      %2139 = vmatprep.mubr.f32.mxu0 0.0
      %2140 = vmatmul.mubr.f32.gmra.mrb[0].mxu0 %v1432
      %v2141 = vpop.f32.mrb[0].mxu0
      %v2142 = vadd.f32 %v1419, %v2141
      %v2143 = vpop.f32.mrb[0].mxu0
      %v2144 = vadd.f32 %v1419, %v2143
      %2145 = vdwg.mxu0
      %v2146 = vmax.f32 %v1501, 0.0
      %v2147 = vmax.f32 %v1503, 0.0
      %v2148 = vmax.f32 %v1590, 0.0
      %v2149 = vmax.f32 %v1592, 0.0
      %v2150 = vmax.f32 %v1679, 0.0
      %v2151 = vmax.f32 %v1681, 0.0
      %v2152 = vmax.f32 %v1768, 0.0
      %v2153 = vmax.f32 %v1770, 0.0
      %v2154 = vmax.f32 %v1857, 0.0
      %v2155 = vmax.f32 %v1859, 0.0
      %v2156 = vmax.f32 %v1946, 0.0
      %v2157 = vmax.f32 %v1948, 0.0
      %v2158 = vmax.f32 %v2035, 0.0
      %v2159 = vmax.f32 %v2037, 0.0
      %v2160 = vmax.f32 %v2124, 0.0
      %v2161 = vmax.f32 %v2126, 0.0
      %v2162 = vmax.f32 %v1507, 0.0
      %v2163 = vmax.f32 %v1509, 0.0
      %v2164 = vmax.f32 %v1596, 0.0
      %v2165 = vmax.f32 %v1598, 0.0
      %v2166 = vmax.f32 %v1685, 0.0
      %v2167 = vmax.f32 %v1687, 0.0
      %v2168 = vmax.f32 %v1774, 0.0
      %v2169 = vmax.f32 %v1776, 0.0
      %v2170 = vmax.f32 %v1863, 0.0
      %v2171 = vmax.f32 %v1865, 0.0
      %v2172 = vmax.f32 %v1952, 0.0
      %v2173 = vmax.f32 %v1954, 0.0
      %v2174 = vmax.f32 %v2041, 0.0
      %v2175 = vmax.f32 %v2043, 0.0
      %v2176 = vmax.f32 %v2130, 0.0
      %v2177 = vmax.f32 %v2132, 0.0
      %v2178 = vmax.f32 %v1513, 0.0
      %v2179 = vmax.f32 %v1515, 0.0
      %v2180 = vmax.f32 %v1602, 0.0
      %v2181 = vmax.f32 %v1604, 0.0
      %v2182 = vmax.f32 %v1691, 0.0
      %v2183 = vmax.f32 %v1693, 0.0
      %v2184 = vmax.f32 %v1780, 0.0
      %v2185 = vmax.f32 %v1782, 0.0
      %v2186 = vmax.f32 %v1869, 0.0
      %v2187 = vmax.f32 %v1871, 0.0
      %v2188 = vmax.f32 %v1958, 0.0
      %v2189 = vmax.f32 %v1960, 0.0
      %v2190 = vmax.f32 %v2047, 0.0
      %v2191 = vmax.f32 %v2049, 0.0
      %v2192 = vmax.f32 %v2136, 0.0
      %v2193 = vmax.f32 %v2138, 0.0
      %v2194 = vmax.f32 %v1519, 0.0
      %v2195 = vmax.f32 %v1521, 0.0
      %v2196 = vmax.f32 %v1608, 0.0
      %v2197 = vmax.f32 %v1610, 0.0
      %v2198 = vmax.f32 %v1697, 0.0
      %v2199 = vmax.f32 %v1699, 0.0
      %v2200 = vmax.f32 %v1786, 0.0
      %v2201 = vmax.f32 %v1788, 0.0
      %v2202 = vmax.f32 %v1875, 0.0
      %v2203 = vmax.f32 %v1877, 0.0
      %v2204 = vmax.f32 %v1964, 0.0
      %v2205 = vmax.f32 %v1966, 0.0
      %v2206 = vmax.f32 %v2053, 0.0
      %v2207 = vmax.f32 %v2055, 0.0
      %v2208 = vmax.f32 %v2142, 0.0
      %v2209 = vmax.f32 %v2144, 0.0
      %v2210 = vld [vmem:[%s5] sm:$0xff]
      %v2211 = vld [vmem:[%s5 + $0x8] sm:$0xff]
      %v2212 = vld [vmem:[%s5 + $0x10] sm:$0xff]
      %v2213 = vld [vmem:[%s5 + $0x18] sm:$0xff]
      %v2214 = vld [vmem:[%s6] sm:$0xff]
      %v2215 = vld [vmem:[%s6 + $0x8] sm:$0xff]
      %v2216 = vld [vmem:[%s6 + $0x10] sm:$0xff]
      %v2217 = vld [vmem:[%s6 + $0x18] sm:$0xff]
      %v2218 = vld [vmem:[%s7] sm:$0xff]
      %v2219 = vld [vmem:[%s7 + $0x8] sm:$0xff]
      %v2220 = vld [vmem:[%s7 + $0x10] sm:$0xff]
      %v2221 = vld [vmem:[%s7 + $0x18] sm:$0xff]
      %2223 = vset.pattern.permute.xlu0 0
      %2224 = vperm.xlu0 %2223, %v2218
      %v2225 = vpop.permute.xlu0 %2224
      %2228 = vset.pattern.permute.xlu0 0
      %2229 = vperm.xlu0 %2228, %v2219
      %v2230 = vpop.permute.xlu0 %2229
      %2233 = vset.pattern.permute.xlu0 0
      %2234 = vperm.xlu0 %2233, %v2220
      %v2235 = vpop.permute.xlu0 %2234
      %2238 = vset.pattern.permute.xlu0 0
      %2239 = vperm.xlu0 %2238, %v2221
      %v2240 = vpop.permute.xlu0 %2239
      %v2243 = vsel %vm1421, %v2210, 0
      %v2246 = vsel %vm1421, %v2211, 0
      %v2249 = vsel %vm1421, %v2212, 0
      %v2252 = vsel %vm1421, %v2213, 0
      %2254 = vmatprep.subr.mxu0 %v2147
      %2255 = vmatpush1.msra.mxu0 %v2146
      %2256 = vmatprep.subr.mxu0 %v2163
      %2257 = vmatpush1.msra.mxu0 %v2162
      %2258 = vmatprep.subr.mxu0 %v2179
      %2259 = vmatpush1.msra.mxu0 %v2178
      %2260 = vmatprep.subr.mxu0 %v2195
      %2261 = vmatpush1.msra.mxu0 %v2194
      %2262 = vmatprep.subr.mxu0 0.0
      %2263 = vmatpush1.msra.mxu0 0.0
      %2264 = vmatprep.subr.mxu0 0.0
      %2265 = vmatpush1.msra.mxu0 0.0
      %2266 = vmatprep.subr.mxu0 0.0
      %2267 = vmatpush1.msra.mxu0 0.0
      %2268 = vmatprep.subr.mxu0 0.0
      %2269 = vmatpush1.msra.mxu0 0.0
      %2270 = vmatprep.subr.mxu0 0.0
      %2271 = vmatpush1.msra.mxu0 0.0
      %2272 = vmatprep.subr.mxu0 0.0
      %2273 = vmatpush1.msra.mxu0 0.0
      %2274 = vmatprep.subr.mxu0 0.0
      %2275 = vmatpush1.msra.mxu0 0.0
      %2276 = vmatprep.subr.mxu0 0.0
      %2277 = vmatpush1.msra.mxu0 0.0
      %2278 = vmatprep.subr.mxu0 0.0
      %2279 = vmatpush1.msra.mxu0 0.0
      %2280 = vmatprep.subr.mxu0 0.0
      %2281 = vmatpush1.msra.mxu0 0.0
      %2282 = vmatprep.subr.mxu0 0.0
      %2283 = vmatpush1.msra.mxu0 0.0
      %2284 = vmatprep.subr.mxu0 0.0
      %2285 = vmatpush1.msra.mxu0 0.0
      %2286 = vmatprep.subr.mxu0 0.0
      %2287 = vmatpush1.msra.mxu0 0.0
      %2288 = vmatprep.subr.mxu0 0.0
      %2289 = vmatpush1.msra.mxu0 0.0
      %2290 = vmatprep.subr.mxu0 0.0
      %2291 = vmatpush1.msra.mxu0 0.0
      %2292 = vmatprep.subr.mxu0 0.0
      %2293 = vmatpush1.msra.mxu0 0.0
      %2294 = vmatprep.subr.mxu0 0.0
      %2295 = vmatpush1.msra.mxu0 0.0
      %2296 = vmatprep.subr.mxu0 0.0
      %2297 = vmatpush1.msra.mxu0 0.0
      %2298 = vmatprep.subr.mxu0 0.0
      %2299 = vmatpush1.msra.mxu0 0.0
      %2300 = vmatprep.subr.mxu0 0.0
      %2301 = vmatpush1.msra.mxu0 0.0
      %2302 = vmatprep.subr.mxu0 0.0
      %2303 = vmatpush1.msra.mxu0 0.0
      %2304 = vmatprep.subr.mxu0 0.0
      %2305 = vmatpush1.msra.mxu0 0.0
      %2306 = vmatprep.subr.mxu0 0.0
      %2307 = vmatpush1.msra.mxu0 0.0
      %2308 = vmatprep.subr.mxu0 0.0
      %2309 = vmatpush1.msra.mxu0 0.0
      %2310 = vmatprep.subr.mxu0 0.0
      %2311 = vmatpush1.msra.mxu0 0.0
      %2312 = vmatprep.subr.mxu0 0.0
      %2313 = vmatpush1.msra.mxu0 0.0
      %2314 = vmatprep.subr.mxu0 0.0
      %2315 = vmatpush1.msra.mxu0 0.0
      %2316 = vmatprep.subr.mxu0 0.0
      %2317 = vmatpush1.msra.mxu0 0.0
      %2318 = vmatprep.mubr.f32.mxu0 0.0
      %2319 = vmatmul.mubr.f32.gmra.mrb[0].mxu0 %v2243
      %v2320 = vpop.f32.mrb[0].mxu0
      %v2321 = vadd.f32 %v2225, %v2320
      %v2322 = vpop.f32.mrb[0].mxu0
      %v2323 = vadd.f32 %v2225, %v2322
      %2324 = vmatprep.mubr.f32.mxu0 0.0
      %2325 = vmatmul.mubr.f32.gmra.mrb[0].mxu0 %v2246
      %v2326 = vpop.f32.mrb[0].mxu0
      %v2327 = vadd.f32 %v2230, %v2326
      %v2328 = vpop.f32.mrb[0].mxu0
      %v2329 = vadd.f32 %v2230, %v2328
      %2330 = vmatprep.mubr.f32.mxu0 0.0
      %2331 = vmatmul.mubr.f32.gmra.mrb[0].mxu0 %v2249
      %v2332 = vpop.f32.mrb[0].mxu0
      %v2333 = vadd.f32 %v2235, %v2332
      %v2334 = vpop.f32.mrb[0].mxu0
      %v2335 = vadd.f32 %v2235, %v2334
      %2336 = vmatprep.mubr.f32.mxu0 0.0
      %2337 = vmatmul.mubr.f32.gmra.mrb[0].mxu0 %v2252
      %v2338 = vpop.f32.mrb[0].mxu0
      %v2339 = vadd.f32 %v2240, %v2338
      %v2340 = vpop.f32.mrb[0].mxu0
      %v2341 = vadd.f32 %v2240, %v2340
      %2342 = vdwg.mxu0
      %2343 = vmatprep.subr.mxu0 %v2149
      %2344 = vmatpush1.msra.mxu0 %v2148
      %2345 = vmatprep.subr.mxu0 %v2165
      %2346 = vmatpush1.msra.mxu0 %v2164
      %2347 = vmatprep.subr.mxu0 %v2181
      %2348 = vmatpush1.msra.mxu0 %v2180
      %2349 = vmatprep.subr.mxu0 %v2197
      %2350 = vmatpush1.msra.mxu0 %v2196
      %2351 = vmatprep.subr.mxu0 0.0
      %2352 = vmatpush1.msra.mxu0 0.0
      %2353 = vmatprep.subr.mxu0 0.0
      %2354 = vmatpush1.msra.mxu0 0.0
      %2355 = vmatprep.subr.mxu0 0.0
      %2356 = vmatpush1.msra.mxu0 0.0
      %2357 = vmatprep.subr.mxu0 0.0
      %2358 = vmatpush1.msra.mxu0 0.0
      %2359 = vmatprep.subr.mxu0 0.0
      %2360 = vmatpush1.msra.mxu0 0.0
      %2361 = vmatprep.subr.mxu0 0.0
      %2362 = vmatpush1.msra.mxu0 0.0
      %2363 = vmatprep.subr.mxu0 0.0
      %2364 = vmatpush1.msra.mxu0 0.0
      %2365 = vmatprep.subr.mxu0 0.0
      %2366 = vmatpush1.msra.mxu0 0.0
      %2367 = vmatprep.subr.mxu0 0.0
      %2368 = vmatpush1.msra.mxu0 0.0
      %2369 = vmatprep.subr.mxu0 0.0
      %2370 = vmatpush1.msra.mxu0 0.0
      %2371 = vmatprep.subr.mxu0 0.0
      %2372 = vmatpush1.msra.mxu0 0.0
      %2373 = vmatprep.subr.mxu0 0.0
      %2374 = vmatpush1.msra.mxu0 0.0
      %2375 = vmatprep.subr.mxu0 0.0
      %2376 = vmatpush1.msra.mxu0 0.0
      %2377 = vmatprep.subr.mxu0 0.0
      %2378 = vmatpush1.msra.mxu0 0.0
      %2379 = vmatprep.subr.mxu0 0.0
      %2380 = vmatpush1.msra.mxu0 0.0
      %2381 = vmatprep.subr.mxu0 0.0
      %2382 = vmatpush1.msra.mxu0 0.0
      %2383 = vmatprep.subr.mxu0 0.0
      %2384 = vmatpush1.msra.mxu0 0.0
      %2385 = vmatprep.subr.mxu0 0.0
      %2386 = vmatpush1.msra.mxu0 0.0
      %2387 = vmatprep.subr.mxu0 0.0
      %2388 = vmatpush1.msra.mxu0 0.0
      %2389 = vmatprep.subr.mxu0 0.0
      %2390 = vmatpush1.msra.mxu0 0.0
      %2391 = vmatprep.subr.mxu0 0.0
      %2392 = vmatpush1.msra.mxu0 0.0
      %2393 = vmatprep.subr.mxu0 0.0
      %2394 = vmatpush1.msra.mxu0 0.0
      %2395 = vmatprep.subr.mxu0 0.0
      %2396 = vmatpush1.msra.mxu0 0.0
      %2397 = vmatprep.subr.mxu0 0.0
      %2398 = vmatpush1.msra.mxu0 0.0
      %2399 = vmatprep.subr.mxu0 0.0
      %2400 = vmatpush1.msra.mxu0 0.0
      %2401 = vmatprep.subr.mxu0 0.0
      %2402 = vmatpush1.msra.mxu0 0.0
      %2403 = vmatprep.subr.mxu0 0.0
      %2404 = vmatpush1.msra.mxu0 0.0
      %2405 = vmatprep.subr.mxu0 0.0
      %2406 = vmatpush1.msra.mxu0 0.0
      %2407 = vmatprep.mubr.f32.mxu0 0.0
      %2408 = vmatmul.mubr.f32.gmra.mrb[0].mxu0 %v2243
      %v2409 = vpop.f32.mrb[0].mxu0
      %v2410 = vadd.f32 %v2225, %v2409
      %v2411 = vpop.f32.mrb[0].mxu0
      %v2412 = vadd.f32 %v2225, %v2411
      %2413 = vmatprep.mubr.f32.mxu0 0.0
      %2414 = vmatmul.mubr.f32.gmra.mrb[0].mxu0 %v2246
      %v2415 = vpop.f32.mrb[0].mxu0
      %v2416 = vadd.f32 %v2230, %v2415
      %v2417 = vpop.f32.mrb[0].mxu0
      %v2418 = vadd.f32 %v2230, %v2417
      %2419 = vmatprep.mubr.f32.mxu0 0.0
      %2420 = vmatmul.mubr.f32.gmra.mrb[0].mxu0 %v2249
      %v2421 = vpop.f32.mrb[0].mxu0
      %v2422 = vadd.f32 %v2235, %v2421
      %v2423 = vpop.f32.mrb[0].mxu0
      %v2424 = vadd.f32 %v2235, %v2423
      %2425 = vmatprep.mubr.f32.mxu0 0.0
      %2426 = vmatmul.mubr.f32.gmra.mrb[0].mxu0 %v2252
      %v2427 = vpop.f32.mrb[0].mxu0
      %v2428 = vadd.f32 %v2240, %v2427
      %v2429 = vpop.f32.mrb[0].mxu0
      %v2430 = vadd.f32 %v2240, %v2429
      %2431 = vdwg.mxu0
      %2432 = vmatprep.subr.mxu0 %v2151
      %2433 = vmatpush1.msra.mxu0 %v2150
      %2434 = vmatprep.subr.mxu0 %v2167
      %2435 = vmatpush1.msra.mxu0 %v2166
      %2436 = vmatprep.subr.mxu0 %v2183
      %2437 = vmatpush1.msra.mxu0 %v2182
      %2438 = vmatprep.subr.mxu0 %v2199
      %2439 = vmatpush1.msra.mxu0 %v2198
      %2440 = vmatprep.subr.mxu0 0.0
      %2441 = vmatpush1.msra.mxu0 0.0
      %2442 = vmatprep.subr.mxu0 0.0
      %2443 = vmatpush1.msra.mxu0 0.0
      %2444 = vmatprep.subr.mxu0 0.0
      %2445 = vmatpush1.msra.mxu0 0.0
      %2446 = vmatprep.subr.mxu0 0.0
      %2447 = vmatpush1.msra.mxu0 0.0
      %2448 = vmatprep.subr.mxu0 0.0
      %2449 = vmatpush1.msra.mxu0 0.0
      %2450 = vmatprep.subr.mxu0 0.0
      %2451 = vmatpush1.msra.mxu0 0.0
      %2452 = vmatprep.subr.mxu0 0.0
      %2453 = vmatpush1.msra.mxu0 0.0
      %2454 = vmatprep.subr.mxu0 0.0
      %2455 = vmatpush1.msra.mxu0 0.0
      %2456 = vmatprep.subr.mxu0 0.0
      %2457 = vmatpush1.msra.mxu0 0.0
      %2458 = vmatprep.subr.mxu0 0.0
      %2459 = vmatpush1.msra.mxu0 0.0
      %2460 = vmatprep.subr.mxu0 0.0
      %2461 = vmatpush1.msra.mxu0 0.0
      %2462 = vmatprep.subr.mxu0 0.0
      %2463 = vmatpush1.msra.mxu0 0.0
      %2464 = vmatprep.subr.mxu0 0.0
      %2465 = vmatpush1.msra.mxu0 0.0
      %2466 = vmatprep.subr.mxu0 0.0
      %2467 = vmatpush1.msra.mxu0 0.0
      %2468 = vmatprep.subr.mxu0 0.0
      %2469 = vmatpush1.msra.mxu0 0.0
      %2470 = vmatprep.subr.mxu0 0.0
      %2471 = vmatpush1.msra.mxu0 0.0
      %2472 = vmatprep.subr.mxu0 0.0
      %2473 = vmatpush1.msra.mxu0 0.0
      %2474 = vmatprep.subr.mxu0 0.0
      %2475 = vmatpush1.msra.mxu0 0.0
      %2476 = vmatprep.subr.mxu0 0.0
      %2477 = vmatpush1.msra.mxu0 0.0
      %2478 = vmatprep.subr.mxu0 0.0
      %2479 = vmatpush1.msra.mxu0 0.0
      %2480 = vmatprep.subr.mxu0 0.0
      %2481 = vmatpush1.msra.mxu0 0.0
      %2482 = vmatprep.subr.mxu0 0.0
      %2483 = vmatpush1.msra.mxu0 0.0
      %2484 = vmatprep.subr.mxu0 0.0
      %2485 = vmatpush1.msra.mxu0 0.0
      %2486 = vmatprep.subr.mxu0 0.0
      %2487 = vmatpush1.msra.mxu0 0.0
      %2488 = vmatprep.subr.mxu0 0.0
      %2489 = vmatpush1.msra.mxu0 0.0
      %2490 = vmatprep.subr.mxu0 0.0
      %2491 = vmatpush1.msra.mxu0 0.0
      %2492 = vmatprep.subr.mxu0 0.0
      %2493 = vmatpush1.msra.mxu0 0.0
      %2494 = vmatprep.subr.mxu0 0.0
      %2495 = vmatpush1.msra.mxu0 0.0
      %2496 = vmatprep.mubr.f32.mxu0 0.0
      %2497 = vmatmul.mubr.f32.gmra.mrb[0].mxu0 %v2243
      %v2498 = vpop.f32.mrb[0].mxu0
      %v2499 = vadd.f32 %v2225, %v2498
      %v2500 = vpop.f32.mrb[0].mxu0
      %v2501 = vadd.f32 %v2225, %v2500
      %2502 = vmatprep.mubr.f32.mxu0 0.0
      %2503 = vmatmul.mubr.f32.gmra.mrb[0].mxu0 %v2246
      %v2504 = vpop.f32.mrb[0].mxu0
      %v2505 = vadd.f32 %v2230, %v2504
      %v2506 = vpop.f32.mrb[0].mxu0
      %v2507 = vadd.f32 %v2230, %v2506
      %2508 = vmatprep.mubr.f32.mxu0 0.0
      %2509 = vmatmul.mubr.f32.gmra.mrb[0].mxu0 %v2249
      %v2510 = vpop.f32.mrb[0].mxu0
      %v2511 = vadd.f32 %v2235, %v2510
      %v2512 = vpop.f32.mrb[0].mxu0
      %v2513 = vadd.f32 %v2235, %v2512
      %2514 = vmatprep.mubr.f32.mxu0 0.0
      %2515 = vmatmul.mubr.f32.gmra.mrb[0].mxu0 %v2252
      %v2516 = vpop.f32.mrb[0].mxu0
      %v2517 = vadd.f32 %v2240, %v2516
      %v2518 = vpop.f32.mrb[0].mxu0
      %v2519 = vadd.f32 %v2240, %v2518
      %2520 = vdwg.mxu0
      %2521 = vmatprep.subr.mxu0 %v2153
      %2522 = vmatpush1.msra.mxu0 %v2152
      %2523 = vmatprep.subr.mxu0 %v2169
      %2524 = vmatpush1.msra.mxu0 %v2168
      %2525 = vmatprep.subr.mxu0 %v2185
      %2526 = vmatpush1.msra.mxu0 %v2184
      %2527 = vmatprep.subr.mxu0 %v2201
      %2528 = vmatpush1.msra.mxu0 %v2200
      %2529 = vmatprep.subr.mxu0 0.0
      %2530 = vmatpush1.msra.mxu0 0.0
      %2531 = vmatprep.subr.mxu0 0.0
      %2532 = vmatpush1.msra.mxu0 0.0
      %2533 = vmatprep.subr.mxu0 0.0
      %2534 = vmatpush1.msra.mxu0 0.0
      %2535 = vmatprep.subr.mxu0 0.0
      %2536 = vmatpush1.msra.mxu0 0.0
      %2537 = vmatprep.subr.mxu0 0.0
      %2538 = vmatpush1.msra.mxu0 0.0
      %2539 = vmatprep.subr.mxu0 0.0
      %2540 = vmatpush1.msra.mxu0 0.0
      %2541 = vmatprep.subr.mxu0 0.0
      %2542 = vmatpush1.msra.mxu0 0.0
      %2543 = vmatprep.subr.mxu0 0.0
      %2544 = vmatpush1.msra.mxu0 0.0
      %2545 = vmatprep.subr.mxu0 0.0
      %2546 = vmatpush1.msra.mxu0 0.0
      %2547 = vmatprep.subr.mxu0 0.0
      %2548 = vmatpush1.msra.mxu0 0.0
      %2549 = vmatprep.subr.mxu0 0.0
      %2550 = vmatpush1.msra.mxu0 0.0
      %2551 = vmatprep.subr.mxu0 0.0
      %2552 = vmatpush1.msra.mxu0 0.0
      %2553 = vmatprep.subr.mxu0 0.0
      %2554 = vmatpush1.msra.mxu0 0.0
      %2555 = vmatprep.subr.mxu0 0.0
      %2556 = vmatpush1.msra.mxu0 0.0
      %2557 = vmatprep.subr.mxu0 0.0
      %2558 = vmatpush1.msra.mxu0 0.0
      %2559 = vmatprep.subr.mxu0 0.0
      %2560 = vmatpush1.msra.mxu0 0.0
      %2561 = vmatprep.subr.mxu0 0.0
      %2562 = vmatpush1.msra.mxu0 0.0
      %2563 = vmatprep.subr.mxu0 0.0
      %2564 = vmatpush1.msra.mxu0 0.0
      %2565 = vmatprep.subr.mxu0 0.0
      %2566 = vmatpush1.msra.mxu0 0.0
      %2567 = vmatprep.subr.mxu0 0.0
      %2568 = vmatpush1.msra.mxu0 0.0
      %2569 = vmatprep.subr.mxu0 0.0
      %2570 = vmatpush1.msra.mxu0 0.0
      %2571 = vmatprep.subr.mxu0 0.0
      %2572 = vmatpush1.msra.mxu0 0.0
      %2573 = vmatprep.subr.mxu0 0.0
      %2574 = vmatpush1.msra.mxu0 0.0
      %2575 = vmatprep.subr.mxu0 0.0
      %2576 = vmatpush1.msra.mxu0 0.0
      %2577 = vmatprep.subr.mxu0 0.0
      %2578 = vmatpush1.msra.mxu0 0.0
      %2579 = vmatprep.subr.mxu0 0.0
      %2580 = vmatpush1.msra.mxu0 0.0
      %2581 = vmatprep.subr.mxu0 0.0
      %2582 = vmatpush1.msra.mxu0 0.0
      %2583 = vmatprep.subr.mxu0 0.0
      %2584 = vmatpush1.msra.mxu0 0.0
      %2585 = vmatprep.mubr.f32.mxu0 0.0
      %2586 = vmatmul.mubr.f32.gmra.mrb[0].mxu0 %v2243
      %v2587 = vpop.f32.mrb[0].mxu0
      %v2588 = vadd.f32 %v2225, %v2587
      %v2589 = vpop.f32.mrb[0].mxu0
      %v2590 = vadd.f32 %v2225, %v2589
      %2591 = vmatprep.mubr.f32.mxu0 0.0
      %2592 = vmatmul.mubr.f32.gmra.mrb[0].mxu0 %v2246
      %v2593 = vpop.f32.mrb[0].mxu0
      %v2594 = vadd.f32 %v2230, %v2593
      %v2595 = vpop.f32.mrb[0].mxu0
      %v2596 = vadd.f32 %v2230, %v2595
      %2597 = vmatprep.mubr.f32.mxu0 0.0
      %2598 = vmatmul.mubr.f32.gmra.mrb[0].mxu0 %v2249
      %v2599 = vpop.f32.mrb[0].mxu0
      %v2600 = vadd.f32 %v2235, %v2599
      %v2601 = vpop.f32.mrb[0].mxu0
      %v2602 = vadd.f32 %v2235, %v2601
      %2603 = vmatprep.mubr.f32.mxu0 0.0
      %2604 = vmatmul.mubr.f32.gmra.mrb[0].mxu0 %v2252
      %v2605 = vpop.f32.mrb[0].mxu0
      %v2606 = vadd.f32 %v2240, %v2605
      %v2607 = vpop.f32.mrb[0].mxu0
      %v2608 = vadd.f32 %v2240, %v2607
      %2609 = vdwg.mxu0
      %2610 = vmatprep.subr.mxu0 %v2155
      %2611 = vmatpush1.msra.mxu0 %v2154
      %2612 = vmatprep.subr.mxu0 %v2171
      %2613 = vmatpush1.msra.mxu0 %v2170
      %2614 = vmatprep.subr.mxu0 %v2187
      %2615 = vmatpush1.msra.mxu0 %v2186
      %2616 = vmatprep.subr.mxu0 %v2203
      %2617 = vmatpush1.msra.mxu0 %v2202
      %2618 = vmatprep.subr.mxu0 0.0
      %2619 = vmatpush1.msra.mxu0 0.0
      %2620 = vmatprep.subr.mxu0 0.0
      %2621 = vmatpush1.msra.mxu0 0.0
      %2622 = vmatprep.subr.mxu0 0.0
      %2623 = vmatpush1.msra.mxu0 0.0
      %2624 = vmatprep.subr.mxu0 0.0
      %2625 = vmatpush1.msra.mxu0 0.0
      %2626 = vmatprep.subr.mxu0 0.0
      %2627 = vmatpush1.msra.mxu0 0.0
      %2628 = vmatprep.subr.mxu0 0.0
      %2629 = vmatpush1.msra.mxu0 0.0
      %2630 = vmatprep.subr.mxu0 0.0
      %2631 = vmatpush1.msra.mxu0 0.0
      %2632 = vmatprep.subr.mxu0 0.0
      %2633 = vmatpush1.msra.mxu0 0.0
      %2634 = vmatprep.subr.mxu0 0.0
      %2635 = vmatpush1.msra.mxu0 0.0
      %2636 = vmatprep.subr.mxu0 0.0
      %2637 = vmatpush1.msra.mxu0 0.0
      %2638 = vmatprep.subr.mxu0 0.0
      %2639 = vmatpush1.msra.mxu0 0.0
      %2640 = vmatprep.subr.mxu0 0.0
      %2641 = vmatpush1.msra.mxu0 0.0
      %2642 = vmatprep.subr.mxu0 0.0
      %2643 = vmatpush1.msra.mxu0 0.0
      %2644 = vmatprep.subr.mxu0 0.0
      %2645 = vmatpush1.msra.mxu0 0.0
      %2646 = vmatprep.subr.mxu0 0.0
      %2647 = vmatpush1.msra.mxu0 0.0
      %2648 = vmatprep.subr.mxu0 0.0
      %2649 = vmatpush1.msra.mxu0 0.0
      %2650 = vmatprep.subr.mxu0 0.0
      %2651 = vmatpush1.msra.mxu0 0.0
      %2652 = vmatprep.subr.mxu0 0.0
      %2653 = vmatpush1.msra.mxu0 0.0
      %2654 = vmatprep.subr.mxu0 0.0
      %2655 = vmatpush1.msra.mxu0 0.0
      %2656 = vmatprep.subr.mxu0 0.0
      %2657 = vmatpush1.msra.mxu0 0.0
      %2658 = vmatprep.subr.mxu0 0.0
      %2659 = vmatpush1.msra.mxu0 0.0
      %2660 = vmatprep.subr.mxu0 0.0
      %2661 = vmatpush1.msra.mxu0 0.0
      %2662 = vmatprep.subr.mxu0 0.0
      %2663 = vmatpush1.msra.mxu0 0.0
      %2664 = vmatprep.subr.mxu0 0.0
      %2665 = vmatpush1.msra.mxu0 0.0
      %2666 = vmatprep.subr.mxu0 0.0
      %2667 = vmatpush1.msra.mxu0 0.0
      %2668 = vmatprep.subr.mxu0 0.0
      %2669 = vmatpush1.msra.mxu0 0.0
      %2670 = vmatprep.subr.mxu0 0.0
      %2671 = vmatpush1.msra.mxu0 0.0
      %2672 = vmatprep.subr.mxu0 0.0
      %2673 = vmatpush1.msra.mxu0 0.0
      %2674 = vmatprep.mubr.f32.mxu0 0.0
      %2675 = vmatmul.mubr.f32.gmra.mrb[0].mxu0 %v2243
      %v2676 = vpop.f32.mrb[0].mxu0
      %v2677 = vadd.f32 %v2225, %v2676
      %v2678 = vpop.f32.mrb[0].mxu0
      %v2679 = vadd.f32 %v2225, %v2678
      %2680 = vmatprep.mubr.f32.mxu0 0.0
      %2681 = vmatmul.mubr.f32.gmra.mrb[0].mxu0 %v2246
      %v2682 = vpop.f32.mrb[0].mxu0
      %v2683 = vadd.f32 %v2230, %v2682
      %v2684 = vpop.f32.mrb[0].mxu0
      %v2685 = vadd.f32 %v2230, %v2684
      %2686 = vmatprep.mubr.f32.mxu0 0.0
      %2687 = vmatmul.mubr.f32.gmra.mrb[0].mxu0 %v2249
      %v2688 = vpop.f32.mrb[0].mxu0
      %v2689 = vadd.f32 %v2235, %v2688
      %v2690 = vpop.f32.mrb[0].mxu0
      %v2691 = vadd.f32 %v2235, %v2690
      %2692 = vmatprep.mubr.f32.mxu0 0.0
      %2693 = vmatmul.mubr.f32.gmra.mrb[0].mxu0 %v2252
      %v2694 = vpop.f32.mrb[0].mxu0
      %v2695 = vadd.f32 %v2240, %v2694
      %v2696 = vpop.f32.mrb[0].mxu0
      %v2697 = vadd.f32 %v2240, %v2696
      %2698 = vdwg.mxu0
      %2699 = vmatprep.subr.mxu0 %v2157
      %2700 = vmatpush1.msra.mxu0 %v2156
      %2701 = vmatprep.subr.mxu0 %v2173
      %2702 = vmatpush1.msra.mxu0 %v2172
      %2703 = vmatprep.subr.mxu0 %v2189
      %2704 = vmatpush1.msra.mxu0 %v2188
      %2705 = vmatprep.subr.mxu0 %v2205
      %2706 = vmatpush1.msra.mxu0 %v2204
      %2707 = vmatprep.subr.mxu0 0.0
      %2708 = vmatpush1.msra.mxu0 0.0
      %2709 = vmatprep.subr.mxu0 0.0
      %2710 = vmatpush1.msra.mxu0 0.0
      %2711 = vmatprep.subr.mxu0 0.0
      %2712 = vmatpush1.msra.mxu0 0.0
      %2713 = vmatprep.subr.mxu0 0.0
      %2714 = vmatpush1.msra.mxu0 0.0
      %2715 = vmatprep.subr.mxu0 0.0
      %2716 = vmatpush1.msra.mxu0 0.0
      %2717 = vmatprep.subr.mxu0 0.0
      %2718 = vmatpush1.msra.mxu0 0.0
      %2719 = vmatprep.subr.mxu0 0.0
      %2720 = vmatpush1.msra.mxu0 0.0
      %2721 = vmatprep.subr.mxu0 0.0
      %2722 = vmatpush1.msra.mxu0 0.0
      %2723 = vmatprep.subr.mxu0 0.0
      %2724 = vmatpush1.msra.mxu0 0.0
      %2725 = vmatprep.subr.mxu0 0.0
      %2726 = vmatpush1.msra.mxu0 0.0
      %2727 = vmatprep.subr.mxu0 0.0
      %2728 = vmatpush1.msra.mxu0 0.0
      %2729 = vmatprep.subr.mxu0 0.0
      %2730 = vmatpush1.msra.mxu0 0.0
      %2731 = vmatprep.subr.mxu0 0.0
      %2732 = vmatpush1.msra.mxu0 0.0
      %2733 = vmatprep.subr.mxu0 0.0
      %2734 = vmatpush1.msra.mxu0 0.0
      %2735 = vmatprep.subr.mxu0 0.0
      %2736 = vmatpush1.msra.mxu0 0.0
      %2737 = vmatprep.subr.mxu0 0.0
      %2738 = vmatpush1.msra.mxu0 0.0
      %2739 = vmatprep.subr.mxu0 0.0
      %2740 = vmatpush1.msra.mxu0 0.0
      %2741 = vmatprep.subr.mxu0 0.0
      %2742 = vmatpush1.msra.mxu0 0.0
      %2743 = vmatprep.subr.mxu0 0.0
      %2744 = vmatpush1.msra.mxu0 0.0
      %2745 = vmatprep.subr.mxu0 0.0
      %2746 = vmatpush1.msra.mxu0 0.0
      %2747 = vmatprep.subr.mxu0 0.0
      %2748 = vmatpush1.msra.mxu0 0.0
      %2749 = vmatprep.subr.mxu0 0.0
      %2750 = vmatpush1.msra.mxu0 0.0
      %2751 = vmatprep.subr.mxu0 0.0
      %2752 = vmatpush1.msra.mxu0 0.0
      %2753 = vmatprep.subr.mxu0 0.0
      %2754 = vmatpush1.msra.mxu0 0.0
      %2755 = vmatprep.subr.mxu0 0.0
      %2756 = vmatpush1.msra.mxu0 0.0
      %2757 = vmatprep.subr.mxu0 0.0
      %2758 = vmatpush1.msra.mxu0 0.0
      %2759 = vmatprep.subr.mxu0 0.0
      %2760 = vmatpush1.msra.mxu0 0.0
      %2761 = vmatprep.subr.mxu0 0.0
      %2762 = vmatpush1.msra.mxu0 0.0
      %2763 = vmatprep.mubr.f32.mxu0 0.0
      %2764 = vmatmul.mubr.f32.gmra.mrb[0].mxu0 %v2243
      %v2765 = vpop.f32.mrb[0].mxu0
      %v2766 = vadd.f32 %v2225, %v2765
      %v2767 = vpop.f32.mrb[0].mxu0
      %v2768 = vadd.f32 %v2225, %v2767
      %2769 = vmatprep.mubr.f32.mxu0 0.0
      %2770 = vmatmul.mubr.f32.gmra.mrb[0].mxu0 %v2246
      %v2771 = vpop.f32.mrb[0].mxu0
      %v2772 = vadd.f32 %v2230, %v2771
      %v2773 = vpop.f32.mrb[0].mxu0
      %v2774 = vadd.f32 %v2230, %v2773
      %2775 = vmatprep.mubr.f32.mxu0 0.0
      %2776 = vmatmul.mubr.f32.gmra.mrb[0].mxu0 %v2249
      %v2777 = vpop.f32.mrb[0].mxu0
      %v2778 = vadd.f32 %v2235, %v2777
      %v2779 = vpop.f32.mrb[0].mxu0
      %v2780 = vadd.f32 %v2235, %v2779
      %2781 = vmatprep.mubr.f32.mxu0 0.0
      %2782 = vmatmul.mubr.f32.gmra.mrb[0].mxu0 %v2252
      %v2783 = vpop.f32.mrb[0].mxu0
      %v2784 = vadd.f32 %v2240, %v2783
      %v2785 = vpop.f32.mrb[0].mxu0
      %v2786 = vadd.f32 %v2240, %v2785
      %2787 = vdwg.mxu0
      %2788 = vmatprep.subr.mxu0 %v2159
      %2789 = vmatpush1.msra.mxu0 %v2158
      %2790 = vmatprep.subr.mxu0 %v2175
      %2791 = vmatpush1.msra.mxu0 %v2174
      %2792 = vmatprep.subr.mxu0 %v2191
      %2793 = vmatpush1.msra.mxu0 %v2190
      %2794 = vmatprep.subr.mxu0 %v2207
      %2795 = vmatpush1.msra.mxu0 %v2206
      %2796 = vmatprep.subr.mxu0 0.0
      %2797 = vmatpush1.msra.mxu0 0.0
      %2798 = vmatprep.subr.mxu0 0.0
      %2799 = vmatpush1.msra.mxu0 0.0
      %2800 = vmatprep.subr.mxu0 0.0
      %2801 = vmatpush1.msra.mxu0 0.0
      %2802 = vmatprep.subr.mxu0 0.0
      %2803 = vmatpush1.msra.mxu0 0.0
      %2804 = vmatprep.subr.mxu0 0.0
      %2805 = vmatpush1.msra.mxu0 0.0
      %2806 = vmatprep.subr.mxu0 0.0
      %2807 = vmatpush1.msra.mxu0 0.0
      %2808 = vmatprep.subr.mxu0 0.0
      %2809 = vmatpush1.msra.mxu0 0.0
      %2810 = vmatprep.subr.mxu0 0.0
      %2811 = vmatpush1.msra.mxu0 0.0
      %2812 = vmatprep.subr.mxu0 0.0
      %2813 = vmatpush1.msra.mxu0 0.0
      %2814 = vmatprep.subr.mxu0 0.0
      %2815 = vmatpush1.msra.mxu0 0.0
      %2816 = vmatprep.subr.mxu0 0.0
      %2817 = vmatpush1.msra.mxu0 0.0
      %2818 = vmatprep.subr.mxu0 0.0
      %2819 = vmatpush1.msra.mxu0 0.0
      %2820 = vmatprep.subr.mxu0 0.0
      %2821 = vmatpush1.msra.mxu0 0.0
      %2822 = vmatprep.subr.mxu0 0.0
      %2823 = vmatpush1.msra.mxu0 0.0
      %2824 = vmatprep.subr.mxu0 0.0
      %2825 = vmatpush1.msra.mxu0 0.0
      %2826 = vmatprep.subr.mxu0 0.0
      %2827 = vmatpush1.msra.mxu0 0.0
      %2828 = vmatprep.subr.mxu0 0.0
      %2829 = vmatpush1.msra.mxu0 0.0
      %2830 = vmatprep.subr.mxu0 0.0
      %2831 = vmatpush1.msra.mxu0 0.0
      %2832 = vmatprep.subr.mxu0 0.0
      %2833 = vmatpush1.msra.mxu0 0.0
      %2834 = vmatprep.subr.mxu0 0.0
      %2835 = vmatpush1.msra.mxu0 0.0
      %2836 = vmatprep.subr.mxu0 0.0
      %2837 = vmatpush1.msra.mxu0 0.0
      %2838 = vmatprep.subr.mxu0 0.0
      %2839 = vmatpush1.msra.mxu0 0.0
      %2840 = vmatprep.subr.mxu0 0.0
      %2841 = vmatpush1.msra.mxu0 0.0
      %2842 = vmatprep.subr.mxu0 0.0
      %2843 = vmatpush1.msra.mxu0 0.0
      %2844 = vmatprep.subr.mxu0 0.0
      %2845 = vmatpush1.msra.mxu0 0.0
      %2846 = vmatprep.subr.mxu0 0.0
      %2847 = vmatpush1.msra.mxu0 0.0
      %2848 = vmatprep.subr.mxu0 0.0
      %2849 = vmatpush1.msra.mxu0 0.0
      %2850 = vmatprep.subr.mxu0 0.0
      %2851 = vmatpush1.msra.mxu0 0.0
      %2852 = vmatprep.mubr.f32.mxu0 0.0
      %2853 = vmatmul.mubr.f32.gmra.mrb[0].mxu0 %v2243
      %v2854 = vpop.f32.mrb[0].mxu0
      %v2855 = vadd.f32 %v2225, %v2854
      %v2856 = vpop.f32.mrb[0].mxu0
      %v2857 = vadd.f32 %v2225, %v2856
      %2858 = vmatprep.mubr.f32.mxu0 0.0
      %2859 = vmatmul.mubr.f32.gmra.mrb[0].mxu0 %v2246
      %v2860 = vpop.f32.mrb[0].mxu0
      %v2861 = vadd.f32 %v2230, %v2860
      %v2862 = vpop.f32.mrb[0].mxu0
      %v2863 = vadd.f32 %v2230, %v2862
      %2864 = vmatprep.mubr.f32.mxu0 0.0
      %2865 = vmatmul.mubr.f32.gmra.mrb[0].mxu0 %v2249
      %v2866 = vpop.f32.mrb[0].mxu0
      %v2867 = vadd.f32 %v2235, %v2866
      %v2868 = vpop.f32.mrb[0].mxu0
      %v2869 = vadd.f32 %v2235, %v2868
      %2870 = vmatprep.mubr.f32.mxu0 0.0
      %2871 = vmatmul.mubr.f32.gmra.mrb[0].mxu0 %v2252
      %v2872 = vpop.f32.mrb[0].mxu0
      %v2873 = vadd.f32 %v2240, %v2872
      %v2874 = vpop.f32.mrb[0].mxu0
      %v2875 = vadd.f32 %v2240, %v2874
      %2876 = vdwg.mxu0
      %2877 = vmatprep.subr.mxu0 %v2161
      %2878 = vmatpush1.msra.mxu0 %v2160
      %2879 = vmatprep.subr.mxu0 %v2177
      %2880 = vmatpush1.msra.mxu0 %v2176
      %2881 = vmatprep.subr.mxu0 %v2193
      %2882 = vmatpush1.msra.mxu0 %v2192
      %2883 = vmatprep.subr.mxu0 %v2209
      %2884 = vmatpush1.msra.mxu0 %v2208
      %2885 = vmatprep.subr.mxu0 0.0
      %2886 = vmatpush1.msra.mxu0 0.0
      %2887 = vmatprep.subr.mxu0 0.0
      %2888 = vmatpush1.msra.mxu0 0.0
      %2889 = vmatprep.subr.mxu0 0.0
      %2890 = vmatpush1.msra.mxu0 0.0
      %2891 = vmatprep.subr.mxu0 0.0
      %2892 = vmatpush1.msra.mxu0 0.0
      %2893 = vmatprep.subr.mxu0 0.0
      %2894 = vmatpush1.msra.mxu0 0.0
      %2895 = vmatprep.subr.mxu0 0.0
      %2896 = vmatpush1.msra.mxu0 0.0
      %2897 = vmatprep.subr.mxu0 0.0
      %2898 = vmatpush1.msra.mxu0 0.0
      %2899 = vmatprep.subr.mxu0 0.0
      %2900 = vmatpush1.msra.mxu0 0.0
      %2901 = vmatprep.subr.mxu0 0.0
      %2902 = vmatpush1.msra.mxu0 0.0
      %2903 = vmatprep.subr.mxu0 0.0
      %2904 = vmatpush1.msra.mxu0 0.0
      %2905 = vmatprep.subr.mxu0 0.0
      %2906 = vmatpush1.msra.mxu0 0.0
      %2907 = vmatprep.subr.mxu0 0.0
      %2908 = vmatpush1.msra.mxu0 0.0
      %2909 = vmatprep.subr.mxu0 0.0
      %2910 = vmatpush1.msra.mxu0 0.0
      %2911 = vmatprep.subr.mxu0 0.0
      %2912 = vmatpush1.msra.mxu0 0.0
      %2913 = vmatprep.subr.mxu0 0.0
      %2914 = vmatpush1.msra.mxu0 0.0
      %2915 = vmatprep.subr.mxu0 0.0
      %2916 = vmatpush1.msra.mxu0 0.0
      %2917 = vmatprep.subr.mxu0 0.0
      %2918 = vmatpush1.msra.mxu0 0.0
      %2919 = vmatprep.subr.mxu0 0.0
      %2920 = vmatpush1.msra.mxu0 0.0
      %2921 = vmatprep.subr.mxu0 0.0
      %2922 = vmatpush1.msra.mxu0 0.0
      %2923 = vmatprep.subr.mxu0 0.0
      %2924 = vmatpush1.msra.mxu0 0.0
      %2925 = vmatprep.subr.mxu0 0.0
      %2926 = vmatpush1.msra.mxu0 0.0
      %2927 = vmatprep.subr.mxu0 0.0
      %2928 = vmatpush1.msra.mxu0 0.0
      %2929 = vmatprep.subr.mxu0 0.0
      %2930 = vmatpush1.msra.mxu0 0.0
      %2931 = vmatprep.subr.mxu0 0.0
      %2932 = vmatpush1.msra.mxu0 0.0
      %2933 = vmatprep.subr.mxu0 0.0
      %2934 = vmatpush1.msra.mxu0 0.0
      %2935 = vmatprep.subr.mxu0 0.0
      %2936 = vmatpush1.msra.mxu0 0.0
      %2937 = vmatprep.subr.mxu0 0.0
      %2938 = vmatpush1.msra.mxu0 0.0
      %2939 = vmatprep.subr.mxu0 0.0
      %2940 = vmatpush1.msra.mxu0 0.0
      %2941 = vmatprep.mubr.f32.mxu0 0.0
      %2942 = vmatmul.mubr.f32.gmra.mrb[0].mxu0 %v2243
      %v2943 = vpop.f32.mrb[0].mxu0
      %v2944 = vadd.f32 %v2225, %v2943
      %v2945 = vpop.f32.mrb[0].mxu0
      %v2946 = vadd.f32 %v2225, %v2945
      %2947 = vmatprep.mubr.f32.mxu0 0.0
      %2948 = vmatmul.mubr.f32.gmra.mrb[0].mxu0 %v2246
      %v2949 = vpop.f32.mrb[0].mxu0
      %v2950 = vadd.f32 %v2230, %v2949
      %v2951 = vpop.f32.mrb[0].mxu0
      %v2952 = vadd.f32 %v2230, %v2951
      %2953 = vmatprep.mubr.f32.mxu0 0.0
      %2954 = vmatmul.mubr.f32.gmra.mrb[0].mxu0 %v2249
      %v2955 = vpop.f32.mrb[0].mxu0
      %v2956 = vadd.f32 %v2235, %v2955
      %v2957 = vpop.f32.mrb[0].mxu0
      %v2958 = vadd.f32 %v2235, %v2957
      %2959 = vmatprep.mubr.f32.mxu0 0.0
      %2960 = vmatmul.mubr.f32.gmra.mrb[0].mxu0 %v2252
      %v2961 = vpop.f32.mrb[0].mxu0
      %v2962 = vadd.f32 %v2240, %v2961
      %v2963 = vpop.f32.mrb[0].mxu0
      %v2964 = vadd.f32 %v2240, %v2963
      %2965 = vdwg.mxu0
      %2967 = vset.pattern.permute.xlu0 0
      %2968 = vperm.xlu0 %2967, %v2214
      %v2969 = vpop.permute.xlu0 %2968
      %2972 = vset.pattern.permute.xlu0 0
      %2973 = vperm.xlu0 %2972, %v2215
      %v2974 = vpop.permute.xlu0 %2973
      %2977 = vset.pattern.permute.xlu0 0
      %2978 = vperm.xlu0 %2977, %v2216
      %v2979 = vpop.permute.xlu0 %2978
      %2982 = vset.pattern.permute.xlu0 0
      %2983 = vperm.xlu0 %2982, %v2217
      %v2984 = vpop.permute.xlu0 %2983
      %v2986 = vmul.f32 %v2969, %v544
      %v2987 = vmul.f32 %v2969, %v548
      %v2988 = vmul.f32 %v2969, %v552
      %v2989 = vmul.f32 %v2969, %v556
      %v2990 = vmul.f32 %v2969, %v560
      %v2991 = vmul.f32 %v2969, %v564
      %v2992 = vmul.f32 %v2969, %v568
      %v2993 = vmul.f32 %v2969, %v572
      %v2994 = vmul.f32 %v2969, %v576
      %v2995 = vmul.f32 %v2969, %v580
      %v2996 = vmul.f32 %v2969, %v584
      %v2997 = vmul.f32 %v2969, %v588
      %v2998 = vmul.f32 %v2969, %v592
      %v2999 = vmul.f32 %v2969, %v596
      %v3000 = vmul.f32 %v2969, %v600
      %v3001 = vmul.f32 %v2969, %v604
      %v3002 = vmul.f32 %v2974, %v544
      %v3003 = vmul.f32 %v2974, %v548
      %v3004 = vmul.f32 %v2974, %v552
      %v3005 = vmul.f32 %v2974, %v556
      %v3006 = vmul.f32 %v2974, %v560
      %v3007 = vmul.f32 %v2974, %v564
      %v3008 = vmul.f32 %v2974, %v568
      %v3009 = vmul.f32 %v2974, %v572
      %v3010 = vmul.f32 %v2974, %v576
      %v3011 = vmul.f32 %v2974, %v580
      %v3012 = vmul.f32 %v2974, %v584
      %v3013 = vmul.f32 %v2974, %v588
      %v3014 = vmul.f32 %v2974, %v592
      %v3015 = vmul.f32 %v2974, %v596
      %v3016 = vmul.f32 %v2974, %v600
      %v3017 = vmul.f32 %v2974, %v604
      %v3018 = vmul.f32 %v2979, %v544
      %v3019 = vmul.f32 %v2979, %v548
      %v3020 = vmul.f32 %v2979, %v552
      %v3021 = vmul.f32 %v2979, %v556
      %v3022 = vmul.f32 %v2979, %v560
      %v3023 = vmul.f32 %v2979, %v564
      %v3024 = vmul.f32 %v2979, %v568
      %v3025 = vmul.f32 %v2979, %v572
      %v3026 = vmul.f32 %v2979, %v576
      %v3027 = vmul.f32 %v2979, %v580
      %v3028 = vmul.f32 %v2979, %v584
      %v3029 = vmul.f32 %v2979, %v588
      %v3030 = vmul.f32 %v2979, %v592
      %v3031 = vmul.f32 %v2979, %v596
      %v3032 = vmul.f32 %v2979, %v600
      %v3033 = vmul.f32 %v2979, %v604
      %v3034 = vmul.f32 %v2984, %v544
      %v3035 = vmul.f32 %v2984, %v548
      %v3036 = vmul.f32 %v2984, %v552
      %v3037 = vmul.f32 %v2984, %v556
      %v3038 = vmul.f32 %v2984, %v560
      %v3039 = vmul.f32 %v2984, %v564
      %v3040 = vmul.f32 %v2984, %v568
      %v3041 = vmul.f32 %v2984, %v572
      %v3042 = vmul.f32 %v2984, %v576
      %v3043 = vmul.f32 %v2984, %v580
      %v3044 = vmul.f32 %v2984, %v584
      %v3045 = vmul.f32 %v2984, %v588
      %v3046 = vmul.f32 %v2984, %v592
      %v3047 = vmul.f32 %v2984, %v596
      %v3048 = vmul.f32 %v2984, %v600
      %v3049 = vmul.f32 %v2984, %v604
      %v3050 = vadd.f32 %v2321, %v2986
      %v3051 = vadd.f32 %v2323, %v2987
      %v3052 = vadd.f32 %v2410, %v2988
      %v3053 = vadd.f32 %v2412, %v2989
      %v3054 = vadd.f32 %v2499, %v2990
      %v3055 = vadd.f32 %v2501, %v2991
      %v3056 = vadd.f32 %v2588, %v2992
      %v3057 = vadd.f32 %v2590, %v2993
      %v3058 = vadd.f32 %v2677, %v2994
      %v3059 = vadd.f32 %v2679, %v2995
      %v3060 = vadd.f32 %v2766, %v2996
      %v3061 = vadd.f32 %v2768, %v2997
      %v3062 = vadd.f32 %v2855, %v2998
      %v3063 = vadd.f32 %v2857, %v2999
      %v3064 = vadd.f32 %v2944, %v3000
      %v3065 = vadd.f32 %v2946, %v3001
      %v3066 = vadd.f32 %v2327, %v3002
      %v3067 = vadd.f32 %v2329, %v3003
      %v3068 = vadd.f32 %v2416, %v3004
      %v3069 = vadd.f32 %v2418, %v3005
      %v3070 = vadd.f32 %v2505, %v3006
      %v3071 = vadd.f32 %v2507, %v3007
      %v3072 = vadd.f32 %v2594, %v3008
      %v3073 = vadd.f32 %v2596, %v3009
      %v3074 = vadd.f32 %v2683, %v3010
      %v3075 = vadd.f32 %v2685, %v3011
      %v3076 = vadd.f32 %v2772, %v3012
      %v3077 = vadd.f32 %v2774, %v3013
      %v3078 = vadd.f32 %v2861, %v3014
      %v3079 = vadd.f32 %v2863, %v3015
      %v3080 = vadd.f32 %v2950, %v3016
      %v3081 = vadd.f32 %v2952, %v3017
      %v3082 = vadd.f32 %v2333, %v3018
      %v3083 = vadd.f32 %v2335, %v3019
      %v3084 = vadd.f32 %v2422, %v3020
      %v3085 = vadd.f32 %v2424, %v3021
      %v3086 = vadd.f32 %v2511, %v3022
      %v3087 = vadd.f32 %v2513, %v3023
      %v3088 = vadd.f32 %v2600, %v3024
      %v3089 = vadd.f32 %v2602, %v3025
      %v3090 = vadd.f32 %v2689, %v3026
      %v3091 = vadd.f32 %v2691, %v3027
      %v3092 = vadd.f32 %v2778, %v3028
      %v3093 = vadd.f32 %v2780, %v3029
      %v3094 = vadd.f32 %v2867, %v3030
      %v3095 = vadd.f32 %v2869, %v3031
      %v3096 = vadd.f32 %v2956, %v3032
      %v3097 = vadd.f32 %v2958, %v3033
      %v3098 = vadd.f32 %v2339, %v3034
      %v3099 = vadd.f32 %v2341, %v3035
      %v3100 = vadd.f32 %v2428, %v3036
      %v3101 = vadd.f32 %v2430, %v3037
      %v3102 = vadd.f32 %v2517, %v3038
      %v3103 = vadd.f32 %v2519, %v3039
      %v3104 = vadd.f32 %v2606, %v3040
      %v3105 = vadd.f32 %v2608, %v3041
      %v3106 = vadd.f32 %v2695, %v3042
      %v3107 = vadd.f32 %v2697, %v3043
      %v3108 = vadd.f32 %v2784, %v3044
      %v3109 = vadd.f32 %v2786, %v3045
      %v3110 = vadd.f32 %v2873, %v3046
      %v3111 = vadd.f32 %v2875, %v3047
      %v3112 = vadd.f32 %v2962, %v3048
      %v3113 = vadd.f32 %v2964, %v3049
      %3114 = vset.pattern.permute.xlu0 1
      %3115 = vperm.xlu0 %3114, %v2214
      %v3116 = vpop.permute.xlu0 %3115
      %3118 = vset.pattern.permute.xlu0 1
      %3119 = vperm.xlu0 %3118, %v2215
      %v3120 = vpop.permute.xlu0 %3119
      %3122 = vset.pattern.permute.xlu0 1
      %3123 = vperm.xlu0 %3122, %v2216
      %v3124 = vpop.permute.xlu0 %3123
      %3126 = vset.pattern.permute.xlu0 1
      %3127 = vperm.xlu0 %3126, %v2217
      %v3128 = vpop.permute.xlu0 %3127
      %v3130 = vmul.f32 %v3116, %v852
      %v3131 = vmul.f32 %v3116, %v856
      %v3132 = vmul.f32 %v3116, %v860
      %v3133 = vmul.f32 %v3116, %v864
      %v3134 = vmul.f32 %v3116, %v868
      %v3135 = vmul.f32 %v3116, %v872
      %v3136 = vmul.f32 %v3116, %v876
      %v3137 = vmul.f32 %v3116, %v880
      %v3138 = vmul.f32 %v3116, %v884
      %v3139 = vmul.f32 %v3116, %v888
      %v3140 = vmul.f32 %v3116, %v892
      %v3141 = vmul.f32 %v3116, %v896
      %v3142 = vmul.f32 %v3116, %v900
      %v3143 = vmul.f32 %v3116, %v904
      %v3144 = vmul.f32 %v3116, %v908
      %v3145 = vmul.f32 %v3116, %v912
      %v3146 = vmul.f32 %v3120, %v852
      %v3147 = vmul.f32 %v3120, %v856
      %v3148 = vmul.f32 %v3120, %v860
      %v3149 = vmul.f32 %v3120, %v864
      %v3150 = vmul.f32 %v3120, %v868
      %v3151 = vmul.f32 %v3120, %v872
      %v3152 = vmul.f32 %v3120, %v876
      %v3153 = vmul.f32 %v3120, %v880
      %v3154 = vmul.f32 %v3120, %v884
      %v3155 = vmul.f32 %v3120, %v888
      %v3156 = vmul.f32 %v3120, %v892
      %v3157 = vmul.f32 %v3120, %v896
      %v3158 = vmul.f32 %v3120, %v900
      %v3159 = vmul.f32 %v3120, %v904
      %v3160 = vmul.f32 %v3120, %v908
      %v3161 = vmul.f32 %v3120, %v912
      %v3162 = vmul.f32 %v3124, %v852
      %v3163 = vmul.f32 %v3124, %v856
      %v3164 = vmul.f32 %v3124, %v860
      %v3165 = vmul.f32 %v3124, %v864
      %v3166 = vmul.f32 %v3124, %v868
      %v3167 = vmul.f32 %v3124, %v872
      %v3168 = vmul.f32 %v3124, %v876
      %v3169 = vmul.f32 %v3124, %v880
      %v3170 = vmul.f32 %v3124, %v884
      %v3171 = vmul.f32 %v3124, %v888
      %v3172 = vmul.f32 %v3124, %v892
      %v3173 = vmul.f32 %v3124, %v896
      %v3174 = vmul.f32 %v3124, %v900
      %v3175 = vmul.f32 %v3124, %v904
      %v3176 = vmul.f32 %v3124, %v908
      %v3177 = vmul.f32 %v3124, %v912
      %v3178 = vmul.f32 %v3128, %v852
      %v3179 = vmul.f32 %v3128, %v856
      %v3180 = vmul.f32 %v3128, %v860
      %v3181 = vmul.f32 %v3128, %v864
      %v3182 = vmul.f32 %v3128, %v868
      %v3183 = vmul.f32 %v3128, %v872
      %v3184 = vmul.f32 %v3128, %v876
      %v3185 = vmul.f32 %v3128, %v880
      %v3186 = vmul.f32 %v3128, %v884
      %v3187 = vmul.f32 %v3128, %v888
      %v3188 = vmul.f32 %v3128, %v892
      %v3189 = vmul.f32 %v3128, %v896
      %v3190 = vmul.f32 %v3128, %v900
      %v3191 = vmul.f32 %v3128, %v904
      %v3192 = vmul.f32 %v3128, %v908
      %v3193 = vmul.f32 %v3128, %v912
      %v3194 = vadd.f32 %v3050, %v3130
      %v3195 = vadd.f32 %v3051, %v3131
      %v3196 = vadd.f32 %v3052, %v3132
      %v3197 = vadd.f32 %v3053, %v3133
      %v3198 = vadd.f32 %v3054, %v3134
      %v3199 = vadd.f32 %v3055, %v3135
      %v3200 = vadd.f32 %v3056, %v3136
      %v3201 = vadd.f32 %v3057, %v3137
      %v3202 = vadd.f32 %v3058, %v3138
      %v3203 = vadd.f32 %v3059, %v3139
      %v3204 = vadd.f32 %v3060, %v3140
      %v3205 = vadd.f32 %v3061, %v3141
      %v3206 = vadd.f32 %v3062, %v3142
      %v3207 = vadd.f32 %v3063, %v3143
      %v3208 = vadd.f32 %v3064, %v3144
      %v3209 = vadd.f32 %v3065, %v3145
      %v3210 = vadd.f32 %v3066, %v3146
      %v3211 = vadd.f32 %v3067, %v3147
      %v3212 = vadd.f32 %v3068, %v3148
      %v3213 = vadd.f32 %v3069, %v3149
      %v3214 = vadd.f32 %v3070, %v3150
      %v3215 = vadd.f32 %v3071, %v3151
      %v3216 = vadd.f32 %v3072, %v3152
      %v3217 = vadd.f32 %v3073, %v3153
      %v3218 = vadd.f32 %v3074, %v3154
      %v3219 = vadd.f32 %v3075, %v3155
      %v3220 = vadd.f32 %v3076, %v3156
      %v3221 = vadd.f32 %v3077, %v3157
      %v3222 = vadd.f32 %v3078, %v3158
      %v3223 = vadd.f32 %v3079, %v3159
      %v3224 = vadd.f32 %v3080, %v3160
      %v3225 = vadd.f32 %v3081, %v3161
      %v3226 = vadd.f32 %v3082, %v3162
      %v3227 = vadd.f32 %v3083, %v3163
      %v3228 = vadd.f32 %v3084, %v3164
      %v3229 = vadd.f32 %v3085, %v3165
      %v3230 = vadd.f32 %v3086, %v3166
      %v3231 = vadd.f32 %v3087, %v3167
      %v3232 = vadd.f32 %v3088, %v3168
      %v3233 = vadd.f32 %v3089, %v3169
      %v3234 = vadd.f32 %v3090, %v3170
      %v3235 = vadd.f32 %v3091, %v3171
      %v3236 = vadd.f32 %v3092, %v3172
      %v3237 = vadd.f32 %v3093, %v3173
      %v3238 = vadd.f32 %v3094, %v3174
      %v3239 = vadd.f32 %v3095, %v3175
      %v3240 = vadd.f32 %v3096, %v3176
      %v3241 = vadd.f32 %v3097, %v3177
      %v3242 = vadd.f32 %v3098, %v3178
      %v3243 = vadd.f32 %v3099, %v3179
      %v3244 = vadd.f32 %v3100, %v3180
      %v3245 = vadd.f32 %v3101, %v3181
      %v3246 = vadd.f32 %v3102, %v3182
      %v3247 = vadd.f32 %v3103, %v3183
      %v3248 = vadd.f32 %v3104, %v3184
      %v3249 = vadd.f32 %v3105, %v3185
      %v3250 = vadd.f32 %v3106, %v3186
      %v3251 = vadd.f32 %v3107, %v3187
      %v3252 = vadd.f32 %v3108, %v3188
      %v3253 = vadd.f32 %v3109, %v3189
      %v3254 = vadd.f32 %v3110, %v3190
      %v3255 = vadd.f32 %v3111, %v3191
      %v3256 = vadd.f32 %v3112, %v3192
      %v3257 = vadd.f32 %v3113, %v3193
      %3258 = vset.pattern.permute.xlu0 2
      %3259 = vperm.xlu0 %3258, %v2214
      %v3260 = vpop.permute.xlu0 %3259
      %3262 = vset.pattern.permute.xlu0 2
      %3263 = vperm.xlu0 %3262, %v2215
      %v3264 = vpop.permute.xlu0 %3263
      %3266 = vset.pattern.permute.xlu0 2
      %3267 = vperm.xlu0 %3266, %v2216
      %v3268 = vpop.permute.xlu0 %3267
      %3270 = vset.pattern.permute.xlu0 2
      %3271 = vperm.xlu0 %3270, %v2217
      %v3272 = vpop.permute.xlu0 %3271
      %v3274 = vmul.f32 %v3260, %v1140
      %v3275 = vmul.f32 %v3260, %v1144
      %v3276 = vmul.f32 %v3260, %v1148
      %v3277 = vmul.f32 %v3260, %v1152
      %v3278 = vmul.f32 %v3260, %v1156
      %v3279 = vmul.f32 %v3260, %v1160
      %v3280 = vmul.f32 %v3260, %v1164
      %v3281 = vmul.f32 %v3260, %v1168
      %v3282 = vmul.f32 %v3260, %v1172
      %v3283 = vmul.f32 %v3260, %v1176
      %v3284 = vmul.f32 %v3260, %v1180
      %v3285 = vmul.f32 %v3260, %v1184
      %v3286 = vmul.f32 %v3260, %v1188
      %v3287 = vmul.f32 %v3260, %v1192
      %v3288 = vmul.f32 %v3260, %v1196
      %v3289 = vmul.f32 %v3260, %v1200
      %v3290 = vmul.f32 %v3264, %v1140
      %v3291 = vmul.f32 %v3264, %v1144
      %v3292 = vmul.f32 %v3264, %v1148
      %v3293 = vmul.f32 %v3264, %v1152
      %v3294 = vmul.f32 %v3264, %v1156
      %v3295 = vmul.f32 %v3264, %v1160
      %v3296 = vmul.f32 %v3264, %v1164
      %v3297 = vmul.f32 %v3264, %v1168
      %v3298 = vmul.f32 %v3264, %v1172
      %v3299 = vmul.f32 %v3264, %v1176
      %v3300 = vmul.f32 %v3264, %v1180
      %v3301 = vmul.f32 %v3264, %v1184
      %v3302 = vmul.f32 %v3264, %v1188
      %v3303 = vmul.f32 %v3264, %v1192
      %v3304 = vmul.f32 %v3264, %v1196
      %v3305 = vmul.f32 %v3264, %v1200
      %v3306 = vmul.f32 %v3268, %v1140
      %v3307 = vmul.f32 %v3268, %v1144
      %v3308 = vmul.f32 %v3268, %v1148
      %v3309 = vmul.f32 %v3268, %v1152
      %v3310 = vmul.f32 %v3268, %v1156
      %v3311 = vmul.f32 %v3268, %v1160
      %v3312 = vmul.f32 %v3268, %v1164
      %v3313 = vmul.f32 %v3268, %v1168
      %v3314 = vmul.f32 %v3268, %v1172
      %v3315 = vmul.f32 %v3268, %v1176
      %v3316 = vmul.f32 %v3268, %v1180
      %v3317 = vmul.f32 %v3268, %v1184
      %v3318 = vmul.f32 %v3268, %v1188
      %v3319 = vmul.f32 %v3268, %v1192
      %v3320 = vmul.f32 %v3268, %v1196
      %v3321 = vmul.f32 %v3268, %v1200
      %v3322 = vmul.f32 %v3272, %v1140
      %v3323 = vmul.f32 %v3272, %v1144
      %v3324 = vmul.f32 %v3272, %v1148
      %v3325 = vmul.f32 %v3272, %v1152
      %v3326 = vmul.f32 %v3272, %v1156
      %v3327 = vmul.f32 %v3272, %v1160
      %v3328 = vmul.f32 %v3272, %v1164
      %v3329 = vmul.f32 %v3272, %v1168
      %v3330 = vmul.f32 %v3272, %v1172
      %v3331 = vmul.f32 %v3272, %v1176
      %v3332 = vmul.f32 %v3272, %v1180
      %v3333 = vmul.f32 %v3272, %v1184
      %v3334 = vmul.f32 %v3272, %v1188
      %v3335 = vmul.f32 %v3272, %v1192
      %v3336 = vmul.f32 %v3272, %v1196
      %v3337 = vmul.f32 %v3272, %v1200
      %v3338 = vadd.f32 %v3194, %v3274
      %v3339 = vadd.f32 %v3195, %v3275
      %v3340 = vadd.f32 %v3196, %v3276
      %v3341 = vadd.f32 %v3197, %v3277
      %v3342 = vadd.f32 %v3198, %v3278
      %v3343 = vadd.f32 %v3199, %v3279
      %v3344 = vadd.f32 %v3200, %v3280
      %v3345 = vadd.f32 %v3201, %v3281
      %v3346 = vadd.f32 %v3202, %v3282
      %v3347 = vadd.f32 %v3203, %v3283
      %v3348 = vadd.f32 %v3204, %v3284
      %v3349 = vadd.f32 %v3205, %v3285
      %v3350 = vadd.f32 %v3206, %v3286
      %v3351 = vadd.f32 %v3207, %v3287
      %v3352 = vadd.f32 %v3208, %v3288
      %v3353 = vadd.f32 %v3209, %v3289
      %v3354 = vadd.f32 %v3210, %v3290
      %v3355 = vadd.f32 %v3211, %v3291
      %v3356 = vadd.f32 %v3212, %v3292
      %v3357 = vadd.f32 %v3213, %v3293
      %v3358 = vadd.f32 %v3214, %v3294
      %v3359 = vadd.f32 %v3215, %v3295
      %v3360 = vadd.f32 %v3216, %v3296
      %v3361 = vadd.f32 %v3217, %v3297
      %v3362 = vadd.f32 %v3218, %v3298
      %v3363 = vadd.f32 %v3219, %v3299
      %v3364 = vadd.f32 %v3220, %v3300
      %v3365 = vadd.f32 %v3221, %v3301
      %v3366 = vadd.f32 %v3222, %v3302
      %v3367 = vadd.f32 %v3223, %v3303
      %v3368 = vadd.f32 %v3224, %v3304
      %v3369 = vadd.f32 %v3225, %v3305
      %v3370 = vadd.f32 %v3226, %v3306
      %v3371 = vadd.f32 %v3227, %v3307
      %v3372 = vadd.f32 %v3228, %v3308
      %v3373 = vadd.f32 %v3229, %v3309
      %v3374 = vadd.f32 %v3230, %v3310
      %v3375 = vadd.f32 %v3231, %v3311
      %v3376 = vadd.f32 %v3232, %v3312
      %v3377 = vadd.f32 %v3233, %v3313
      %v3378 = vadd.f32 %v3234, %v3314
      %v3379 = vadd.f32 %v3235, %v3315
      %v3380 = vadd.f32 %v3236, %v3316
      %v3381 = vadd.f32 %v3237, %v3317
      %v3382 = vadd.f32 %v3238, %v3318
      %v3383 = vadd.f32 %v3239, %v3319
      %v3384 = vadd.f32 %v3240, %v3320
      %v3385 = vadd.f32 %v3241, %v3321
      %v3386 = vadd.f32 %v3242, %v3322
      %v3387 = vadd.f32 %v3243, %v3323
      %v3388 = vadd.f32 %v3244, %v3324
      %v3389 = vadd.f32 %v3245, %v3325
      %v3390 = vadd.f32 %v3246, %v3326
      %v3391 = vadd.f32 %v3247, %v3327
      %v3392 = vadd.f32 %v3248, %v3328
      %v3393 = vadd.f32 %v3249, %v3329
      %v3394 = vadd.f32 %v3250, %v3330
      %v3395 = vadd.f32 %v3251, %v3331
      %v3396 = vadd.f32 %v3252, %v3332
      %v3397 = vadd.f32 %v3253, %v3333
      %v3398 = vadd.f32 %v3254, %v3334
      %v3399 = vadd.f32 %v3255, %v3335
      %v3400 = vadd.f32 %v3256, %v3336
      %v3401 = vadd.f32 %v3257, %v3337
      %v3402 = vmax.f32 %v3338, 0.0
      %v3403 = vmax.f32 %v3339, 0.0
      %v3404 = vmax.f32 %v3340, 0.0
      %v3405 = vmax.f32 %v3341, 0.0
      %v3406 = vmax.f32 %v3342, 0.0
      %v3407 = vmax.f32 %v3343, 0.0
      %v3408 = vmax.f32 %v3344, 0.0
      %v3409 = vmax.f32 %v3345, 0.0
      %v3410 = vmax.f32 %v3346, 0.0
      %v3411 = vmax.f32 %v3347, 0.0
      %v3412 = vmax.f32 %v3348, 0.0
      %v3413 = vmax.f32 %v3349, 0.0
      %v3414 = vmax.f32 %v3350, 0.0
      %v3415 = vmax.f32 %v3351, 0.0
      %v3416 = vmax.f32 %v3352, 0.0
      %v3417 = vmax.f32 %v3353, 0.0
      %v3418 = vmax.f32 %v3354, 0.0
      %v3419 = vmax.f32 %v3355, 0.0
      %v3420 = vmax.f32 %v3356, 0.0
      %v3421 = vmax.f32 %v3357, 0.0
      %v3422 = vmax.f32 %v3358, 0.0
      %v3423 = vmax.f32 %v3359, 0.0
      %v3424 = vmax.f32 %v3360, 0.0
      %v3425 = vmax.f32 %v3361, 0.0
      %v3426 = vmax.f32 %v3362, 0.0
      %v3427 = vmax.f32 %v3363, 0.0
      %v3428 = vmax.f32 %v3364, 0.0
      %v3429 = vmax.f32 %v3365, 0.0
      %v3430 = vmax.f32 %v3366, 0.0
      %v3431 = vmax.f32 %v3367, 0.0
      %v3432 = vmax.f32 %v3368, 0.0
      %v3433 = vmax.f32 %v3369, 0.0
      %v3434 = vmax.f32 %v3370, 0.0
      %v3435 = vmax.f32 %v3371, 0.0
      %v3436 = vmax.f32 %v3372, 0.0
      %v3437 = vmax.f32 %v3373, 0.0
      %v3438 = vmax.f32 %v3374, 0.0
      %v3439 = vmax.f32 %v3375, 0.0
      %v3440 = vmax.f32 %v3376, 0.0
      %v3441 = vmax.f32 %v3377, 0.0
      %v3442 = vmax.f32 %v3378, 0.0
      %v3443 = vmax.f32 %v3379, 0.0
      %v3444 = vmax.f32 %v3380, 0.0
      %v3445 = vmax.f32 %v3381, 0.0
      %v3446 = vmax.f32 %v3382, 0.0
      %v3447 = vmax.f32 %v3383, 0.0
      %v3448 = vmax.f32 %v3384, 0.0
      %v3449 = vmax.f32 %v3385, 0.0
      %v3450 = vmax.f32 %v3386, 0.0
      %v3451 = vmax.f32 %v3387, 0.0
      %v3452 = vmax.f32 %v3388, 0.0
      %v3453 = vmax.f32 %v3389, 0.0
      %v3454 = vmax.f32 %v3390, 0.0
      %v3455 = vmax.f32 %v3391, 0.0
      %v3456 = vmax.f32 %v3392, 0.0
      %v3457 = vmax.f32 %v3393, 0.0
      %v3458 = vmax.f32 %v3394, 0.0
      %v3459 = vmax.f32 %v3395, 0.0
      %v3460 = vmax.f32 %v3396, 0.0
      %v3461 = vmax.f32 %v3397, 0.0
      %v3462 = vmax.f32 %v3398, 0.0
      %v3463 = vmax.f32 %v3399, 0.0
      %v3464 = vmax.f32 %v3400, 0.0
      %v3465 = vmax.f32 %v3401, 0.0
      %v3466 = vld [vmem:[%s8] sm:$0xff]
      %v3467 = vld [vmem:[%s8 + $0x8] sm:$0xff]
      %v3468 = vld [vmem:[%s8 + $0x10] sm:$0xff]
      %v3469 = vld [vmem:[%s8 + $0x18] sm:$0xff]
      %v3470 = vld [vmem:[%s9] sm:$0xff]
      %v3471 = vld [vmem:[%s9 + $0x8] sm:$0xff]
      %v3472 = vld [vmem:[%s9 + $0x10] sm:$0xff]
      %v3473 = vld [vmem:[%s9 + $0x18] sm:$0xff]
      %3475 = vset.pattern.permute.xlu0 0
      %3476 = vperm.xlu0 %3475, %v3470
      %v3477 = vpop.permute.xlu0 %3476
      %3480 = vset.pattern.permute.xlu0 0
      %3481 = vperm.xlu0 %3480, %v3471
      %v3482 = vpop.permute.xlu0 %3481
      %3485 = vset.pattern.permute.xlu0 0
      %3486 = vperm.xlu0 %3485, %v3472
      %v3487 = vpop.permute.xlu0 %3486
      %3490 = vset.pattern.permute.xlu0 0
      %3491 = vperm.xlu0 %3490, %v3473
      %v3492 = vpop.permute.xlu0 %3491
      %v3495 = vsel %vm1421, %v3466, 0
      %v3498 = vsel %vm1421, %v3467, 0
      %v3501 = vsel %vm1421, %v3468, 0
      %v3504 = vsel %vm1421, %v3469, 0
      %3506 = vmatprep.subr.mxu0 %v3403
      %3507 = vmatpush1.msra.mxu0 %v3402
      %3508 = vmatprep.subr.mxu0 %v3419
      %3509 = vmatpush1.msra.mxu0 %v3418
      %3510 = vmatprep.subr.mxu0 %v3435
      %3511 = vmatpush1.msra.mxu0 %v3434
      %3512 = vmatprep.subr.mxu0 %v3451
      %3513 = vmatpush1.msra.mxu0 %v3450
      %3514 = vmatprep.subr.mxu0 0.0
      %3515 = vmatpush1.msra.mxu0 0.0
      %3516 = vmatprep.subr.mxu0 0.0
      %3517 = vmatpush1.msra.mxu0 0.0
      %3518 = vmatprep.subr.mxu0 0.0
      %3519 = vmatpush1.msra.mxu0 0.0
      %3520 = vmatprep.subr.mxu0 0.0
      %3521 = vmatpush1.msra.mxu0 0.0
      %3522 = vmatprep.subr.mxu0 0.0
      %3523 = vmatpush1.msra.mxu0 0.0
      %3524 = vmatprep.subr.mxu0 0.0
      %3525 = vmatpush1.msra.mxu0 0.0
      %3526 = vmatprep.subr.mxu0 0.0
      %3527 = vmatpush1.msra.mxu0 0.0
      %3528 = vmatprep.subr.mxu0 0.0
      %3529 = vmatpush1.msra.mxu0 0.0
      %3530 = vmatprep.subr.mxu0 0.0
      %3531 = vmatpush1.msra.mxu0 0.0
      %3532 = vmatprep.subr.mxu0 0.0
      %3533 = vmatpush1.msra.mxu0 0.0
      %3534 = vmatprep.subr.mxu0 0.0
      %3535 = vmatpush1.msra.mxu0 0.0
      %3536 = vmatprep.subr.mxu0 0.0
      %3537 = vmatpush1.msra.mxu0 0.0
      %3538 = vmatprep.subr.mxu0 0.0
      %3539 = vmatpush1.msra.mxu0 0.0
      %3540 = vmatprep.subr.mxu0 0.0
      %3541 = vmatpush1.msra.mxu0 0.0
      %3542 = vmatprep.subr.mxu0 0.0
      %3543 = vmatpush1.msra.mxu0 0.0
      %3544 = vmatprep.subr.mxu0 0.0
      %3545 = vmatpush1.msra.mxu0 0.0
      %3546 = vmatprep.subr.mxu0 0.0
      %3547 = vmatpush1.msra.mxu0 0.0
      %3548 = vmatprep.subr.mxu0 0.0
      %3549 = vmatpush1.msra.mxu0 0.0
      %3550 = vmatprep.subr.mxu0 0.0
      %3551 = vmatpush1.msra.mxu0 0.0
      %3552 = vmatprep.subr.mxu0 0.0
      %3553 = vmatpush1.msra.mxu0 0.0
      %3554 = vmatprep.subr.mxu0 0.0
      %3555 = vmatpush1.msra.mxu0 0.0
      %3556 = vmatprep.subr.mxu0 0.0
      %3557 = vmatpush1.msra.mxu0 0.0
      %3558 = vmatprep.subr.mxu0 0.0
      %3559 = vmatpush1.msra.mxu0 0.0
      %3560 = vmatprep.subr.mxu0 0.0
      %3561 = vmatpush1.msra.mxu0 0.0
      %3562 = vmatprep.subr.mxu0 0.0
      %3563 = vmatpush1.msra.mxu0 0.0
      %3564 = vmatprep.subr.mxu0 0.0
      %3565 = vmatpush1.msra.mxu0 0.0
      %3566 = vmatprep.subr.mxu0 0.0
      %3567 = vmatpush1.msra.mxu0 0.0
      %3568 = vmatprep.subr.mxu0 0.0
      %3569 = vmatpush1.msra.mxu0 0.0
      %3570 = vmatprep.mubr.f32.mxu0 0.0
      %3571 = vmatmul.mubr.f32.gmra.mrb[0].mxu0 %v3495
      %v3572 = vpop.f32.mrb[0].mxu0
      %v3573 = vadd.f32 %v3477, %v3572
      %v3574 = vpop.f32.mrb[0].mxu0
      %v3575 = vadd.f32 %v3477, %v3574
      %3576 = vmatprep.mubr.f32.mxu0 0.0
      %3577 = vmatmul.mubr.f32.gmra.mrb[0].mxu0 %v3498
      %v3578 = vpop.f32.mrb[0].mxu0
      %v3579 = vadd.f32 %v3482, %v3578
      %v3580 = vpop.f32.mrb[0].mxu0
      %v3581 = vadd.f32 %v3482, %v3580
      %3582 = vmatprep.mubr.f32.mxu0 0.0
      %3583 = vmatmul.mubr.f32.gmra.mrb[0].mxu0 %v3501
      %v3584 = vpop.f32.mrb[0].mxu0
      %v3585 = vadd.f32 %v3487, %v3584
      %v3586 = vpop.f32.mrb[0].mxu0
      %v3587 = vadd.f32 %v3487, %v3586
      %3588 = vmatprep.mubr.f32.mxu0 0.0
      %3589 = vmatmul.mubr.f32.gmra.mrb[0].mxu0 %v3504
      %v3590 = vpop.f32.mrb[0].mxu0
      %v3591 = vadd.f32 %v3492, %v3590
      %v3592 = vpop.f32.mrb[0].mxu0
      %v3593 = vadd.f32 %v3492, %v3592
      %3594 = vdwg.mxu0
      %3595 = vmatprep.subr.mxu0 %v3405
      %3596 = vmatpush1.msra.mxu0 %v3404
      %3597 = vmatprep.subr.mxu0 %v3421
      %3598 = vmatpush1.msra.mxu0 %v3420
      %3599 = vmatprep.subr.mxu0 %v3437
      %3600 = vmatpush1.msra.mxu0 %v3436
      %3601 = vmatprep.subr.mxu0 %v3453
      %3602 = vmatpush1.msra.mxu0 %v3452
      %3603 = vmatprep.subr.mxu0 0.0
      %3604 = vmatpush1.msra.mxu0 0.0
      %3605 = vmatprep.subr.mxu0 0.0
      %3606 = vmatpush1.msra.mxu0 0.0
      %3607 = vmatprep.subr.mxu0 0.0
      %3608 = vmatpush1.msra.mxu0 0.0
      %3609 = vmatprep.subr.mxu0 0.0
      %3610 = vmatpush1.msra.mxu0 0.0
      %3611 = vmatprep.subr.mxu0 0.0
      %3612 = vmatpush1.msra.mxu0 0.0
      %3613 = vmatprep.subr.mxu0 0.0
      %3614 = vmatpush1.msra.mxu0 0.0
      %3615 = vmatprep.subr.mxu0 0.0
      %3616 = vmatpush1.msra.mxu0 0.0
      %3617 = vmatprep.subr.mxu0 0.0
      %3618 = vmatpush1.msra.mxu0 0.0
      %3619 = vmatprep.subr.mxu0 0.0
      %3620 = vmatpush1.msra.mxu0 0.0
      %3621 = vmatprep.subr.mxu0 0.0
      %3622 = vmatpush1.msra.mxu0 0.0
      %3623 = vmatprep.subr.mxu0 0.0
      %3624 = vmatpush1.msra.mxu0 0.0
      %3625 = vmatprep.subr.mxu0 0.0
      %3626 = vmatpush1.msra.mxu0 0.0
      %3627 = vmatprep.subr.mxu0 0.0
      %3628 = vmatpush1.msra.mxu0 0.0
      %3629 = vmatprep.subr.mxu0 0.0
      %3630 = vmatpush1.msra.mxu0 0.0
      %3631 = vmatprep.subr.mxu0 0.0
      %3632 = vmatpush1.msra.mxu0 0.0
      %3633 = vmatprep.subr.mxu0 0.0
      %3634 = vmatpush1.msra.mxu0 0.0
      %3635 = vmatprep.subr.mxu0 0.0
      %3636 = vmatpush1.msra.mxu0 0.0
      %3637 = vmatprep.subr.mxu0 0.0
      %3638 = vmatpush1.msra.mxu0 0.0
      %3639 = vmatprep.subr.mxu0 0.0
      %3640 = vmatpush1.msra.mxu0 0.0
      %3641 = vmatprep.subr.mxu0 0.0
      %3642 = vmatpush1.msra.mxu0 0.0
      %3643 = vmatprep.subr.mxu0 0.0
      %3644 = vmatpush1.msra.mxu0 0.0
      %3645 = vmatprep.subr.mxu0 0.0
      %3646 = vmatpush1.msra.mxu0 0.0
      %3647 = vmatprep.subr.mxu0 0.0
      %3648 = vmatpush1.msra.mxu0 0.0
      %3649 = vmatprep.subr.mxu0 0.0
      %3650 = vmatpush1.msra.mxu0 0.0
      %3651 = vmatprep.subr.mxu0 0.0
      %3652 = vmatpush1.msra.mxu0 0.0
      %3653 = vmatprep.subr.mxu0 0.0
      %3654 = vmatpush1.msra.mxu0 0.0
      %3655 = vmatprep.subr.mxu0 0.0
      %3656 = vmatpush1.msra.mxu0 0.0
      %3657 = vmatprep.subr.mxu0 0.0
      %3658 = vmatpush1.msra.mxu0 0.0
      %3659 = vmatprep.mubr.f32.mxu0 0.0
      %3660 = vmatmul.mubr.f32.gmra.mrb[0].mxu0 %v3495
      %v3661 = vpop.f32.mrb[0].mxu0
      %v3662 = vadd.f32 %v3477, %v3661
      %v3663 = vpop.f32.mrb[0].mxu0
      %v3664 = vadd.f32 %v3477, %v3663
      %3665 = vmatprep.mubr.f32.mxu0 0.0
      %3666 = vmatmul.mubr.f32.gmra.mrb[0].mxu0 %v3498
      %v3667 = vpop.f32.mrb[0].mxu0
      %v3668 = vadd.f32 %v3482, %v3667
      %v3669 = vpop.f32.mrb[0].mxu0
      %v3670 = vadd.f32 %v3482, %v3669
      %3671 = vmatprep.mubr.f32.mxu0 0.0
      %3672 = vmatmul.mubr.f32.gmra.mrb[0].mxu0 %v3501
      %v3673 = vpop.f32.mrb[0].mxu0
      %v3674 = vadd.f32 %v3487, %v3673
      %v3675 = vpop.f32.mrb[0].mxu0
      %v3676 = vadd.f32 %v3487, %v3675
      %3677 = vmatprep.mubr.f32.mxu0 0.0
      %3678 = vmatmul.mubr.f32.gmra.mrb[0].mxu0 %v3504
      %v3679 = vpop.f32.mrb[0].mxu0
      %v3680 = vadd.f32 %v3492, %v3679
      %v3681 = vpop.f32.mrb[0].mxu0
      %v3682 = vadd.f32 %v3492, %v3681
      %3683 = vdwg.mxu0
      %3684 = vmatprep.subr.mxu0 %v3407
      %3685 = vmatpush1.msra.mxu0 %v3406
      %3686 = vmatprep.subr.mxu0 %v3423
      %3687 = vmatpush1.msra.mxu0 %v3422
      %3688 = vmatprep.subr.mxu0 %v3439
      %3689 = vmatpush1.msra.mxu0 %v3438
      %3690 = vmatprep.subr.mxu0 %v3455
      %3691 = vmatpush1.msra.mxu0 %v3454
      %3692 = vmatprep.subr.mxu0 0.0
      %3693 = vmatpush1.msra.mxu0 0.0
      %3694 = vmatprep.subr.mxu0 0.0
      %3695 = vmatpush1.msra.mxu0 0.0
      %3696 = vmatprep.subr.mxu0 0.0
      %3697 = vmatpush1.msra.mxu0 0.0
      %3698 = vmatprep.subr.mxu0 0.0
      %3699 = vmatpush1.msra.mxu0 0.0
      %3700 = vmatprep.subr.mxu0 0.0
      %3701 = vmatpush1.msra.mxu0 0.0
      %3702 = vmatprep.subr.mxu0 0.0
      %3703 = vmatpush1.msra.mxu0 0.0
      %3704 = vmatprep.subr.mxu0 0.0
      %3705 = vmatpush1.msra.mxu0 0.0
      %3706 = vmatprep.subr.mxu0 0.0
      %3707 = vmatpush1.msra.mxu0 0.0
      %3708 = vmatprep.subr.mxu0 0.0
      %3709 = vmatpush1.msra.mxu0 0.0
      %3710 = vmatprep.subr.mxu0 0.0
      %3711 = vmatpush1.msra.mxu0 0.0
      %3712 = vmatprep.subr.mxu0 0.0
      %3713 = vmatpush1.msra.mxu0 0.0
      %3714 = vmatprep.subr.mxu0 0.0
      %3715 = vmatpush1.msra.mxu0 0.0
      %3716 = vmatprep.subr.mxu0 0.0
      %3717 = vmatpush1.msra.mxu0 0.0
      %3718 = vmatprep.subr.mxu0 0.0
      %3719 = vmatpush1.msra.mxu0 0.0
      %3720 = vmatprep.subr.mxu0 0.0
      %3721 = vmatpush1.msra.mxu0 0.0
      %3722 = vmatprep.subr.mxu0 0.0
      %3723 = vmatpush1.msra.mxu0 0.0
      %3724 = vmatprep.subr.mxu0 0.0
      %3725 = vmatpush1.msra.mxu0 0.0
      %3726 = vmatprep.subr.mxu0 0.0
      %3727 = vmatpush1.msra.mxu0 0.0
      %3728 = vmatprep.subr.mxu0 0.0
      %3729 = vmatpush1.msra.mxu0 0.0
      %3730 = vmatprep.subr.mxu0 0.0
      %3731 = vmatpush1.msra.mxu0 0.0
      %3732 = vmatprep.subr.mxu0 0.0
      %3733 = vmatpush1.msra.mxu0 0.0
      %3734 = vmatprep.subr.mxu0 0.0
      %3735 = vmatpush1.msra.mxu0 0.0
      %3736 = vmatprep.subr.mxu0 0.0
      %3737 = vmatpush1.msra.mxu0 0.0
      %3738 = vmatprep.subr.mxu0 0.0
      %3739 = vmatpush1.msra.mxu0 0.0
      %3740 = vmatprep.subr.mxu0 0.0
      %3741 = vmatpush1.msra.mxu0 0.0
      %3742 = vmatprep.subr.mxu0 0.0
      %3743 = vmatpush1.msra.mxu0 0.0
      %3744 = vmatprep.subr.mxu0 0.0
      %3745 = vmatpush1.msra.mxu0 0.0
      %3746 = vmatprep.subr.mxu0 0.0
      %3747 = vmatpush1.msra.mxu0 0.0
      %3748 = vmatprep.mubr.f32.mxu0 0.0
      %3749 = vmatmul.mubr.f32.gmra.mrb[0].mxu0 %v3495
      %v3750 = vpop.f32.mrb[0].mxu0
      %v3751 = vadd.f32 %v3477, %v3750
      %v3752 = vpop.f32.mrb[0].mxu0
      %v3753 = vadd.f32 %v3477, %v3752
      %3754 = vmatprep.mubr.f32.mxu0 0.0
      %3755 = vmatmul.mubr.f32.gmra.mrb[0].mxu0 %v3498
      %v3756 = vpop.f32.mrb[0].mxu0
      %v3757 = vadd.f32 %v3482, %v3756
      %v3758 = vpop.f32.mrb[0].mxu0
      %v3759 = vadd.f32 %v3482, %v3758
      %3760 = vmatprep.mubr.f32.mxu0 0.0
      %3761 = vmatmul.mubr.f32.gmra.mrb[0].mxu0 %v3501
      %v3762 = vpop.f32.mrb[0].mxu0
      %v3763 = vadd.f32 %v3487, %v3762
      %v3764 = vpop.f32.mrb[0].mxu0
      %v3765 = vadd.f32 %v3487, %v3764
      %3766 = vmatprep.mubr.f32.mxu0 0.0
      %3767 = vmatmul.mubr.f32.gmra.mrb[0].mxu0 %v3504
      %v3768 = vpop.f32.mrb[0].mxu0
      %v3769 = vadd.f32 %v3492, %v3768
      %v3770 = vpop.f32.mrb[0].mxu0
      %v3771 = vadd.f32 %v3492, %v3770
      %3772 = vdwg.mxu0
      %3773 = vmatprep.subr.mxu0 %v3409
      %3774 = vmatpush1.msra.mxu0 %v3408
      %3775 = vmatprep.subr.mxu0 %v3425
      %3776 = vmatpush1.msra.mxu0 %v3424
      %3777 = vmatprep.subr.mxu0 %v3441
      %3778 = vmatpush1.msra.mxu0 %v3440
      %3779 = vmatprep.subr.mxu0 %v3457
      %3780 = vmatpush1.msra.mxu0 %v3456
      %3781 = vmatprep.subr.mxu0 0.0
      %3782 = vmatpush1.msra.mxu0 0.0
      %3783 = vmatprep.subr.mxu0 0.0
      %3784 = vmatpush1.msra.mxu0 0.0
      %3785 = vmatprep.subr.mxu0 0.0
      %3786 = vmatpush1.msra.mxu0 0.0
      %3787 = vmatprep.subr.mxu0 0.0
      %3788 = vmatpush1.msra.mxu0 0.0
      %3789 = vmatprep.subr.mxu0 0.0
      %3790 = vmatpush1.msra.mxu0 0.0
      %3791 = vmatprep.subr.mxu0 0.0
      %3792 = vmatpush1.msra.mxu0 0.0
      %3793 = vmatprep.subr.mxu0 0.0
      %3794 = vmatpush1.msra.mxu0 0.0
      %3795 = vmatprep.subr.mxu0 0.0
      %3796 = vmatpush1.msra.mxu0 0.0
      %3797 = vmatprep.subr.mxu0 0.0
      %3798 = vmatpush1.msra.mxu0 0.0
      %3799 = vmatprep.subr.mxu0 0.0
      %3800 = vmatpush1.msra.mxu0 0.0
      %3801 = vmatprep.subr.mxu0 0.0
      %3802 = vmatpush1.msra.mxu0 0.0
      %3803 = vmatprep.subr.mxu0 0.0
      %3804 = vmatpush1.msra.mxu0 0.0
      %3805 = vmatprep.subr.mxu0 0.0
      %3806 = vmatpush1.msra.mxu0 0.0
      %3807 = vmatprep.subr.mxu0 0.0
      %3808 = vmatpush1.msra.mxu0 0.0
      %3809 = vmatprep.subr.mxu0 0.0
      %3810 = vmatpush1.msra.mxu0 0.0
      %3811 = vmatprep.subr.mxu0 0.0
      %3812 = vmatpush1.msra.mxu0 0.0
      %3813 = vmatprep.subr.mxu0 0.0
      %3814 = vmatpush1.msra.mxu0 0.0
      %3815 = vmatprep.subr.mxu0 0.0
      %3816 = vmatpush1.msra.mxu0 0.0
      %3817 = vmatprep.subr.mxu0 0.0
      %3818 = vmatpush1.msra.mxu0 0.0
      %3819 = vmatprep.subr.mxu0 0.0
      %3820 = vmatpush1.msra.mxu0 0.0
      %3821 = vmatprep.subr.mxu0 0.0
      %3822 = vmatpush1.msra.mxu0 0.0
      %3823 = vmatprep.subr.mxu0 0.0
      %3824 = vmatpush1.msra.mxu0 0.0
      %3825 = vmatprep.subr.mxu0 0.0
      %3826 = vmatpush1.msra.mxu0 0.0
      %3827 = vmatprep.subr.mxu0 0.0
      %3828 = vmatpush1.msra.mxu0 0.0
      %3829 = vmatprep.subr.mxu0 0.0
      %3830 = vmatpush1.msra.mxu0 0.0
      %3831 = vmatprep.subr.mxu0 0.0
      %3832 = vmatpush1.msra.mxu0 0.0
      %3833 = vmatprep.subr.mxu0 0.0
      %3834 = vmatpush1.msra.mxu0 0.0
      %3835 = vmatprep.subr.mxu0 0.0
      %3836 = vmatpush1.msra.mxu0 0.0
      %3837 = vmatprep.mubr.f32.mxu0 0.0
      %3838 = vmatmul.mubr.f32.gmra.mrb[0].mxu0 %v3495
      %v3839 = vpop.f32.mrb[0].mxu0
      %v3840 = vadd.f32 %v3477, %v3839
      %v3841 = vpop.f32.mrb[0].mxu0
      %v3842 = vadd.f32 %v3477, %v3841
      %3843 = vmatprep.mubr.f32.mxu0 0.0
      %3844 = vmatmul.mubr.f32.gmra.mrb[0].mxu0 %v3498
      %v3845 = vpop.f32.mrb[0].mxu0
      %v3846 = vadd.f32 %v3482, %v3845
      %v3847 = vpop.f32.mrb[0].mxu0
      %v3848 = vadd.f32 %v3482, %v3847
      %3849 = vmatprep.mubr.f32.mxu0 0.0
      %3850 = vmatmul.mubr.f32.gmra.mrb[0].mxu0 %v3501
      %v3851 = vpop.f32.mrb[0].mxu0
      %v3852 = vadd.f32 %v3487, %v3851
      %v3853 = vpop.f32.mrb[0].mxu0
      %v3854 = vadd.f32 %v3487, %v3853
      %3855 = vmatprep.mubr.f32.mxu0 0.0
      %3856 = vmatmul.mubr.f32.gmra.mrb[0].mxu0 %v3504
      %v3857 = vpop.f32.mrb[0].mxu0
      %v3858 = vadd.f32 %v3492, %v3857
      %v3859 = vpop.f32.mrb[0].mxu0
      %v3860 = vadd.f32 %v3492, %v3859
      %3861 = vdwg.mxu0
      %3862 = vmatprep.subr.mxu0 %v3411
      %3863 = vmatpush1.msra.mxu0 %v3410
      %3864 = vmatprep.subr.mxu0 %v3427
      %3865 = vmatpush1.msra.mxu0 %v3426
      %3866 = vmatprep.subr.mxu0 %v3443
      %3867 = vmatpush1.msra.mxu0 %v3442
      %3868 = vmatprep.subr.mxu0 %v3459
      %3869 = vmatpush1.msra.mxu0 %v3458
      %3870 = vmatprep.subr.mxu0 0.0
      %3871 = vmatpush1.msra.mxu0 0.0
      %3872 = vmatprep.subr.mxu0 0.0
      %3873 = vmatpush1.msra.mxu0 0.0
      %3874 = vmatprep.subr.mxu0 0.0
      %3875 = vmatpush1.msra.mxu0 0.0
      %3876 = vmatprep.subr.mxu0 0.0
      %3877 = vmatpush1.msra.mxu0 0.0
      %3878 = vmatprep.subr.mxu0 0.0
      %3879 = vmatpush1.msra.mxu0 0.0
      %3880 = vmatprep.subr.mxu0 0.0
      %3881 = vmatpush1.msra.mxu0 0.0
      %3882 = vmatprep.subr.mxu0 0.0
      %3883 = vmatpush1.msra.mxu0 0.0
      %3884 = vmatprep.subr.mxu0 0.0
      %3885 = vmatpush1.msra.mxu0 0.0
      %3886 = vmatprep.subr.mxu0 0.0
      %3887 = vmatpush1.msra.mxu0 0.0
      %3888 = vmatprep.subr.mxu0 0.0
      %3889 = vmatpush1.msra.mxu0 0.0
      %3890 = vmatprep.subr.mxu0 0.0
      %3891 = vmatpush1.msra.mxu0 0.0
      %3892 = vmatprep.subr.mxu0 0.0
      %3893 = vmatpush1.msra.mxu0 0.0
      %3894 = vmatprep.subr.mxu0 0.0
      %3895 = vmatpush1.msra.mxu0 0.0
      %3896 = vmatprep.subr.mxu0 0.0
      %3897 = vmatpush1.msra.mxu0 0.0
      %3898 = vmatprep.subr.mxu0 0.0
      %3899 = vmatpush1.msra.mxu0 0.0
      %3900 = vmatprep.subr.mxu0 0.0
      %3901 = vmatpush1.msra.mxu0 0.0
      %3902 = vmatprep.subr.mxu0 0.0
      %3903 = vmatpush1.msra.mxu0 0.0
      %3904 = vmatprep.subr.mxu0 0.0
      %3905 = vmatpush1.msra.mxu0 0.0
      %3906 = vmatprep.subr.mxu0 0.0
      %3907 = vmatpush1.msra.mxu0 0.0
      %3908 = vmatprep.subr.mxu0 0.0
      %3909 = vmatpush1.msra.mxu0 0.0
      %3910 = vmatprep.subr.mxu0 0.0
      %3911 = vmatpush1.msra.mxu0 0.0
      %3912 = vmatprep.subr.mxu0 0.0
      %3913 = vmatpush1.msra.mxu0 0.0
      %3914 = vmatprep.subr.mxu0 0.0
      %3915 = vmatpush1.msra.mxu0 0.0
      %3916 = vmatprep.subr.mxu0 0.0
      %3917 = vmatpush1.msra.mxu0 0.0
      %3918 = vmatprep.subr.mxu0 0.0
      %3919 = vmatpush1.msra.mxu0 0.0
      %3920 = vmatprep.subr.mxu0 0.0
      %3921 = vmatpush1.msra.mxu0 0.0
      %3922 = vmatprep.subr.mxu0 0.0
      %3923 = vmatpush1.msra.mxu0 0.0
      %3924 = vmatprep.subr.mxu0 0.0
      %3925 = vmatpush1.msra.mxu0 0.0
      %3926 = vmatprep.mubr.f32.mxu0 0.0
      %3927 = vmatmul.mubr.f32.gmra.mrb[0].mxu0 %v3495
      %v3928 = vpop.f32.mrb[0].mxu0
      %v3929 = vadd.f32 %v3477, %v3928
      %v3930 = vpop.f32.mrb[0].mxu0
      %v3931 = vadd.f32 %v3477, %v3930
      %3932 = vmatprep.mubr.f32.mxu0 0.0
      %3933 = vmatmul.mubr.f32.gmra.mrb[0].mxu0 %v3498
      %v3934 = vpop.f32.mrb[0].mxu0
      %v3935 = vadd.f32 %v3482, %v3934
      %v3936 = vpop.f32.mrb[0].mxu0
      %v3937 = vadd.f32 %v3482, %v3936
      %3938 = vmatprep.mubr.f32.mxu0 0.0
      %3939 = vmatmul.mubr.f32.gmra.mrb[0].mxu0 %v3501
      %v3940 = vpop.f32.mrb[0].mxu0
      %v3941 = vadd.f32 %v3487, %v3940
      %v3942 = vpop.f32.mrb[0].mxu0
      %v3943 = vadd.f32 %v3487, %v3942
      %3944 = vmatprep.mubr.f32.mxu0 0.0
      %3945 = vmatmul.mubr.f32.gmra.mrb[0].mxu0 %v3504
      %v3946 = vpop.f32.mrb[0].mxu0
      %v3947 = vadd.f32 %v3492, %v3946
      %v3948 = vpop.f32.mrb[0].mxu0
      %v3949 = vadd.f32 %v3492, %v3948
      %3950 = vdwg.mxu0
      %3951 = vmatprep.subr.mxu0 %v3413
      %3952 = vmatpush1.msra.mxu0 %v3412
      %3953 = vmatprep.subr.mxu0 %v3429
      %3954 = vmatpush1.msra.mxu0 %v3428
      %3955 = vmatprep.subr.mxu0 %v3445
      %3956 = vmatpush1.msra.mxu0 %v3444
      %3957 = vmatprep.subr.mxu0 %v3461
      %3958 = vmatpush1.msra.mxu0 %v3460
      %3959 = vmatprep.subr.mxu0 0.0
      %3960 = vmatpush1.msra.mxu0 0.0
      %3961 = vmatprep.subr.mxu0 0.0
      %3962 = vmatpush1.msra.mxu0 0.0
      %3963 = vmatprep.subr.mxu0 0.0
      %3964 = vmatpush1.msra.mxu0 0.0
      %3965 = vmatprep.subr.mxu0 0.0
      %3966 = vmatpush1.msra.mxu0 0.0
      %3967 = vmatprep.subr.mxu0 0.0
      %3968 = vmatpush1.msra.mxu0 0.0
      %3969 = vmatprep.subr.mxu0 0.0
      %3970 = vmatpush1.msra.mxu0 0.0
      %3971 = vmatprep.subr.mxu0 0.0
      %3972 = vmatpush1.msra.mxu0 0.0
      %3973 = vmatprep.subr.mxu0 0.0
      %3974 = vmatpush1.msra.mxu0 0.0
      %3975 = vmatprep.subr.mxu0 0.0
      %3976 = vmatpush1.msra.mxu0 0.0
      %3977 = vmatprep.subr.mxu0 0.0
      %3978 = vmatpush1.msra.mxu0 0.0
      %3979 = vmatprep.subr.mxu0 0.0
      %3980 = vmatpush1.msra.mxu0 0.0
      %3981 = vmatprep.subr.mxu0 0.0
      %3982 = vmatpush1.msra.mxu0 0.0
      %3983 = vmatprep.subr.mxu0 0.0
      %3984 = vmatpush1.msra.mxu0 0.0
      %3985 = vmatprep.subr.mxu0 0.0
      %3986 = vmatpush1.msra.mxu0 0.0
      %3987 = vmatprep.subr.mxu0 0.0
      %3988 = vmatpush1.msra.mxu0 0.0
      %3989 = vmatprep.subr.mxu0 0.0
      %3990 = vmatpush1.msra.mxu0 0.0
      %3991 = vmatprep.subr.mxu0 0.0
      %3992 = vmatpush1.msra.mxu0 0.0
      %3993 = vmatprep.subr.mxu0 0.0
      %3994 = vmatpush1.msra.mxu0 0.0
      %3995 = vmatprep.subr.mxu0 0.0
      %3996 = vmatpush1.msra.mxu0 0.0
      %3997 = vmatprep.subr.mxu0 0.0
      %3998 = vmatpush1.msra.mxu0 0.0
      %3999 = vmatprep.subr.mxu0 0.0
      %4000 = vmatpush1.msra.mxu0 0.0
      %4001 = vmatprep.subr.mxu0 0.0
      %4002 = vmatpush1.msra.mxu0 0.0
      %4003 = vmatprep.subr.mxu0 0.0
      %4004 = vmatpush1.msra.mxu0 0.0
      %4005 = vmatprep.subr.mxu0 0.0
      %4006 = vmatpush1.msra.mxu0 0.0
      %4007 = vmatprep.subr.mxu0 0.0
      %4008 = vmatpush1.msra.mxu0 0.0
      %4009 = vmatprep.subr.mxu0 0.0
      %4010 = vmatpush1.msra.mxu0 0.0
      %4011 = vmatprep.subr.mxu0 0.0
      %4012 = vmatpush1.msra.mxu0 0.0
      %4013 = vmatprep.subr.mxu0 0.0
      %4014 = vmatpush1.msra.mxu0 0.0
      %4015 = vmatprep.mubr.f32.mxu0 0.0
      %4016 = vmatmul.mubr.f32.gmra.mrb[0].mxu0 %v3495
      %v4017 = vpop.f32.mrb[0].mxu0
      %v4018 = vadd.f32 %v3477, %v4017
      %v4019 = vpop.f32.mrb[0].mxu0
      %v4020 = vadd.f32 %v3477, %v4019
      %4021 = vmatprep.mubr.f32.mxu0 0.0
      %4022 = vmatmul.mubr.f32.gmra.mrb[0].mxu0 %v3498
      %v4023 = vpop.f32.mrb[0].mxu0
      %v4024 = vadd.f32 %v3482, %v4023
      %v4025 = vpop.f32.mrb[0].mxu0
      %v4026 = vadd.f32 %v3482, %v4025
      %4027 = vmatprep.mubr.f32.mxu0 0.0
      %4028 = vmatmul.mubr.f32.gmra.mrb[0].mxu0 %v3501
      %v4029 = vpop.f32.mrb[0].mxu0
      %v4030 = vadd.f32 %v3487, %v4029
      %v4031 = vpop.f32.mrb[0].mxu0
      %v4032 = vadd.f32 %v3487, %v4031
      %4033 = vmatprep.mubr.f32.mxu0 0.0
      %4034 = vmatmul.mubr.f32.gmra.mrb[0].mxu0 %v3504
      %v4035 = vpop.f32.mrb[0].mxu0
      %v4036 = vadd.f32 %v3492, %v4035
      %v4037 = vpop.f32.mrb[0].mxu0
      %v4038 = vadd.f32 %v3492, %v4037
      %4039 = vdwg.mxu0
      %4040 = vmatprep.subr.mxu0 %v3415
      %4041 = vmatpush1.msra.mxu0 %v3414
      %4042 = vmatprep.subr.mxu0 %v3431
      %4043 = vmatpush1.msra.mxu0 %v3430
      %4044 = vmatprep.subr.mxu0 %v3447
      %4045 = vmatpush1.msra.mxu0 %v3446
      %4046 = vmatprep.subr.mxu0 %v3463
      %4047 = vmatpush1.msra.mxu0 %v3462
      %4048 = vmatprep.subr.mxu0 0.0
      %4049 = vmatpush1.msra.mxu0 0.0
      %4050 = vmatprep.subr.mxu0 0.0
      %4051 = vmatpush1.msra.mxu0 0.0
      %4052 = vmatprep.subr.mxu0 0.0
      %4053 = vmatpush1.msra.mxu0 0.0
      %4054 = vmatprep.subr.mxu0 0.0
      %4055 = vmatpush1.msra.mxu0 0.0
      %4056 = vmatprep.subr.mxu0 0.0
      %4057 = vmatpush1.msra.mxu0 0.0
      %4058 = vmatprep.subr.mxu0 0.0
      %4059 = vmatpush1.msra.mxu0 0.0
      %4060 = vmatprep.subr.mxu0 0.0
      %4061 = vmatpush1.msra.mxu0 0.0
      %4062 = vmatprep.subr.mxu0 0.0
      %4063 = vmatpush1.msra.mxu0 0.0
      %4064 = vmatprep.subr.mxu0 0.0
      %4065 = vmatpush1.msra.mxu0 0.0
      %4066 = vmatprep.subr.mxu0 0.0
      %4067 = vmatpush1.msra.mxu0 0.0
      %4068 = vmatprep.subr.mxu0 0.0
      %4069 = vmatpush1.msra.mxu0 0.0
      %4070 = vmatprep.subr.mxu0 0.0
      %4071 = vmatpush1.msra.mxu0 0.0
      %4072 = vmatprep.subr.mxu0 0.0
      %4073 = vmatpush1.msra.mxu0 0.0
      %4074 = vmatprep.subr.mxu0 0.0
      %4075 = vmatpush1.msra.mxu0 0.0
      %4076 = vmatprep.subr.mxu0 0.0
      %4077 = vmatpush1.msra.mxu0 0.0
      %4078 = vmatprep.subr.mxu0 0.0
      %4079 = vmatpush1.msra.mxu0 0.0
      %4080 = vmatprep.subr.mxu0 0.0
      %4081 = vmatpush1.msra.mxu0 0.0
      %4082 = vmatprep.subr.mxu0 0.0
      %4083 = vmatpush1.msra.mxu0 0.0
      %4084 = vmatprep.subr.mxu0 0.0
      %4085 = vmatpush1.msra.mxu0 0.0
      %4086 = vmatprep.subr.mxu0 0.0
      %4087 = vmatpush1.msra.mxu0 0.0
      %4088 = vmatprep.subr.mxu0 0.0
      %4089 = vmatpush1.msra.mxu0 0.0
      %4090 = vmatprep.subr.mxu0 0.0
      %4091 = vmatpush1.msra.mxu0 0.0
      %4092 = vmatprep.subr.mxu0 0.0
      %4093 = vmatpush1.msra.mxu0 0.0
      %4094 = vmatprep.subr.mxu0 0.0
      %4095 = vmatpush1.msra.mxu0 0.0
      %4096 = vmatprep.subr.mxu0 0.0
      %4097 = vmatpush1.msra.mxu0 0.0
      %4098 = vmatprep.subr.mxu0 0.0
      %4099 = vmatpush1.msra.mxu0 0.0
      %4100 = vmatprep.subr.mxu0 0.0
      %4101 = vmatpush1.msra.mxu0 0.0
      %4102 = vmatprep.subr.mxu0 0.0
      %4103 = vmatpush1.msra.mxu0 0.0
      %4104 = vmatprep.mubr.f32.mxu0 0.0
      %4105 = vmatmul.mubr.f32.gmra.mrb[0].mxu0 %v3495
      %v4106 = vpop.f32.mrb[0].mxu0
      %v4107 = vadd.f32 %v3477, %v4106
      %v4108 = vpop.f32.mrb[0].mxu0
      %v4109 = vadd.f32 %v3477, %v4108
      %4110 = vmatprep.mubr.f32.mxu0 0.0
      %4111 = vmatmul.mubr.f32.gmra.mrb[0].mxu0 %v3498
      %v4112 = vpop.f32.mrb[0].mxu0
      %v4113 = vadd.f32 %v3482, %v4112
      %v4114 = vpop.f32.mrb[0].mxu0
      %v4115 = vadd.f32 %v3482, %v4114
      %4116 = vmatprep.mubr.f32.mxu0 0.0
      %4117 = vmatmul.mubr.f32.gmra.mrb[0].mxu0 %v3501
      %v4118 = vpop.f32.mrb[0].mxu0
      %v4119 = vadd.f32 %v3487, %v4118
      %v4120 = vpop.f32.mrb[0].mxu0
      %v4121 = vadd.f32 %v3487, %v4120
      %4122 = vmatprep.mubr.f32.mxu0 0.0
      %4123 = vmatmul.mubr.f32.gmra.mrb[0].mxu0 %v3504
      %v4124 = vpop.f32.mrb[0].mxu0
      %v4125 = vadd.f32 %v3492, %v4124
      %v4126 = vpop.f32.mrb[0].mxu0
      %v4127 = vadd.f32 %v3492, %v4126
      %4128 = vdwg.mxu0
      %4129 = vmatprep.subr.mxu0 %v3417
      %4130 = vmatpush1.msra.mxu0 %v3416
      %4131 = vmatprep.subr.mxu0 %v3433
      %4132 = vmatpush1.msra.mxu0 %v3432
      %4133 = vmatprep.subr.mxu0 %v3449
      %4134 = vmatpush1.msra.mxu0 %v3448
      %4135 = vmatprep.subr.mxu0 %v3465
      %4136 = vmatpush1.msra.mxu0 %v3464
      %4137 = vmatprep.subr.mxu0 0.0
      %4138 = vmatpush1.msra.mxu0 0.0
      %4139 = vmatprep.subr.mxu0 0.0
      %4140 = vmatpush1.msra.mxu0 0.0
      %4141 = vmatprep.subr.mxu0 0.0
      %4142 = vmatpush1.msra.mxu0 0.0
      %4143 = vmatprep.subr.mxu0 0.0
      %4144 = vmatpush1.msra.mxu0 0.0
      %4145 = vmatprep.subr.mxu0 0.0
      %4146 = vmatpush1.msra.mxu0 0.0
      %4147 = vmatprep.subr.mxu0 0.0
      %4148 = vmatpush1.msra.mxu0 0.0
      %4149 = vmatprep.subr.mxu0 0.0
      %4150 = vmatpush1.msra.mxu0 0.0
      %4151 = vmatprep.subr.mxu0 0.0
      %4152 = vmatpush1.msra.mxu0 0.0
      %4153 = vmatprep.subr.mxu0 0.0
      %4154 = vmatpush1.msra.mxu0 0.0
      %4155 = vmatprep.subr.mxu0 0.0
      %4156 = vmatpush1.msra.mxu0 0.0
      %4157 = vmatprep.subr.mxu0 0.0
      %4158 = vmatpush1.msra.mxu0 0.0
      %4159 = vmatprep.subr.mxu0 0.0
      %4160 = vmatpush1.msra.mxu0 0.0
      %4161 = vmatprep.subr.mxu0 0.0
      %4162 = vmatpush1.msra.mxu0 0.0
      %4163 = vmatprep.subr.mxu0 0.0
      %4164 = vmatpush1.msra.mxu0 0.0
      %4165 = vmatprep.subr.mxu0 0.0
      %4166 = vmatpush1.msra.mxu0 0.0
      %4167 = vmatprep.subr.mxu0 0.0
      %4168 = vmatpush1.msra.mxu0 0.0
      %4169 = vmatprep.subr.mxu0 0.0
      %4170 = vmatpush1.msra.mxu0 0.0
      %4171 = vmatprep.subr.mxu0 0.0
      %4172 = vmatpush1.msra.mxu0 0.0
      %4173 = vmatprep.subr.mxu0 0.0
      %4174 = vmatpush1.msra.mxu0 0.0
      %4175 = vmatprep.subr.mxu0 0.0
      %4176 = vmatpush1.msra.mxu0 0.0
      %4177 = vmatprep.subr.mxu0 0.0
      %4178 = vmatpush1.msra.mxu0 0.0
      %4179 = vmatprep.subr.mxu0 0.0
      %4180 = vmatpush1.msra.mxu0 0.0
      %4181 = vmatprep.subr.mxu0 0.0
      %4182 = vmatpush1.msra.mxu0 0.0
      %4183 = vmatprep.subr.mxu0 0.0
      %4184 = vmatpush1.msra.mxu0 0.0
      %4185 = vmatprep.subr.mxu0 0.0
      %4186 = vmatpush1.msra.mxu0 0.0
      %4187 = vmatprep.subr.mxu0 0.0
      %4188 = vmatpush1.msra.mxu0 0.0
      %4189 = vmatprep.subr.mxu0 0.0
      %4190 = vmatpush1.msra.mxu0 0.0
      %4191 = vmatprep.subr.mxu0 0.0
      %4192 = vmatpush1.msra.mxu0 0.0
      %4193 = vmatprep.mubr.f32.mxu0 0.0
      %4194 = vmatmul.mubr.f32.gmra.mrb[0].mxu0 %v3495
      %v4195 = vpop.f32.mrb[0].mxu0
      %v4196 = vadd.f32 %v3477, %v4195
      %v4197 = vpop.f32.mrb[0].mxu0
      %v4198 = vadd.f32 %v3477, %v4197
      %4199 = vmatprep.mubr.f32.mxu0 0.0
      %4200 = vmatmul.mubr.f32.gmra.mrb[0].mxu0 %v3498
      %v4201 = vpop.f32.mrb[0].mxu0
      %v4202 = vadd.f32 %v3482, %v4201
      %v4203 = vpop.f32.mrb[0].mxu0
      %v4204 = vadd.f32 %v3482, %v4203
      %4205 = vmatprep.mubr.f32.mxu0 0.0
      %4206 = vmatmul.mubr.f32.gmra.mrb[0].mxu0 %v3501
      %v4207 = vpop.f32.mrb[0].mxu0
      %v4208 = vadd.f32 %v3487, %v4207
      %v4209 = vpop.f32.mrb[0].mxu0
      %v4210 = vadd.f32 %v3487, %v4209
      %4211 = vmatprep.mubr.f32.mxu0 0.0
      %4212 = vmatmul.mubr.f32.gmra.mrb[0].mxu0 %v3504
      %v4213 = vpop.f32.mrb[0].mxu0
      %v4214 = vadd.f32 %v3492, %v4213
      %v4215 = vpop.f32.mrb[0].mxu0
      %v4216 = vadd.f32 %v3492, %v4215
      %4217 = vdwg.mxu0
      %v4218 = vmax.f32 %v3573, 0.0
      %v4219 = vmax.f32 %v3575, 0.0
      %v4220 = vmax.f32 %v3662, 0.0
      %v4221 = vmax.f32 %v3664, 0.0
      %v4222 = vmax.f32 %v3751, 0.0
      %v4223 = vmax.f32 %v3753, 0.0
      %v4224 = vmax.f32 %v3840, 0.0
      %v4225 = vmax.f32 %v3842, 0.0
      %v4226 = vmax.f32 %v3929, 0.0
      %v4227 = vmax.f32 %v3931, 0.0
      %v4228 = vmax.f32 %v4018, 0.0
      %v4229 = vmax.f32 %v4020, 0.0
      %v4230 = vmax.f32 %v4107, 0.0
      %v4231 = vmax.f32 %v4109, 0.0
      %v4232 = vmax.f32 %v4196, 0.0
      %v4233 = vmax.f32 %v4198, 0.0
      %v4234 = vmax.f32 %v3579, 0.0
      %v4235 = vmax.f32 %v3581, 0.0
      %v4236 = vmax.f32 %v3668, 0.0
      %v4237 = vmax.f32 %v3670, 0.0
      %v4238 = vmax.f32 %v3757, 0.0
      %v4239 = vmax.f32 %v3759, 0.0
      %v4240 = vmax.f32 %v3846, 0.0
      %v4241 = vmax.f32 %v3848, 0.0
      %v4242 = vmax.f32 %v3935, 0.0
      %v4243 = vmax.f32 %v3937, 0.0
      %v4244 = vmax.f32 %v4024, 0.0
      %v4245 = vmax.f32 %v4026, 0.0
      %v4246 = vmax.f32 %v4113, 0.0
      %v4247 = vmax.f32 %v4115, 0.0
      %v4248 = vmax.f32 %v4202, 0.0
      %v4249 = vmax.f32 %v4204, 0.0
      %v4250 = vmax.f32 %v3585, 0.0
      %v4251 = vmax.f32 %v3587, 0.0
      %v4252 = vmax.f32 %v3674, 0.0
      %v4253 = vmax.f32 %v3676, 0.0
      %v4254 = vmax.f32 %v3763, 0.0
      %v4255 = vmax.f32 %v3765, 0.0
      %v4256 = vmax.f32 %v3852, 0.0
      %v4257 = vmax.f32 %v3854, 0.0
      %v4258 = vmax.f32 %v3941, 0.0
      %v4259 = vmax.f32 %v3943, 0.0
      %v4260 = vmax.f32 %v4030, 0.0
      %v4261 = vmax.f32 %v4032, 0.0
      %v4262 = vmax.f32 %v4119, 0.0
      %v4263 = vmax.f32 %v4121, 0.0
      %v4264 = vmax.f32 %v4208, 0.0
      %v4265 = vmax.f32 %v4210, 0.0
      %v4266 = vmax.f32 %v3591, 0.0
      %v4267 = vmax.f32 %v3593, 0.0
      %v4268 = vmax.f32 %v3680, 0.0
      %v4269 = vmax.f32 %v3682, 0.0
      %v4270 = vmax.f32 %v3769, 0.0
      %v4271 = vmax.f32 %v3771, 0.0
      %v4272 = vmax.f32 %v3858, 0.0
      %v4273 = vmax.f32 %v3860, 0.0
      %v4274 = vmax.f32 %v3947, 0.0
      %v4275 = vmax.f32 %v3949, 0.0
      %v4276 = vmax.f32 %v4036, 0.0
      %v4277 = vmax.f32 %v4038, 0.0
      %v4278 = vmax.f32 %v4125, 0.0
      %v4279 = vmax.f32 %v4127, 0.0
      %v4280 = vmax.f32 %v4214, 0.0
      %v4281 = vmax.f32 %v4216, 0.0
      %v4282 = vld [vmem:[%s10] sm:$0xff]
      %v4283 = vld [vmem:[%s10 + $0x8] sm:$0xff]
      %v4284 = vld [vmem:[%s10 + $0x10] sm:$0xff]
      %v4285 = vld [vmem:[%s10 + $0x18] sm:$0xff]
      %v4286 = vld [vmem:[#allocation2] sm:$0x1]
      %4288 = vset.pattern.permute.xlu0 0
      %4289 = vperm.xlu0 %4288, %v4282
      %v4290 = vpop.permute.xlu0 %4289
      %4293 = vset.pattern.permute.xlu0 0
      %4294 = vperm.xlu0 %4293, %v4283
      %v4295 = vpop.permute.xlu0 %4294
      %4298 = vset.pattern.permute.xlu0 0
      %4299 = vperm.xlu0 %4298, %v4284
      %v4300 = vpop.permute.xlu0 %4299
      %4303 = vset.pattern.permute.xlu0 0
      %4304 = vperm.xlu0 %4303, %v4285
      %v4305 = vpop.permute.xlu0 %4304
      %v4307 = vmul.f32 %v4290, %v4218
      %v4308 = vmul.f32 %v4290, %v4219
      %v4309 = vmul.f32 %v4290, %v4220
      %v4310 = vmul.f32 %v4290, %v4221
      %v4311 = vmul.f32 %v4290, %v4222
      %v4312 = vmul.f32 %v4290, %v4223
      %v4313 = vmul.f32 %v4290, %v4224
      %v4314 = vmul.f32 %v4290, %v4225
      %v4315 = vmul.f32 %v4290, %v4226
      %v4316 = vmul.f32 %v4290, %v4227
      %v4317 = vmul.f32 %v4290, %v4228
      %v4318 = vmul.f32 %v4290, %v4229
      %v4319 = vmul.f32 %v4290, %v4230
      %v4320 = vmul.f32 %v4290, %v4231
      %v4321 = vmul.f32 %v4290, %v4232
      %v4322 = vmul.f32 %v4290, %v4233
      %v4323 = vmul.f32 %v4295, %v4234
      %v4324 = vmul.f32 %v4295, %v4235
      %v4325 = vmul.f32 %v4295, %v4236
      %v4326 = vmul.f32 %v4295, %v4237
      %v4327 = vmul.f32 %v4295, %v4238
      %v4328 = vmul.f32 %v4295, %v4239
      %v4329 = vmul.f32 %v4295, %v4240
      %v4330 = vmul.f32 %v4295, %v4241
      %v4331 = vmul.f32 %v4295, %v4242
      %v4332 = vmul.f32 %v4295, %v4243
      %v4333 = vmul.f32 %v4295, %v4244
      %v4334 = vmul.f32 %v4295, %v4245
      %v4335 = vmul.f32 %v4295, %v4246
      %v4336 = vmul.f32 %v4295, %v4247
      %v4337 = vmul.f32 %v4295, %v4248
      %v4338 = vmul.f32 %v4295, %v4249
      %v4339 = vmul.f32 %v4300, %v4250
      %v4340 = vmul.f32 %v4300, %v4251
      %v4341 = vmul.f32 %v4300, %v4252
      %v4342 = vmul.f32 %v4300, %v4253
      %v4343 = vmul.f32 %v4300, %v4254
      %v4344 = vmul.f32 %v4300, %v4255
      %v4345 = vmul.f32 %v4300, %v4256
      %v4346 = vmul.f32 %v4300, %v4257
      %v4347 = vmul.f32 %v4300, %v4258
      %v4348 = vmul.f32 %v4300, %v4259
      %v4349 = vmul.f32 %v4300, %v4260
      %v4350 = vmul.f32 %v4300, %v4261
      %v4351 = vmul.f32 %v4300, %v4262
      %v4352 = vmul.f32 %v4300, %v4263
      %v4353 = vmul.f32 %v4300, %v4264
      %v4354 = vmul.f32 %v4300, %v4265
      %v4355 = vmul.f32 %v4305, %v4266
      %v4356 = vmul.f32 %v4305, %v4267
      %v4357 = vmul.f32 %v4305, %v4268
      %v4358 = vmul.f32 %v4305, %v4269
      %v4359 = vmul.f32 %v4305, %v4270
      %v4360 = vmul.f32 %v4305, %v4271
      %v4361 = vmul.f32 %v4305, %v4272
      %v4362 = vmul.f32 %v4305, %v4273
      %v4363 = vmul.f32 %v4305, %v4274
      %v4364 = vmul.f32 %v4305, %v4275
      %v4365 = vmul.f32 %v4305, %v4276
      %v4366 = vmul.f32 %v4305, %v4277
      %v4367 = vmul.f32 %v4305, %v4278
      %v4368 = vmul.f32 %v4305, %v4279
      %v4369 = vmul.f32 %v4305, %v4280
      %v4370 = vmul.f32 %v4305, %v4281
      %v4371 = vadd.f32 %v4307, %v4323
      %v4372 = vadd.f32 %v4371, %v4339
      %v4373 = vadd.f32 %v4372, %v4355
      %v4374 = vrot.slane %v4373, 4
      %v4375 = vadd.f32 %v4373, %v4374
      %v4376 = vrot.slane %v4375, 2
      %v4377 = vadd.f32 %v4375, %v4376
      %v4378 = vrot.slane %v4377, 1
      %v4379 = vadd.f32 %v4377, %v4378
      %v4380 = vadd.f32 %v4308, %v4324
      %v4381 = vadd.f32 %v4380, %v4340
      %v4382 = vadd.f32 %v4381, %v4356
      %v4383 = vrot.slane %v4382, 4
      %v4384 = vadd.f32 %v4382, %v4383
      %v4385 = vrot.slane %v4384, 2
      %v4386 = vadd.f32 %v4384, %v4385
      %v4387 = vrot.slane %v4386, 1
      %v4388 = vadd.f32 %v4386, %v4387
      %v4389 = vadd.f32 %v4309, %v4325
      %v4390 = vadd.f32 %v4389, %v4341
      %v4391 = vadd.f32 %v4390, %v4357
      %v4392 = vrot.slane %v4391, 4
      %v4393 = vadd.f32 %v4391, %v4392
      %v4394 = vrot.slane %v4393, 2
      %v4395 = vadd.f32 %v4393, %v4394
      %v4396 = vrot.slane %v4395, 1
      %v4397 = vadd.f32 %v4395, %v4396
      %v4398 = vadd.f32 %v4310, %v4326
      %v4399 = vadd.f32 %v4398, %v4342
      %v4400 = vadd.f32 %v4399, %v4358
      %v4401 = vrot.slane %v4400, 4
      %v4402 = vadd.f32 %v4400, %v4401
      %v4403 = vrot.slane %v4402, 2
      %v4404 = vadd.f32 %v4402, %v4403
      %v4405 = vrot.slane %v4404, 1
      %v4406 = vadd.f32 %v4404, %v4405
      %v4407 = vadd.f32 %v4311, %v4327
      %v4408 = vadd.f32 %v4407, %v4343
      %v4409 = vadd.f32 %v4408, %v4359
      %v4410 = vrot.slane %v4409, 4
      %v4411 = vadd.f32 %v4409, %v4410
      %v4412 = vrot.slane %v4411, 2
      %v4413 = vadd.f32 %v4411, %v4412
      %v4414 = vrot.slane %v4413, 1
      %v4415 = vadd.f32 %v4413, %v4414
      %v4416 = vadd.f32 %v4312, %v4328
      %v4417 = vadd.f32 %v4416, %v4344
      %v4418 = vadd.f32 %v4417, %v4360
      %v4419 = vrot.slane %v4418, 4
      %v4420 = vadd.f32 %v4418, %v4419
      %v4421 = vrot.slane %v4420, 2
      %v4422 = vadd.f32 %v4420, %v4421
      %v4423 = vrot.slane %v4422, 1
      %v4424 = vadd.f32 %v4422, %v4423
      %v4425 = vadd.f32 %v4313, %v4329
      %v4426 = vadd.f32 %v4425, %v4345
      %v4427 = vadd.f32 %v4426, %v4361
      %v4428 = vrot.slane %v4427, 4
      %v4429 = vadd.f32 %v4427, %v4428
      %v4430 = vrot.slane %v4429, 2
      %v4431 = vadd.f32 %v4429, %v4430
      %v4432 = vrot.slane %v4431, 1
      %v4433 = vadd.f32 %v4431, %v4432
      %v4434 = vadd.f32 %v4314, %v4330
      %v4435 = vadd.f32 %v4434, %v4346
      %v4436 = vadd.f32 %v4435, %v4362
      %v4437 = vrot.slane %v4436, 4
      %v4438 = vadd.f32 %v4436, %v4437
      %v4439 = vrot.slane %v4438, 2
      %v4440 = vadd.f32 %v4438, %v4439
      %v4441 = vrot.slane %v4440, 1
      %v4442 = vadd.f32 %v4440, %v4441
      %v4443 = vadd.f32 %v4315, %v4331
      %v4444 = vadd.f32 %v4443, %v4347
      %v4445 = vadd.f32 %v4444, %v4363
      %v4446 = vrot.slane %v4445, 4
      %v4447 = vadd.f32 %v4445, %v4446
      %v4448 = vrot.slane %v4447, 2
      %v4449 = vadd.f32 %v4447, %v4448
      %v4450 = vrot.slane %v4449, 1
      %v4451 = vadd.f32 %v4449, %v4450
      %v4452 = vadd.f32 %v4316, %v4332
      %v4453 = vadd.f32 %v4452, %v4348
      %v4454 = vadd.f32 %v4453, %v4364
      %v4455 = vrot.slane %v4454, 4
      %v4456 = vadd.f32 %v4454, %v4455
      %v4457 = vrot.slane %v4456, 2
      %v4458 = vadd.f32 %v4456, %v4457
      %v4459 = vrot.slane %v4458, 1
      %v4460 = vadd.f32 %v4458, %v4459
      %v4461 = vadd.f32 %v4317, %v4333
      %v4462 = vadd.f32 %v4461, %v4349
      %v4463 = vadd.f32 %v4462, %v4365
      %v4464 = vrot.slane %v4463, 4
      %v4465 = vadd.f32 %v4463, %v4464
      %v4466 = vrot.slane %v4465, 2
      %v4467 = vadd.f32 %v4465, %v4466
      %v4468 = vrot.slane %v4467, 1
      %v4469 = vadd.f32 %v4467, %v4468
      %v4470 = vadd.f32 %v4318, %v4334
      %v4471 = vadd.f32 %v4470, %v4350
      %v4472 = vadd.f32 %v4471, %v4366
      %v4473 = vrot.slane %v4472, 4
      %v4474 = vadd.f32 %v4472, %v4473
      %v4475 = vrot.slane %v4474, 2
      %v4476 = vadd.f32 %v4474, %v4475
      %v4477 = vrot.slane %v4476, 1
      %v4478 = vadd.f32 %v4476, %v4477
      %v4479 = vadd.f32 %v4319, %v4335
      %v4480 = vadd.f32 %v4479, %v4351
      %v4481 = vadd.f32 %v4480, %v4367
      %v4482 = vrot.slane %v4481, 4
      %v4483 = vadd.f32 %v4481, %v4482
      %v4484 = vrot.slane %v4483, 2
      %v4485 = vadd.f32 %v4483, %v4484
      %v4486 = vrot.slane %v4485, 1
      %v4487 = vadd.f32 %v4485, %v4486
      %v4488 = vadd.f32 %v4320, %v4336
      %v4489 = vadd.f32 %v4488, %v4352
      %v4490 = vadd.f32 %v4489, %v4368
      %v4491 = vrot.slane %v4490, 4
      %v4492 = vadd.f32 %v4490, %v4491
      %v4493 = vrot.slane %v4492, 2
      %v4494 = vadd.f32 %v4492, %v4493
      %v4495 = vrot.slane %v4494, 1
      %v4496 = vadd.f32 %v4494, %v4495
      %v4497 = vadd.f32 %v4321, %v4337
      %v4498 = vadd.f32 %v4497, %v4353
      %v4499 = vadd.f32 %v4498, %v4369
      %v4500 = vrot.slane %v4499, 4
      %v4501 = vadd.f32 %v4499, %v4500
      %v4502 = vrot.slane %v4501, 2
      %v4503 = vadd.f32 %v4501, %v4502
      %v4504 = vrot.slane %v4503, 1
      %v4505 = vadd.f32 %v4503, %v4504
      %v4506 = vadd.f32 %v4322, %v4338
      %v4507 = vadd.f32 %v4506, %v4354
      %v4508 = vadd.f32 %v4507, %v4370
      %v4509 = vrot.slane %v4508, 4
      %v4510 = vadd.f32 %v4508, %v4509
      %v4511 = vrot.slane %v4510, 2
      %v4512 = vadd.f32 %v4510, %v4511
      %v4513 = vrot.slane %v4512, 1
      %v4514 = vadd.f32 %v4512, %v4513
      %4516 = vset.pattern.permute.xlu0 0
      %4517 = vperm.xlu0 %4516, %v4286
      %v4518 = vpop.permute.xlu0 %4517
      %v4520 = vlaneseq
      %v4521 = vshrl.u32 %v4520, 7
      %v4522 = vsub.s32 0, %v4521
      %v4523 = vrot.slane %v4518, %v4522
      %v4524 = vadd.f32 %v4379, %v4523
      %v4525 = vadd.f32 %v4388, %v4523
      %v4526 = vadd.f32 %v4397, %v4523
      %v4527 = vadd.f32 %v4406, %v4523
      %v4528 = vadd.f32 %v4415, %v4523
      %v4529 = vadd.f32 %v4424, %v4523
      %v4530 = vadd.f32 %v4433, %v4523
      %v4531 = vadd.f32 %v4442, %v4523
      %v4532 = vadd.f32 %v4451, %v4523
      %v4533 = vadd.f32 %v4460, %v4523
      %v4534 = vadd.f32 %v4469, %v4523
      %v4535 = vadd.f32 %v4478, %v4523
      %v4536 = vadd.f32 %v4487, %v4523
      %v4537 = vadd.f32 %v4496, %v4523
      %v4538 = vadd.f32 %v4505, %v4523
      %v4539 = vadd.f32 %v4514, %v4523
      %v4540 = vand.u32 2147483647, %v4524
      %v4541 = vand.u32 2147483647, %v4525
      %v4542 = vand.u32 2147483647, %v4526
      %v4543 = vand.u32 2147483647, %v4527
      %v4544 = vand.u32 2147483647, %v4528
      %v4545 = vand.u32 2147483647, %v4529
      %v4546 = vand.u32 2147483647, %v4530
      %v4547 = vand.u32 2147483647, %v4531
      %v4548 = vand.u32 2147483647, %v4532
      %v4549 = vand.u32 2147483647, %v4533
      %v4550 = vand.u32 2147483647, %v4534
      %v4551 = vand.u32 2147483647, %v4535
      %v4552 = vand.u32 2147483647, %v4536
      %v4553 = vand.u32 2147483647, %v4537
      %v4554 = vand.u32 2147483647, %v4538
      %v4555 = vand.u32 2147483647, %v4539
      %v4572 = vcombine.low %v4540, %v4541
      %v4573 = vcombine.low %v4542, %v4543
      %v4574 = vcombine.low %v4544, %v4545
      %v4575 = vcombine.low %v4546, %v4547
      %v4577 = vunpack.c.l.s4 1966171168
      %v4578 = vunpack.c.0.s8 %v4577
      %v4579 = vlaneseq
      %v4580 = vshrl.u32 %v4579, 7
      %v4581 = vsub.s32 %v4578, %v4580
      %v4582 = vrot.slane %v4572, %v4581
      %v4584 = vunpack.c.l.s4 1966171168
      %v4585 = vunpack.c.0.s8 %v4584
      %v4586 = vlaneseq
      %v4587 = vshrl.u32 %v4586, 7
      %v4588 = vsub.s32 %v4585, %v4587
      %v4589 = vrot.slane %v4573, %v4588
      %v4591 = vunpack.c.l.s4 1966171168
      %v4592 = vunpack.c.0.s8 %v4591
      %v4593 = vlaneseq
      %v4594 = vshrl.u32 %v4593, 7
      %v4595 = vsub.s32 %v4592, %v4594
      %v4596 = vrot.slane %v4574, %v4595
      %v4598 = vunpack.c.l.s4 1966171168
      %v4599 = vunpack.c.0.s8 %v4598
      %v4600 = vlaneseq
      %v4601 = vshrl.u32 %v4600, 7
      %v4602 = vsub.s32 %v4599, %v4601
      %v4603 = vrot.slane %v4575, %v4602
      %v4604 = vcombine.low %v4582, %v4589
      %v4605 = vcombine.low %v4596, %v4603
      %v4607 = vunpack.c.l.s4 1966171168
      %v4608 = vunpack.c.0.s8 %v4607
      %v4609 = vlaneseq
      %v4610 = vshrl.u32 %v4609, 7
      %v4611 = vsub.s32 %v4608, %v4610
      %v4612 = vrot.slane %v4604, %v4611
      %v4614 = vunpack.c.l.s4 1966171168
      %v4615 = vunpack.c.0.s8 %v4614
      %v4616 = vlaneseq
      %v4617 = vshrl.u32 %v4616, 7
      %v4618 = vsub.s32 %v4615, %v4617
      %v4619 = vrot.slane %v4605, %v4618
      %v4620 = vcombine.low %v4612, %v4619
      %v4621 = vcombine.low %v4548, %v4549
      %v4622 = vcombine.low %v4550, %v4551
      %v4623 = vcombine.low %v4552, %v4553
      %v4624 = vcombine.low %v4554, %v4555
      %v4626 = vunpack.c.l.s4 1966171168
      %v4627 = vunpack.c.0.s8 %v4626
      %v4628 = vlaneseq
      %v4629 = vshrl.u32 %v4628, 7
      %v4630 = vsub.s32 %v4627, %v4629
      %v4631 = vrot.slane %v4621, %v4630
      %v4633 = vunpack.c.l.s4 1966171168
      %v4634 = vunpack.c.0.s8 %v4633
      %v4635 = vlaneseq
      %v4636 = vshrl.u32 %v4635, 7
      %v4637 = vsub.s32 %v4634, %v4636
      %v4638 = vrot.slane %v4622, %v4637
      %v4640 = vunpack.c.l.s4 1966171168
      %v4641 = vunpack.c.0.s8 %v4640
      %v4642 = vlaneseq
      %v4643 = vshrl.u32 %v4642, 7
      %v4644 = vsub.s32 %v4641, %v4643
      %v4645 = vrot.slane %v4623, %v4644
      %v4647 = vunpack.c.l.s4 1966171168
      %v4648 = vunpack.c.0.s8 %v4647
      %v4649 = vlaneseq
      %v4650 = vshrl.u32 %v4649, 7
      %v4651 = vsub.s32 %v4648, %v4650
      %v4652 = vrot.slane %v4624, %v4651
      %v4653 = vcombine.low %v4631, %v4638
      %v4654 = vcombine.low %v4645, %v4652
      %v4656 = vunpack.c.l.s4 1966171168
      %v4657 = vunpack.c.0.s8 %v4656
      %v4658 = vlaneseq
      %v4659 = vshrl.u32 %v4658, 7
      %v4660 = vsub.s32 %v4657, %v4659
      %v4661 = vrot.slane %v4653, %v4660
      %v4663 = vunpack.c.l.s4 1966171168
      %v4664 = vunpack.c.0.s8 %v4663
      %v4665 = vlaneseq
      %v4666 = vshrl.u32 %v4665, 7
      %v4667 = vsub.s32 %v4664, %v4666
      %v4668 = vrot.slane %v4654, %v4667
      %v4669 = vcombine.low %v4661, %v4668
      %4672 = vst [vmem:[%s415] sm:$0xff] %v4620
      %4673 = vst [vmem:[%s415 + $0x8] sm:$0xff] %v4669
      %s4674 = smul.u32 16, %s25
      %p4675 = scmp.lt.s32.totalorder %s4674, 31
      %s4676 = scalar_select %p4675, %s4674, 31
      %s4677 = scalar_lea.vmem %s12, %s4676
      // Predicated region
      $region69: #{forward.1} parent=67 // pred_check
        %p4678 = pneg %p300
      $region70: #{forward.1} parent=67 // pred_check_branch
        %4680 = sbr.rel (%p4678) target = $region72
      $region71: #{forward.1} parent=67 // pred_region
        %s4681 = smul.u32 16, %s25
      $region72: #{forward.1} parent=67 // pred_fallthru
        _
    $region68: #{forward.1} parent=5 // pred_fallthru
      _
    %p4682 = scmp.le.s32.totalorder 2, %s20
    // Predicated region
    $region73: #{forward.1} parent=5 // pred_check
      %p4683 = pneg %p4682
    $region74: #{forward.1} parent=5 // pred_check_branch
      %4685 = sbr.rel (%p4683) target = $region76
    $region75: #{forward.1} parent=5 // pred_region
      %s4686 = ssub.s32 %s20, 2
      // Predicated region
      $region77: #{forward.1} parent=75 // pred_check
        %p4687 = pneg %p306
      $region78: #{forward.1} parent=75 // pred_check_branch
        %4689 = sbr.rel (%p4687) target = $region80
      $region79: #{forward.1} parent=75 // pred_region
        %s4690 = smul.u32 16, %s26
        %p4691 = scmp.lt.s32.totalorder %s4690, 31
        %s4692 = scalar_select %p4691, %s4690, 31
        %s4693 = scalar_lea.vmem %s12, %s4692
      $region80: #{forward.1} parent=75 // pred_fallthru
        _
    $region76: #{forward.1} parent=5 // pred_fallthru
      _
  $region6: #{forward.1} parent=0 // loop_footer
    %s24 = sadd.s32 1, %s20
  $region7: #{forward.1} parent=0 // loop_footer_branch
    %19 = sbr.rel target = $region3
  $region8: #{forward.1} parent=0 // loop_exit
    _

</llo_original>
